<compile_context>
chip_gen: v6e
topology: v6e:2x2x1
jax: 0.10.0
libtpu: 0.0.40
codegen_flags: <defaults>
</compile_context>

<pallas_src>
import functools

import jax
import jax.numpy as jnp
from jax import lax
from jax.experimental import pallas as pl
from jax.experimental.pallas import tpu as pltpu

LANE = 128
_VMEM_LIMIT = 32 * 1024 * 1024  # safe scoped-VMEM request on v5e / v6e / v7x


def _round_up(x, m):
    return ((x + m - 1) // m) * m


def _pick_block_k(k_pad, max_bk=512):
    """Largest multiple of 128 that divides k_pad and is <= max_bk."""
    if k_pad <= max_bk:
        return k_pad
    best = 128
    for d in range(128, max_bk + 1, 128):
        if k_pad % d == 0:
            best = d
    return best


# ----------------------------- Pallas kernels ------------------------------

def _matmul_bias_kernel(a_ref, w_ref, b_ref, o_ref, acc_ref, *, relu):
    """Tiled matmul with f32 accumulator; bias (+ReLU) fused in the epilogue."""
    @pl.when(pl.program_id(1) == 0)
    def _init():
        acc_ref[...] = jnp.zeros_like(acc_ref)

    acc_ref[...] += jnp.dot(a_ref[...], w_ref[...],
                            preferred_element_type=jnp.float32)

    @pl.when(pl.program_id(1) == pl.num_programs(1) - 1)
    def _finalize():
        out = acc_ref[...] + b_ref[...]
        if relu:
            out = jnp.maximum(out, 0.0)
        o_ref[...] = out.astype(o_ref.dtype)


def pallas_linear(a, w, b, *, relu=False, out_dtype=jnp.float32,
                  block_m=128, max_block_k=512):
    """out = a @ w + b (optionally ReLU).

    a: [M, K] (cast to bf16 for the MXU), w: [K, N] (bf16), b: [N]/[1,N] (f32).
    Returns [M, round_up(N,128)] in out_dtype; padded N columns (zero weight &
    bias) are kept so kernel stores stay lane-dense.
    """
    M, K = a.shape
    K2, N = w.shape
    assert K == K2, (K, K2)

    n_pad = _round_up(N, LANE)
    k_pad = _round_up(K, LANE)
    bm = min(block_m, _round_up(M, 16))      # multiple of 16: bf16 sublane-pack friendly
    m_pad = _round_up(M, bm)
    bk = _pick_block_k(k_pad, max_block_k)

    a_p = jnp.pad(a.astype(jnp.bfloat16), ((0, m_pad - M), (0, k_pad - K)))
    w_p = jnp.pad(w.astype(jnp.bfloat16), ((0, k_pad - K), (0, n_pad - N)))
    b_p = jnp.pad(b.astype(jnp.float32).reshape(1, N), ((0, 0), (0, n_pad - N)))

    grid = (m_pad // bm, k_pad // bk)
    out = pl.pallas_call(
        functools.partial(_matmul_bias_kernel, relu=relu),
        out_shape=jax.ShapeDtypeStruct((m_pad, n_pad), out_dtype),
        grid=grid,
        in_specs=[
            pl.BlockSpec((bm, bk), lambda i, k: (i, k)),
            pl.BlockSpec((bk, n_pad), lambda i, k: (k, 0)),
            pl.BlockSpec((1, n_pad), lambda i, k: (0, 0)),
        ],
        out_specs=pl.BlockSpec((bm, n_pad), lambda i, k: (i, 0)),
        scratch_shapes=[pltpu.VMEM((bm, n_pad), jnp.float32)],
        compiler_params=pltpu.CompilerParams(
            dimension_semantics=("parallel", "arbitrary"),
            vmem_limit_bytes=_VMEM_LIMIT),
    )(a_p, w_p, b_p)
    return out[:M]  # drop padded rows; keep lane-dense padded columns


def _fused_head_kernel(feat_ref, w1_ref, b1_ref, w2_ref, b2_ref, o_ref,
                       *, dueling, n_adv, n_rows):
    """hidden = relu(feat @ W1 + b1) for adv|val fused along N, then
    scores = hidden @ W2 + b2 (cols [0,n_adv)=advantage, col n_adv=value),
    then the dueling combine (val + adv - mean(adv)) — all in one kernel."""
    h = jnp.dot(feat_ref[...], w1_ref[...], preferred_element_type=jnp.float32)
    h = jnp.maximum(h + b1_ref[...], 0.0)
    s = jnp.dot(h.astype(w2_ref.dtype), w2_ref[...],
                preferred_element_type=jnp.float32) + b2_ref[...]
    if dueling:
        bp, np_ = s.shape
        col = lax.broadcasted_iota(jnp.int32, (bp, np_), 1)
        row = lax.broadcasted_iota(jnp.int32, (bp, np_), 0)
        adv_mask = (col < n_adv) & (row < n_rows)   # exclude padded rows/cols
        mean = jnp.sum(jnp.where(adv_mask, s, 0.0)) * (1.0 / float(n_rows * n_adv))
        val = s[:, n_adv:n_adv + 1]                 # [bp, 1] value column
        s = val + s - mean
    o_ref[...] = s.astype(o_ref.dtype)


def pallas_fused_head(feat, w1, b1, w2, b2, *, num_actions, dueling):
    """feat: [B, Fp]; w1: [Fp, 1024] (adv|val hidden); w2: [1024, n2]."""
    B, F = feat.shape
    bp = _round_up(B, 16)
    feat_p = jnp.pad(feat.astype(jnp.bfloat16), ((0, bp - B), (0, 0)))
    H = w1.shape[1]
    n2 = w2.shape[1]
    out = pl.pallas_call(
        functools.partial(_fused_head_kernel, dueling=dueling,
                          n_adv=num_actions, n_rows=B),
        out_shape=jax.ShapeDtypeStruct((bp, n2), jnp.float32),
        grid=(1,),
        in_specs=[
            pl.BlockSpec((bp, F), lambda i: (0, 0)),
            pl.BlockSpec((F, H), lambda i: (0, 0)),
            pl.BlockSpec((1, H), lambda i: (0, 0)),
            pl.BlockSpec((H, n2), lambda i: (0, 0)),
            pl.BlockSpec((1, n2), lambda i: (0, 0)),
        ],
        out_specs=pl.BlockSpec((bp, n2), lambda i: (0, 0)),
        compiler_params=pltpu.CompilerParams(
            dimension_semantics=("arbitrary",),
            vmem_limit_bytes=_VMEM_LIMIT),
    )(feat_p, w1, b1, w2, b2)
    return out[:B, :num_actions]


# ------------------------------ glue (JAX) ---------------------------------

def im2col_nhwc(x, k, stride):
    """x: [B, H, W, C] -> patches [B*Ho*Wo, k*k*C] with (kh, kw, c) ordering."""
    B, H, W, C = x.shape
    Ho = (H - k) // stride + 1
    Wo = (W - k) // stride + 1
    cols = []
    for kh in range(k):
        for kw in range(k):
            cols.append(x[:, kh:kh + stride * (Ho - 1) + 1:stride,
                          kw:kw + stride * (Wo - 1) + 1:stride, :])
    patches = jnp.concatenate(cols, axis=-1)          # [B, Ho, Wo, k*k*C]
    return patches.reshape(B * Ho * Wo, k * k * C), Ho, Wo


def conv2d_relu(x_nhwc, w_mat, b_row, *, k, stride):
    """VALID conv + ReLU via NHWC im2col + tiled Pallas matmul.  Output stays
    NHWC with channels padded to 128 (zero-filled), in bf16."""
    B = x_nhwc.shape[0]
    patches, Ho, Wo = im2col_nhwc(x_nhwc, k, stride)
    out = pallas_linear(patches, w_mat, b_row, relu=True, out_dtype=jnp.bfloat16)
    return out.reshape(B, Ho, Wo, out.shape[1])


# --------------------------- model (params + fwd) ---------------------------

def _conv_out(h, k, s):
    return (h - k) // s + 1


def feature_size(input_shape):
    c, h, w = input_shape
    h = _conv_out(_conv_out(_conv_out(h, 8, 4), 4, 2), 3, 1)
    w = _conv_out(_conv_out(_conv_out(w, 8, 4), 4, 2), 3, 1)
    return 64 * h * w


def init_params(key, input_shape, num_outputs):
    """PyTorch-style uniform(-1/sqrt(fan_in), 1/sqrt(fan_in)) init, PyTorch layouts."""
    c_in = input_shape[0]
    fs = feature_size(input_shape)
    keys = jax.random.split(key, 14)

    def uinit(kw, kb, shape_w, shape_b, fan_in):
        bound = 1.0 / float(fan_in) ** 0.5
        w = jax.random.uniform(kw, shape_w, jnp.float32, -bound, bound)
        b = jax.random.uniform(kb, shape_b, jnp.float32, -bound, bound)
        return w, b

    p = {}
    p['w1'], p['b1'] = uinit(keys[0], keys[1], (32, c_in, 8, 8), (32,), c_in * 8 * 8)
    p['w2'], p['b2'] = uinit(keys[2], keys[3], (64, 32, 4, 4), (64,), 32 * 4 * 4)
    p['w3'], p['b3'] = uinit(keys[4], keys[5], (64, 64, 3, 3), (64,), 64 * 3 * 3)
    # Linear weights stored PyTorch-style as [out_features, in_features].
    p['adv_w1'], p['adv_b1'] = uinit(keys[6], keys[7], (512, fs), (512,), fs)
    p['adv_w2'], p['adv_b2'] = uinit(keys[8], keys[9], (num_outputs, 512), (num_outputs,), 512)
    p['val_w1'], p['val_b1'] = uinit(keys[10], keys[11], (512, fs), (512,), fs)
    p['val_w2'], p['val_b2'] = uinit(keys[12], keys[13], (1, 512), (1,), 512)
    return p


def prepare_params(params, input_shape, num_outputs):
    """One-time conversion of PyTorch-layout params into kernel-ready GEMM
    matrices: transposed to [K, N], channels padded to 128 lanes, bf16 weights,
    f32 biases, adv/val heads fused.  Done once, outside the forward pass."""
    c_in, H, W = input_shape
    h1, w1_ = _conv_out(H, 8, 4), _conv_out(W, 8, 4)
    h2, w2_ = _conv_out(h1, 4, 2), _conv_out(w1_, 4, 2)
    h3, w3_ = _conv_out(h2, 3, 1), _conv_out(w2_, 3, 1)

    def conv_mat(w, cin_pad):
        cout, cin, kh, kw = w.shape
        wt = jnp.transpose(w, (2, 3, 1, 0))                     # (kh, kw, Cin, Cout)
        wt = jnp.pad(wt, ((0, 0), (0, 0), (0, cin_pad - cin), (0, 0)))
        m = wt.reshape(kh * kw * cin_pad, cout)
        return jnp.pad(m, ((0, 0), (0, LANE - cout))).astype(jnp.bfloat16)

    def conv_bias(b):
        return jnp.pad(b.astype(jnp.float32), (0, LANE - b.shape[0])).reshape(1, LANE)

    def fc1_mat(w):
        # PyTorch feat ordering is (C=64, H3, W3); kernel feat is (H3, W3, C_pad=128).
        wr = w.reshape(512, 64, h3, w3_).transpose(2, 3, 1, 0)  # (H3, W3, 64, 512)
        wr = jnp.pad(wr, ((0, 0), (0, 0), (0, LANE - 64), (0, 0)))
        return wr.reshape(h3 * w3_ * LANE, 512)

    A = num_outputs
    n2 = _round_up(A + 1, LANE)

    kp = {
        'c1_w': conv_mat(params['w1'], c_in),
        'c1_b': conv_bias(params['b1']),
        'c2_w': conv_mat(params['w2'], LANE),
        'c2_b': conv_bias(params['b2']),
        'c3_w': conv_mat(params['w3'], LANE),
        'c3_b': conv_bias(params['b3']),
        'fc1_w': jnp.concatenate([fc1_mat(params['adv_w1']),
                                  fc1_mat(params['val_w1'])],
                                 axis=1).astype(jnp.bfloat16),          # [Fp, 1024]
        'fc1_b': jnp.concatenate([params['adv_b1'], params['val_b1']]
                                 ).astype(jnp.float32).reshape(1, 1024),
    }
    fc2 = jnp.zeros((1024, n2), jnp.float32)
    fc2 = fc2.at[:512, :A].set(params['adv_w2'].T)    # adv block
    fc2 = fc2.at[512:, A].set(params['val_w2'][0])    # val block -> column A
    kp['fc2_w'] = fc2.astype(jnp.bfloat16)
    kp['fc2_b'] = (jnp.zeros((n2,), jnp.float32)
                   .at[:A].set(params['adv_b2'])
                   .at[A].set(params['val_b2'][0])).reshape(1, n2)
    return kp


def dueling_dqn_forward(kp, x, num_outputs, add_dueling):
    # NCHW -> NHWC once; activations stay channels-last (lane dim) afterwards.
    x = jnp.transpose(x, (0, 2, 3, 1))
    x = conv2d_relu(x, kp['c1_w'], kp['c1_b'], k=8, stride=4)
    x = conv2d_relu(x, kp['c2_w'], kp['c2_b'], k=4, stride=2)
    x = conv2d_relu(x, kp['c3_w'], kp['c3_b'], k=3, stride=1)
    feat = x.reshape(x.shape[0], -1)          # (B, H3*W3*128); matches fc1 layout
    return pallas_fused_head(feat, kp['fc1_w'], kp['fc1_b'],
                             kp['fc2_w'], kp['fc2_b'],
                             num_actions=num_outputs, dueling=add_dueling)


# ------------------------------- reference ----------------------------------

def ref_forward(params, x, add_dueling):
    def conv(x, w, b, s):
        y = lax.conv_general_dilated(x, w, (s, s), 'VALID',
                                     dimension_numbers=('NCHW', 'OIHW', 'NCHW'))
        return jnp.maximum(y + b[None, :, None, None], 0.0)

    x = conv(x, params['w1'], params['b1'], 4)
    x = conv(x, params['w2'], params['b2'], 2)
    x = conv(x, params['w3'], params['b3'], 1)
    feat = x.reshape(x.shape[0], -1)
    adv = jnp.maximum(feat @ params['adv_w1'].T + params['adv_b1'], 0.0)
    adv = adv @ params['adv_w2'].T + params['adv_b2']
    if add_dueling:
        val = jnp.maximum(feat @ params['val_w1'].T + params['val_b1'], 0.0)
        val = val @ params['val_w2'].T + params['val_b2']
        return val + adv - adv.mean()
    return adv


# --------------------------------- main -------------------------------------

if __name__ == "__main__":
    # Smallest input where the 8/4 -> 4/2 -> 3/1 conv stack is valid: 36x36.
    input_shape = (4, 36, 36)   # (C, H, W)
    num_outputs = 6
    batch = 2

    key = jax.random.PRNGKey(0)
    kx, kparam = jax.random.split(key)
    x = jax.random.normal(kx, (batch,) + input_shape, jnp.float32)
    params = init_params(kparam, input_shape, num_outputs)
    kp = prepare_params(params, input_shape, num_outputs)   # one-time weight prep

    fwd = jax.jit(dueling_dqn_forward, static_argnums=(2, 3))

    # add_dueling=True path (value + advantage - advantage.mean(), fused in-kernel)
    out_duel = jax.block_until_ready(fwd(kp, x, num_outputs, True))
    ref_duel = ref_forward(params, x, True)
    assert out_duel.shape == (batch, num_outputs)
    # bf16 MXU inputs (f32 accumulate) -> loosened tolerance vs f32 reference.
    assert jnp.allclose(out_duel, ref_duel, atol=2e-2, rtol=2e-2), \
        float(jnp.max(jnp.abs(out_duel - ref_duel)))

    # add_dueling=False path (plain advantage head)
    out_plain = jax.block_until_ready(fwd(kp, x, num_outputs, False))
    ref_plain = ref_forward(params, x, False)
    assert out_plain.shape == (batch, num_outputs)
    assert jnp.allclose(out_plain, ref_plain, atol=2e-2, rtol=2e-2), \
        float(jnp.max(jnp.abs(out_plain - ref_plain)))

    print("KERNEL_OK")
</pallas_src>

<mosaic_0001>
module attributes {stable_mosaic.version = 11 : i64} {
  func.func @_matmul_bias_kernel(%arg0: i32, %arg1: i32, %arg2: memref<128x256xbf16, #tpu.memory_space<vmem>>, %arg3: memref<256x128xbf16, #tpu.memory_space<vmem>>, %arg4: memref<1x128xf32, #tpu.memory_space<vmem>>, %arg5: memref<128x128xbf16, #tpu.memory_space<vmem>>, %arg6: memref<128x128xf32, #tpu.memory_space<vmem>>) attributes {dimension_semantics = [#tpu.dimension_semantics<parallel>, #tpu.dimension_semantics<arbitrary>], iteration_bounds = array<i64: 1, 1>, scalar_prefetch = 0 : i64, scratch_operands = 1 : i64, tpu.core_type = #tpu.core_type<tc>, window_params = [{transform_indices = @transform_0, window_bounds = array<i64: 128, 256>}, {transform_indices = @transform_1, window_bounds = array<i64: 256, 128>}, {pipeline_mode = #tpu.pipeline_mode<synchronous>, transform_indices = @transform_2, window_bounds = array<i64: 1, 128>}, {transform_indices = @transform_3, window_bounds = array<i64: 128, 128>}]} {
    %c0_i32 = arith.constant 0 : i32
    %0 = arith.cmpi eq, %arg1, %c0_i32 : i32
    %1 = arith.extui %0 : i1 to i32
    %c0_i32_0 = arith.constant 0 : i32
    %2 = arith.cmpi ne, %1, %c0_i32_0 : i32
    scf.if %2 {
      %cst_10 = arith.constant 0.000000e+00 : f32
      %12 = vector.broadcast %cst_10 : f32 to vector<128x128xf32>
      %c0_11 = arith.constant 0 : index
      %c0_12 = arith.constant 0 : index
      %13 = vector.load %arg6[%c0_11, %c0_12] : memref<128x128xf32, #tpu.memory_space<vmem>>, vector<128x128xf32>
      tpu.vector_store %arg6[%c0_11, %c0_12], %12 {strides = array<i32>} : memref<128x128xf32, #tpu.memory_space<vmem>>, vector<128x128xf32>,
    } else {
    }
    %c0 = arith.constant 0 : index
    %c0_1 = arith.constant 0 : index
    %3 = vector.load %arg6[%c0, %c0_1] : memref<128x128xf32, #tpu.memory_space<vmem>>, vector<128x128xf32>
    %c0_2 = arith.constant 0 : index
    %c0_3 = arith.constant 0 : index
    %4 = vector.load %arg2[%c0_2, %c0_3] : memref<128x256xbf16, #tpu.memory_space<vmem>>, vector<128x256xbf16>
    %c0_4 = arith.constant 0 : index
    %c0_5 = arith.constant 0 : index
    %5 = vector.load %arg3[%c0_4, %c0_5] : memref<256x128xbf16, #tpu.memory_space<vmem>>, vector<256x128xbf16>
    %cst = arith.constant dense<0.000000e+00> : vector<128x128xf32>
    %6 = tpu.matmul %4, %5, %cst {dimension_numbers = #tpu.dot_dimension_numbers<[1], [0], [0], [1], [0, 0, 1, 1], [], []>} : vector<128x256xbf16>, vector<256x128xbf16>, vector<128x128xf32> -> vector<128x128xf32>
    %7 = arith.addf %3, %6 : vector<128x128xf32>
    %c0_6 = arith.constant 0 : index
    %c0_7 = arith.constant 0 : index
    %8 = vector.load %arg6[%c0_6, %c0_7] : memref<128x128xf32, #tpu.memory_space<vmem>>, vector<128x128xf32>
    tpu.vector_store %arg6[%c0_6, %c0_7], %7 {strides = array<i32>} : memref<128x128xf32, #tpu.memory_space<vmem>>, vector<128x128xf32>,
    %c0_i32_8 = arith.constant 0 : i32
    %9 = arith.cmpi eq, %arg1, %c0_i32_8 : i32
    %10 = arith.extui %9 : i1 to i32
    %c0_i32_9 = arith.constant 0 : i32
    %11 = arith.cmpi ne, %10, %c0_i32_9 : i32
    scf.if %11 {
      %c0_10 = arith.constant 0 : index
      %c0_11 = arith.constant 0 : index
      %12 = vector.load %arg6[%c0_10, %c0_11] : memref<128x128xf32, #tpu.memory_space<vmem>>, vector<128x128xf32>
      %c0_12 = arith.constant 0 : index
      %c0_13 = arith.constant 0 : index
      %13 = vector.load %arg4[%c0_12, %c0_13] : memref<1x128xf32, #tpu.memory_space<vmem>>, vector<1x128xf32>
      %14 = vector.broadcast %13 : vector<1x128xf32> to vector<128x128xf32>
      %15 = arith.addf %12, %14 : vector<128x128xf32>
      %cst_14 = arith.constant 0.000000e+00 : f32
      %16 = vector.broadcast %cst_14 : f32 to vector<128x128xf32>
      %17 = arith.maximumf %15, %16 : vector<128x128xf32>
      %18 = arith.truncf %17 : vector<128x128xf32> to vector<128x128xbf16>
      %c0_15 = arith.constant 0 : index
      %c0_16 = arith.constant 0 : index
      %19 = vector.load %arg5[%c0_15, %c0_16] : memref<128x128xbf16, #tpu.memory_space<vmem>>, vector<128x128xbf16>
      tpu.vector_store %arg5[%c0_15, %c0_16], %18 {strides = array<i32>} : memref<128x128xbf16, #tpu.memory_space<vmem>>, vector<128x128xbf16>,
    } else {
    }
    return
  }
  func.func @transform_0(%arg0: i32, %arg1: i32) -> (i32, i32) {
    %c0_i32 = arith.constant 0 : i32
    return %arg0, %arg1 : i32, i32
  }
  func.func @transform_1(%arg0: i32, %arg1: i32) -> (i32, i32) {
    %c0_i32 = arith.constant 0 : i32
    %c0_i32_0 = arith.constant 0 : i32
    return %arg1, %c0_i32 : i32, i32
  }
  func.func @transform_2(%arg0: i32, %arg1: i32) -> (i32, i32) {
    %c0_i32 = arith.constant 0 : i32
    %c0_i32_0 = arith.constant 0 : i32
    %c0_i32_1 = arith.constant 0 : i32
    return %c0_i32, %c0_i32_0 : i32, i32
  }
  func.func @transform_3(%arg0: i32, %arg1: i32) -> (i32, i32) {
    %c0_i32 = arith.constant 0 : i32
    %c0_i32_0 = arith.constant 0 : i32
    return %arg0, %c0_i32 : i32, i32
  }
}

module attributes {stable_mosaic.version = 11 : i64} {
  func.func @_matmul_bias_kernel(%arg0: i32, %arg1: i32, %arg2: memref<32x512xbf16, #tpu.memory_space<vmem>>, %arg3: memref<512x128xbf16, #tpu.memory_space<vmem>>, %arg4: memref<1x128xf32, #tpu.memory_space<vmem>>, %arg5: memref<32x128xbf16, #tpu.memory_space<vmem>>, %arg6: memref<32x128xf32, #tpu.memory_space<vmem>>) attributes {dimension_semantics = [#tpu.dimension_semantics<parallel>, #tpu.dimension_semantics<arbitrary>], iteration_bounds = array<i64: 1, 4>, scalar_prefetch = 0 : i64, scratch_operands = 1 : i64, tpu.core_type = #tpu.core_type<tc>, window_params = [{transform_indices = @transform_0, window_bounds = array<i64: 32, 512>}, {transform_indices = @transform_1, window_bounds = array<i64: 512, 128>}, {pipeline_mode = #tpu.pipeline_mode<synchronous>, transform_indices = @transform_2, window_bounds = array<i64: 1, 128>}, {transform_indices = @transform_3, window_bounds = array<i64: 32, 128>}]} {
    %c0_i32 = arith.constant 0 : i32
    %0 = arith.cmpi eq, %arg1, %c0_i32 : i32
    %1 = arith.extui %0 : i1 to i32
    %c0_i32_0 = arith.constant 0 : i32
    %2 = arith.cmpi ne, %1, %c0_i32_0 : i32
    scf.if %2 {
      %cst_9 = arith.constant 0.000000e+00 : f32
      %12 = vector.broadcast %cst_9 : f32 to vector<32x128xf32>
      %c0_10 = arith.constant 0 : index
      %c0_11 = arith.constant 0 : index
      %13 = vector.load %arg6[%c0_10, %c0_11] : memref<32x128xf32, #tpu.memory_space<vmem>>, vector<32x128xf32>
      tpu.vector_store %arg6[%c0_10, %c0_11], %12 {strides = array<i32>} : memref<32x128xf32, #tpu.memory_space<vmem>>, vector<32x128xf32>,
    } else {
    }
    %c0 = arith.constant 0 : index
    %c0_1 = arith.constant 0 : index
    %3 = vector.load %arg6[%c0, %c0_1] : memref<32x128xf32, #tpu.memory_space<vmem>>, vector<32x128xf32>
    %c0_2 = arith.constant 0 : index
    %c0_3 = arith.constant 0 : index
    %4 = vector.load %arg2[%c0_2, %c0_3] : memref<32x512xbf16, #tpu.memory_space<vmem>>, vector<32x512xbf16>
    %c0_4 = arith.constant 0 : index
    %c0_5 = arith.constant 0 : index
    %5 = vector.load %arg3[%c0_4, %c0_5] : memref<512x128xbf16, #tpu.memory_space<vmem>>, vector<512x128xbf16>
    %cst = arith.constant dense<0.000000e+00> : vector<32x128xf32>
    %6 = tpu.matmul %4, %5, %cst {dimension_numbers = #tpu.dot_dimension_numbers<[1], [0], [0], [1], [0, 0, 1, 1], [], []>} : vector<32x512xbf16>, vector<512x128xbf16>, vector<32x128xf32> -> vector<32x128xf32>
    %7 = arith.addf %3, %6 : vector<32x128xf32>
    %c0_6 = arith.constant 0 : index
    %c0_7 = arith.constant 0 : index
    %8 = vector.load %arg6[%c0_6, %c0_7] : memref<32x128xf32, #tpu.memory_space<vmem>>, vector<32x128xf32>
    tpu.vector_store %arg6[%c0_6, %c0_7], %7 {strides = array<i32>} : memref<32x128xf32, #tpu.memory_space<vmem>>, vector<32x128xf32>,
    %c3_i32 = arith.constant 3 : i32
    %9 = arith.cmpi eq, %arg1, %c3_i32 : i32
    %10 = arith.extui %9 : i1 to i32
    %c0_i32_8 = arith.constant 0 : i32
    %11 = arith.cmpi ne, %10, %c0_i32_8 : i32
    scf.if %11 {
      %c0_9 = arith.constant 0 : index
      %c0_10 = arith.constant 0 : index
      %12 = vector.load %arg6[%c0_9, %c0_10] : memref<32x128xf32, #tpu.memory_space<vmem>>, vector<32x128xf32>
      %c0_11 = arith.constant 0 : index
      %c0_12 = arith.constant 0 : index
      %13 = vector.load %arg4[%c0_11, %c0_12] : memref<1x128xf32, #tpu.memory_space<vmem>>, vector<1x128xf32>
      %14 = vector.broadcast %13 : vector<1x128xf32> to vector<32x128xf32>
      %15 = arith.addf %12, %14 : vector<32x128xf32>
      %cst_13 = arith.constant 0.000000e+00 : f32
      %16 = vector.broadcast %cst_13 : f32 to vector<32x128xf32>
      %17 = arith.maximumf %15, %16 : vector<32x128xf32>
      %18 = arith.truncf %17 : vector<32x128xf32> to vector<32x128xbf16>
      %c0_14 = arith.constant 0 : index
      %c0_15 = arith.constant 0 : index
      %19 = vector.load %arg5[%c0_14, %c0_15] : memref<32x128xbf16, #tpu.memory_space<vmem>>, vector<32x128xbf16>
      tpu.vector_store %arg5[%c0_14, %c0_15], %18 {strides = array<i32>} : memref<32x128xbf16, #tpu.memory_space<vmem>>, vector<32x128xbf16>,
    } else {
    }
    return
  }
  func.func @transform_0(%arg0: i32, %arg1: i32) -> (i32, i32) {
    %c0_i32 = arith.constant 0 : i32
    return %arg0, %arg1 : i32, i32
  }
  func.func @transform_1(%arg0: i32, %arg1: i32) -> (i32, i32) {
    %c0_i32 = arith.constant 0 : i32
    %c0_i32_0 = arith.constant 0 : i32
    return %arg1, %c0_i32 : i32, i32
  }
  func.func @transform_2(%arg0: i32, %arg1: i32) -> (i32, i32) {
    %c0_i32 = arith.constant 0 : i32
    %c0_i32_0 = arith.constant 0 : i32
    %c0_i32_1 = arith.constant 0 : i32
    return %c0_i32, %c0_i32_0 : i32, i32
  }
  func.func @transform_3(%arg0: i32, %arg1: i32) -> (i32, i32) {
    %c0_i32 = arith.constant 0 : i32
    %c0_i32_0 = arith.constant 0 : i32
    return %arg0, %c0_i32 : i32, i32
  }
}

module attributes {stable_mosaic.version = 11 : i64} {
  func.func @_matmul_bias_kernel(%arg0: i32, %arg1: i32, %arg2: memref<16x384xbf16, #tpu.memory_space<vmem>>, %arg3: memref<384x128xbf16, #tpu.memory_space<vmem>>, %arg4: memref<1x128xf32, #tpu.memory_space<vmem>>, %arg5: memref<16x128xbf16, #tpu.memory_space<vmem>>, %arg6: memref<16x128xf32, #tpu.memory_space<vmem>>) attributes {dimension_semantics = [#tpu.dimension_semantics<parallel>, #tpu.dimension_semantics<arbitrary>], iteration_bounds = array<i64: 1, 3>, scalar_prefetch = 0 : i64, scratch_operands = 1 : i64, tpu.core_type = #tpu.core_type<tc>, window_params = [{transform_indices = @transform_0, window_bounds = array<i64: 16, 384>}, {transform_indices = @transform_1, window_bounds = array<i64: 384, 128>}, {pipeline_mode = #tpu.pipeline_mode<synchronous>, transform_indices = @transform_2, window_bounds = array<i64: 1, 128>}, {transform_indices = @transform_3, window_bounds = array<i64: 16, 128>}]} {
    %c0_i32 = arith.constant 0 : i32
    %0 = arith.cmpi eq, %arg1, %c0_i32 : i32
    %1 = arith.extui %0 : i1 to i32
    %c0_i32_0 = arith.constant 0 : i32
    %2 = arith.cmpi ne, %1, %c0_i32_0 : i32
    scf.if %2 {
      %cst_9 = arith.constant 0.000000e+00 : f32
      %12 = vector.broadcast %cst_9 : f32 to vector<16x128xf32>
      %c0_10 = arith.constant 0 : index
      %c0_11 = arith.constant 0 : index
      %13 = vector.load %arg6[%c0_10, %c0_11] : memref<16x128xf32, #tpu.memory_space<vmem>>, vector<16x128xf32>
      tpu.vector_store %arg6[%c0_10, %c0_11], %12 {strides = array<i32>} : memref<16x128xf32, #tpu.memory_space<vmem>>, vector<16x128xf32>,
    } else {
    }
    %c0 = arith.constant 0 : index
    %c0_1 = arith.constant 0 : index
    %3 = vector.load %arg6[%c0, %c0_1] : memref<16x128xf32, #tpu.memory_space<vmem>>, vector<16x128xf32>
    %c0_2 = arith.constant 0 : index
    %c0_3 = arith.constant 0 : index
    %4 = vector.load %arg2[%c0_2, %c0_3] : memref<16x384xbf16, #tpu.memory_space<vmem>>, vector<16x384xbf16>
    %c0_4 = arith.constant 0 : index
    %c0_5 = arith.constant 0 : index
    %5 = vector.load %arg3[%c0_4, %c0_5] : memref<384x128xbf16, #tpu.memory_space<vmem>>, vector<384x128xbf16>
    %cst = arith.constant dense<0.000000e+00> : vector<16x128xf32>
    %6 = tpu.matmul %4, %5, %cst {dimension_numbers = #tpu.dot_dimension_numbers<[1], [0], [0], [1], [0, 0, 1, 1], [], []>} : vector<16x384xbf16>, vector<384x128xbf16>, vector<16x128xf32> -> vector<16x128xf32>
    %7 = arith.addf %3, %6 : vector<16x128xf32>
    %c0_6 = arith.constant 0 : index
    %c0_7 = arith.constant 0 : index
    %8 = vector.load %arg6[%c0_6, %c0_7] : memref<16x128xf32, #tpu.memory_space<vmem>>, vector<16x128xf32>
    tpu.vector_store %arg6[%c0_6, %c0_7], %7 {strides = array<i32>} : memref<16x128xf32, #tpu.memory_space<vmem>>, vector<16x128xf32>,
    %c2_i32 = arith.constant 2 : i32
    %9 = arith.cmpi eq, %arg1, %c2_i32 : i32
    %10 = arith.extui %9 : i1 to i32
    %c0_i32_8 = arith.constant 0 : i32
    %11 = arith.cmpi ne, %10, %c0_i32_8 : i32
    scf.if %11 {
      %c0_9 = arith.constant 0 : index
      %c0_10 = arith.constant 0 : index
      %12 = vector.load %arg6[%c0_9, %c0_10] : memref<16x128xf32, #tpu.memory_space<vmem>>, vector<16x128xf32>
      %c0_11 = arith.constant 0 : index
      %c0_12 = arith.constant 0 : index
      %13 = vector.load %arg4[%c0_11, %c0_12] : memref<1x128xf32, #tpu.memory_space<vmem>>, vector<1x128xf32>
      %14 = vector.broadcast %13 : vector<1x128xf32> to vector<16x128xf32>
      %15 = arith.addf %12, %14 : vector<16x128xf32>
      %cst_13 = arith.constant 0.000000e+00 : f32
      %16 = vector.broadcast %cst_13 : f32 to vector<16x128xf32>
      %17 = arith.maximumf %15, %16 : vector<16x128xf32>
      %18 = arith.truncf %17 : vector<16x128xf32> to vector<16x128xbf16>
      %c0_14 = arith.constant 0 : index
      %c0_15 = arith.constant 0 : index
      %19 = vector.load %arg5[%c0_14, %c0_15] : memref<16x128xbf16, #tpu.memory_space<vmem>>, vector<16x128xbf16>
      tpu.vector_store %arg5[%c0_14, %c0_15], %18 {strides = array<i32>} : memref<16x128xbf16, #tpu.memory_space<vmem>>, vector<16x128xbf16>,
    } else {
    }
    return
  }
  func.func @transform_0(%arg0: i32, %arg1: i32) -> (i32, i32) {
    %c0_i32 = arith.constant 0 : i32
    return %arg0, %arg1 : i32, i32
  }
  func.func @transform_1(%arg0: i32, %arg1: i32) -> (i32, i32) {
    %c0_i32 = arith.constant 0 : i32
    %c0_i32_0 = arith.constant 0 : i32
    return %arg1, %c0_i32 : i32, i32
  }
  func.func @transform_2(%arg0: i32, %arg1: i32) -> (i32, i32) {
    %c0_i32 = arith.constant 0 : i32
    %c0_i32_0 = arith.constant 0 : i32
    %c0_i32_1 = arith.constant 0 : i32
    return %c0_i32, %c0_i32_0 : i32, i32
  }
  func.func @transform_3(%arg0: i32, %arg1: i32) -> (i32, i32) {
    %c0_i32 = arith.constant 0 : i32
    %c0_i32_0 = arith.constant 0 : i32
    return %arg0, %c0_i32 : i32, i32
  }
}

module attributes {stable_mosaic.version = 11 : i64} {
  func.func @_fused_head_kernel(%arg0: i32, %arg1: memref<16x128xbf16, #tpu.memory_space<vmem>>, %arg2: memref<128x1024xbf16, #tpu.memory_space<vmem>>, %arg3: memref<1x1024xf32, #tpu.memory_space<vmem>>, %arg4: memref<1024x128xbf16, #tpu.memory_space<vmem>>, %arg5: memref<1x128xf32, #tpu.memory_space<vmem>>, %arg6: memref<16x128xf32, #tpu.memory_space<vmem>>) attributes {dimension_semantics = [#tpu.dimension_semantics<arbitrary>], iteration_bounds = array<i64: 1>, scalar_prefetch = 0 : i64, scratch_operands = 0 : i64, tpu.core_type = #tpu.core_type<tc>, window_params = [{pipeline_mode = #tpu.pipeline_mode<synchronous>, transform_indices = @transform_0, window_bounds = array<i64: 16, 128>}, {pipeline_mode = #tpu.pipeline_mode<synchronous>, transform_indices = @transform_1, window_bounds = array<i64: 128, 1024>}, {pipeline_mode = #tpu.pipeline_mode<synchronous>, transform_indices = @transform_2, window_bounds = array<i64: 1, 1024>}, {pipeline_mode = #tpu.pipeline_mode<synchronous>, transform_indices = @transform_3, window_bounds = array<i64: 1024, 128>}, {pipeline_mode = #tpu.pipeline_mode<synchronous>, transform_indices = @transform_4, window_bounds = array<i64: 1, 128>}, {pipeline_mode = #tpu.pipeline_mode<synchronous>, transform_indices = @transform_5, window_bounds = array<i64: 16, 128>}]} {
    %c0 = arith.constant 0 : index
    %c0_0 = arith.constant 0 : index
    %0 = vector.load %arg1[%c0, %c0_0] : memref<16x128xbf16, #tpu.memory_space<vmem>>, vector<16x128xbf16>
    %c0_1 = arith.constant 0 : index
    %c0_2 = arith.constant 0 : index
    %1 = vector.load %arg2[%c0_1, %c0_2] : memref<128x1024xbf16, #tpu.memory_space<vmem>>, vector<128x1024xbf16>
    %cst = arith.constant dense<0.000000e+00> : vector<16x1024xf32>
    %2 = tpu.matmul %0, %1, %cst {dimension_numbers = #tpu.dot_dimension_numbers<[1], [0], [0], [1], [0, 0, 1, 1], [], []>} : vector<16x128xbf16>, vector<128x1024xbf16>, vector<16x1024xf32> -> vector<16x1024xf32>
    %c0_3 = arith.constant 0 : index
    %c0_4 = arith.constant 0 : index
    %3 = vector.load %arg3[%c0_3, %c0_4] : memref<1x1024xf32, #tpu.memory_space<vmem>>, vector<1x1024xf32>
    %4 = vector.broadcast %3 : vector<1x1024xf32> to vector<16x1024xf32>
    %5 = arith.addf %2, %4 : vector<16x1024xf32>
    %cst_5 = arith.constant 0.000000e+00 : f32
    %6 = vector.broadcast %cst_5 : f32 to vector<16x1024xf32>
    %7 = arith.maximumf %5, %6 : vector<16x1024xf32>
    %8 = arith.truncf %7 : vector<16x1024xf32> to vector<16x1024xbf16>
    %c0_6 = arith.constant 0 : index
    %c0_7 = arith.constant 0 : index
    %9 = vector.load %arg4[%c0_6, %c0_7] : memref<1024x128xbf16, #tpu.memory_space<vmem>>, vector<1024x128xbf16>
    %cst_8 = arith.constant dense<0.000000e+00> : vector<16x128xf32>
    %10 = tpu.matmul %8, %9, %cst_8 {dimension_numbers = #tpu.dot_dimension_numbers<[1], [0], [0], [1], [0, 0, 1, 1], [], []>} : vector<16x1024xbf16>, vector<1024x128xbf16>, vector<16x128xf32> -> vector<16x128xf32>
    %c0_9 = arith.constant 0 : index
    %c0_10 = arith.constant 0 : index
    %11 = vector.load %arg5[%c0_9, %c0_10] : memref<1x128xf32, #tpu.memory_space<vmem>>, vector<1x128xf32>
    %12 = vector.broadcast %11 : vector<1x128xf32> to vector<16x128xf32>
    %13 = arith.addf %10, %12 : vector<16x128xf32>
    %14 = tpu.iota {dimensions = array<i32: 1>} : vector<16x128xi32>
    %15 = tpu.iota {dimensions = array<i32: 0>} : vector<16x128xi32>
    %c6_i32 = arith.constant 6 : i32
    %16 = vector.broadcast %c6_i32 : i32 to vector<16x128xi32>
    %17 = arith.cmpi slt, %14, %16 : vector<16x128xi32>
    %c2_i32 = arith.constant 2 : i32
    %18 = vector.broadcast %c2_i32 : i32 to vector<16x128xi32>
    %19 = arith.cmpi slt, %15, %18 : vector<16x128xi32>
    %20 = arith.andi %17, %19 : vector<16x128xi1>
    %cst_11 = arith.constant 0.000000e+00 : f32
    %21 = vector.broadcast %cst_11 : f32 to vector<16x128xf32>
    %22 = arith.select %20, %13, %21 : vector<16x128xi1>, vector<16x128xf32>
    %23 = vector.shape_cast %22 : vector<16x128xf32> to vector<1x16x128xf32>
    %cst_12 = arith.constant dense<0.000000e+00> : vector<1xf32>
    %24 = vector.multi_reduction <add>, %23, %cst_12 [1, 2] : vector<1x16x128xf32> to vector<1xf32>
    %25 = vector.shape_cast %24 : vector<1xf32> to vector<1x1x1xf32>
    %26 = vector.extract %25[0, 0, 0] : f32 from vector<1x1x1xf32>
    %cst_13 = arith.constant 0.0833333358 : f32
    %27 = arith.mulf %26, %cst_13 : f32
    %28 = vector.extract_strided_slice %13 {offsets = [0, 6], sizes = [16, 1], strides = [1, 1]} : vector<16x128xf32> to vector<16x1xf32>
    %29 = vector.broadcast %28 : vector<16x1xf32> to vector<16x128xf32>
    %30 = arith.addf %29, %13 : vector<16x128xf32>
    %31 = vector.broadcast %27 : f32 to vector<16x128xf32>
    %32 = arith.subf %30, %31 : vector<16x128xf32>
    %c0_14 = arith.constant 0 : index
    %c0_15 = arith.constant 0 : index
    %33 = vector.load %arg6[%c0_14, %c0_15] : memref<16x128xf32, #tpu.memory_space<vmem>>, vector<16x128xf32>
    tpu.vector_store %arg6[%c0_14, %c0_15], %32 {strides = array<i32>} : memref<16x128xf32, #tpu.memory_space<vmem>>, vector<16x128xf32>,
    return
  }
  func.func @transform_0(%arg0: i32) -> (i32, i32) {
    %c0_i32 = arith.constant 0 : i32
    %c0_i32_0 = arith.constant 0 : i32
    %c0_i32_1 = arith.constant 0 : i32
    return %c0_i32, %c0_i32_0 : i32, i32
  }
  func.func @transform_1(%arg0: i32) -> (i32, i32) {
    %c0_i32 = arith.constant 0 : i32
    %c0_i32_0 = arith.constant 0 : i32
    %c0_i32_1 = arith.constant 0 : i32
    return %c0_i32, %c0_i32_0 : i32, i32
  }
  func.func @transform_2(%arg0: i32) -> (i32, i32) {
    %c0_i32 = arith.constant 0 : i32
    %c0_i32_0 = arith.constant 0 : i32
    %c0_i32_1 = arith.constant 0 : i32
    return %c0_i32, %c0_i32_0 : i32, i32
  }
  func.func @transform_3(%arg0: i32) -> (i32, i32) {
    %c0_i32 = arith.constant 0 : i32
    %c0_i32_0 = arith.constant 0 : i32
    %c0_i32_1 = arith.constant 0 : i32
    return %c0_i32, %c0_i32_0 : i32, i32
  }
  func.func @transform_4(%arg0: i32) -> (i32, i32) {
    %c0_i32 = arith.constant 0 : i32
    %c0_i32_0 = arith.constant 0 : i32
    %c0_i32_1 = arith.constant 0 : i32
    return %c0_i32, %c0_i32_0 : i32, i32
  }
  func.func @transform_5(%arg0: i32) -> (i32, i32) {
    %c0_i32 = arith.constant 0 : i32
    %c0_i32_0 = arith.constant 0 : i32
    %c0_i32_1 = arith.constant 0 : i32
    return %c0_i32, %c0_i32_0 : i32, i32
  }
}

</mosaic_0001>

<llo_original>
// kernel: dueling_dqn_forward.4
$region0: #{dueling_dqn_forward.4}
  #allocation0 [shape = 'u32[]', space=smem, size = 0x4, offset = 0x4, fixed_abs, tag = 'smem constant byte address 0x4 - core index']
  #allocation1 [shape = 'u32[144,128]{1,0:T(1,128)}', space=vmem, size = 0x12000, scoped, tag = 'internal scratch']
  #allocation2 [shape = 'f32[128,128]{1,0:T(8,128)}', space=vmem, size = 0x10000, scoped, tag = 'scratch operand']
  %s0 = inlined_call_operand.vmem [shape: bf16[128,256], index: 0, kind: input, shape index: {}]
  %s1 = inlined_call_operand.vmem [shape: bf16[256,128], index: 1, kind: input, shape index: {}]
  %s2 = inlined_call_operand.vmem [shape: f32[1,128], index: 2, kind: input, shape index: {}]
  %s3 = inlined_call_operand.vmem [shape: bf16[128,128], index: 3, kind: output, shape index: {}]
  %s4 = sld [smem:[#allocation0]]
  $region30: #{dueling_dqn_forward.4} parent=0
    _
  %s6 = ssub.s32 1, %s4
  %s7 = scalar_select 0, %s6, %s4
  // Predicated region
  $region2: #{dueling_dqn_forward.4} parent=0 // pred_check
    _
  $region3: #{dueling_dqn_forward.4} parent=0 // pred_check_branch
    %9 = sbr.rel (0) target = $region5
  $region4: #{dueling_dqn_forward.4} parent=0 // pred_region
    _
  $region5: #{dueling_dqn_forward.4} parent=0 // pred_fallthru
    _
  // Predicated region
  $region6: #{dueling_dqn_forward.4} parent=0 // pred_check
    _
  $region7: #{dueling_dqn_forward.4} parent=0 // pred_check_branch
    %11 = sbr.rel (0) target = $region9
  $region8: #{dueling_dqn_forward.4} parent=0 // pred_region
    _
  $region9: #{dueling_dqn_forward.4} parent=0 // pred_fallthru
    _
  // Predicated region
  $region10: #{dueling_dqn_forward.4} parent=0 // pred_check
    _
  $region11: #{dueling_dqn_forward.4} parent=0 // pred_check_branch
    %13 = sbr.rel (0) target = $region13
  $region12: #{dueling_dqn_forward.4} parent=0 // pred_region
    _
  $region13: #{dueling_dqn_forward.4} parent=0 // pred_fallthru
    _
  %p15 = scmp.eq.s32.totalorder 0, 0
  // Predicated region
  $region14: #{dueling_dqn_forward.4} parent=0 // pred_check
    %p16 = pneg %p15
  $region15: #{dueling_dqn_forward.4} parent=0 // pred_check_branch
    %18 = sbr.rel (%p16) target = $region17
  $region16: #{dueling_dqn_forward.4} parent=0 // pred_region
    %19 = vst [vmem:[#allocation2] sm:$0xff] 0.0
    %20 = vst [vmem:[#allocation2 + $0x8] sm:$0xff] 0.0
    %21 = vst [vmem:[#allocation2 + $0x10] sm:$0xff] 0.0
    %22 = vst [vmem:[#allocation2 + $0x18] sm:$0xff] 0.0
    %23 = vst [vmem:[#allocation2 + $0x20] sm:$0xff] 0.0
    %24 = vst [vmem:[#allocation2 + $0x28] sm:$0xff] 0.0
    %25 = vst [vmem:[#allocation2 + $0x30] sm:$0xff] 0.0
    %26 = vst [vmem:[#allocation2 + $0x38] sm:$0xff] 0.0
    %27 = vst [vmem:[#allocation2 + $0x40] sm:$0xff] 0.0
    %28 = vst [vmem:[#allocation2 + $0x48] sm:$0xff] 0.0
    %29 = vst [vmem:[#allocation2 + $0x50] sm:$0xff] 0.0
    %30 = vst [vmem:[#allocation2 + $0x58] sm:$0xff] 0.0
    %31 = vst [vmem:[#allocation2 + $0x60] sm:$0xff] 0.0
    %32 = vst [vmem:[#allocation2 + $0x68] sm:$0xff] 0.0
    %33 = vst [vmem:[#allocation2 + $0x70] sm:$0xff] 0.0
    %34 = vst [vmem:[#allocation2 + $0x78] sm:$0xff] 0.0
  $region17: #{dueling_dqn_forward.4} parent=0 // pred_fallthru
    _
  %v35 = vld [vmem:[#allocation2] sm:$0xff]
  %v36 = vld [vmem:[#allocation2 + $0x8] sm:$0xff]
  %v37 = vld [vmem:[#allocation2 + $0x10] sm:$0xff]
  %v38 = vld [vmem:[#allocation2 + $0x18] sm:$0xff]
  %v39 = vld [vmem:[#allocation2 + $0x20] sm:$0xff]
  %v40 = vld [vmem:[#allocation2 + $0x28] sm:$0xff]
  %v41 = vld [vmem:[#allocation2 + $0x30] sm:$0xff]
  %v42 = vld [vmem:[#allocation2 + $0x38] sm:$0xff]
  %v43 = vld [vmem:[#allocation2 + $0x40] sm:$0xff]
  %v44 = vld [vmem:[#allocation2 + $0x48] sm:$0xff]
  %v45 = vld [vmem:[#allocation2 + $0x50] sm:$0xff]
  %v46 = vld [vmem:[#allocation2 + $0x58] sm:$0xff]
  %v47 = vld [vmem:[#allocation2 + $0x60] sm:$0xff]
  %v48 = vld [vmem:[#allocation2 + $0x68] sm:$0xff]
  %v49 = vld [vmem:[#allocation2 + $0x70] sm:$0xff]
  %v50 = vld [vmem:[#allocation2 + $0x78] sm:$0xff]
  %v51 = vld [vmem:[%s0] sm:$0xff]
  %v52 = vld [vmem:[%s0 + $0x8] sm:$0xff]
  %v53 = vld [vmem:[%s0 + $0x10] sm:$0xff]
  %v54 = vld [vmem:[%s0 + $0x18] sm:$0xff]
  %v55 = vld [vmem:[%s0 + $0x20] sm:$0xff]
  %v56 = vld [vmem:[%s0 + $0x28] sm:$0xff]
  %v57 = vld [vmem:[%s0 + $0x30] sm:$0xff]
  %v58 = vld [vmem:[%s0 + $0x38] sm:$0xff]
  %v59 = vld [vmem:[%s0 + $0x40] sm:$0xff]
  %v60 = vld [vmem:[%s0 + $0x48] sm:$0xff]
  %v61 = vld [vmem:[%s0 + $0x50] sm:$0xff]
  %v62 = vld [vmem:[%s0 + $0x58] sm:$0xff]
  %v63 = vld [vmem:[%s0 + $0x60] sm:$0xff]
  %v64 = vld [vmem:[%s0 + $0x68] sm:$0xff]
  %v65 = vld [vmem:[%s0 + $0x70] sm:$0xff]
  %v66 = vld [vmem:[%s0 + $0x78] sm:$0xff]
  %v67 = vld [vmem:[%s1] sm:$0xf]
  %v68 = vld [vmem:[%s1 + $0x4] sm:$0xf]
  %v69 = vld [vmem:[%s1 + $0x8] sm:$0xf]
  %v70 = vld [vmem:[%s1 + $0xc] sm:$0xf]
  %v71 = vld [vmem:[%s1 + $0x10] sm:$0xf]
  %v72 = vld [vmem:[%s1 + $0x14] sm:$0xf]
  %v73 = vld [vmem:[%s1 + $0x18] sm:$0xf]
  %v74 = vld [vmem:[%s1 + $0x1c] sm:$0xf]
  %v75 = vld [vmem:[%s1 + $0x20] sm:$0xf]
  %v76 = vld [vmem:[%s1 + $0x24] sm:$0xf]
  %v77 = vld [vmem:[%s1 + $0x28] sm:$0xf]
  %v78 = vld [vmem:[%s1 + $0x2c] sm:$0xf]
  %v79 = vld [vmem:[%s1 + $0x30] sm:$0xf]
  %v80 = vld [vmem:[%s1 + $0x34] sm:$0xf]
  %v81 = vld [vmem:[%s1 + $0x38] sm:$0xf]
  %v82 = vld [vmem:[%s1 + $0x3c] sm:$0xf]
  %v83 = vld [vmem:[%s1 + $0x40] sm:$0xf]
  %v84 = vld [vmem:[%s1 + $0x44] sm:$0xf]
  %v85 = vld [vmem:[%s1 + $0x48] sm:$0xf]
  %v86 = vld [vmem:[%s1 + $0x4c] sm:$0xf]
  %v87 = vld [vmem:[%s1 + $0x50] sm:$0xf]
  %v88 = vld [vmem:[%s1 + $0x54] sm:$0xf]
  %v89 = vld [vmem:[%s1 + $0x58] sm:$0xf]
  %v90 = vld [vmem:[%s1 + $0x5c] sm:$0xf]
  %v91 = vld [vmem:[%s1 + $0x60] sm:$0xf]
  %v92 = vld [vmem:[%s1 + $0x64] sm:$0xf]
  %v93 = vld [vmem:[%s1 + $0x68] sm:$0xf]
  %v94 = vld [vmem:[%s1 + $0x6c] sm:$0xf]
  %v95 = vld [vmem:[%s1 + $0x70] sm:$0xf]
  %v96 = vld [vmem:[%s1 + $0x74] sm:$0xf]
  %v97 = vld [vmem:[%s1 + $0x78] sm:$0xf]
  %v98 = vld [vmem:[%s1 + $0x7c] sm:$0xf]
  %v115 = vunpack.c.l.b16 %v51
  %v116 = vunpack.c.h.b16 %v51
  %v117 = vunpack.c.l.b16 %v52
  %v118 = vunpack.c.h.b16 %v52
  %v119 = vunpack.c.l.b16 %v53
  %v120 = vunpack.c.h.b16 %v53
  %v121 = vunpack.c.l.b16 %v54
  %v122 = vunpack.c.h.b16 %v54
  %v123 = vunpack.c.l.b16 %v55
  %v124 = vunpack.c.h.b16 %v55
  %v125 = vunpack.c.l.b16 %v56
  %v126 = vunpack.c.h.b16 %v56
  %v127 = vunpack.c.l.b16 %v57
  %v128 = vunpack.c.h.b16 %v57
  %v129 = vunpack.c.l.b16 %v58
  %v130 = vunpack.c.h.b16 %v58
  %v131 = vunpack.c.l.b16 %v59
  %v132 = vunpack.c.h.b16 %v59
  %v133 = vunpack.c.l.b16 %v60
  %v134 = vunpack.c.h.b16 %v60
  %v135 = vunpack.c.l.b16 %v61
  %v136 = vunpack.c.h.b16 %v61
  %v137 = vunpack.c.l.b16 %v62
  %v138 = vunpack.c.h.b16 %v62
  %v139 = vunpack.c.l.b16 %v63
  %v140 = vunpack.c.h.b16 %v63
  %v141 = vunpack.c.l.b16 %v64
  %v142 = vunpack.c.h.b16 %v64
  %v143 = vunpack.c.l.b16 %v65
  %v144 = vunpack.c.h.b16 %v65
  %v145 = vunpack.c.l.b16 %v66
  %v146 = vunpack.c.h.b16 %v66
  %v147 = vpack.c.b16 %v117, %v115
  %v148 = vpack.c.b16 %v118, %v116
  %v149 = vpack.c.b16 %v121, %v119
  %v150 = vpack.c.b16 %v122, %v120
  %v151 = vpack.c.b16 %v125, %v123
  %v152 = vpack.c.b16 %v126, %v124
  %v153 = vpack.c.b16 %v129, %v127
  %v154 = vpack.c.b16 %v130, %v128
  %v155 = vpack.c.b16 %v133, %v131
  %v156 = vpack.c.b16 %v134, %v132
  %v157 = vpack.c.b16 %v137, %v135
  %v158 = vpack.c.b16 %v138, %v136
  %v159 = vpack.c.b16 %v141, %v139
  %v160 = vpack.c.b16 %v142, %v140
  %v161 = vpack.c.b16 %v145, %v143
  %v162 = vpack.c.b16 %v146, %v144
  %v211 = vunpack.c.l.b16 %v67
  %v212 = vunpack.c.l.b16 %v68
  %v213 = vunpack.c.l.b16 %v69
  %v214 = vunpack.c.l.b16 %v70
  %v215 = vunpack.c.l.b16 %v71
  %v216 = vunpack.c.l.b16 %v72
  %v217 = vunpack.c.l.b16 %v73
  %v218 = vunpack.c.l.b16 %v74
  %v219 = vunpack.c.l.b16 %v75
  %v220 = vunpack.c.l.b16 %v76
  %v221 = vunpack.c.l.b16 %v77
  %v222 = vunpack.c.l.b16 %v78
  %v223 = vunpack.c.l.b16 %v79
  %v224 = vunpack.c.l.b16 %v80
  %v225 = vunpack.c.l.b16 %v81
  %v226 = vunpack.c.l.b16 %v82
  %v227 = vunpack.c.l.b16 %v83
  %v228 = vunpack.c.l.b16 %v84
  %v229 = vunpack.c.l.b16 %v85
  %v230 = vunpack.c.l.b16 %v86
  %v231 = vunpack.c.l.b16 %v87
  %v232 = vunpack.c.l.b16 %v88
  %v233 = vunpack.c.l.b16 %v89
  %v234 = vunpack.c.l.b16 %v90
  %v235 = vunpack.c.l.b16 %v91
  %v236 = vunpack.c.l.b16 %v92
  %v237 = vunpack.c.l.b16 %v93
  %v238 = vunpack.c.l.b16 %v94
  %v239 = vunpack.c.l.b16 %v95
  %v240 = vunpack.c.l.b16 %v96
  %v241 = vunpack.c.l.b16 %v97
  %v242 = vunpack.c.l.b16 %v98
  %v243 = vpack.c.b16 %v212, %v211
  %v244 = vpack.c.b16 %v214, %v213
  %v245 = vpack.c.b16 %v216, %v215
  %v246 = vpack.c.b16 %v218, %v217
  %v247 = vpack.c.b16 %v220, %v219
  %v248 = vpack.c.b16 %v222, %v221
  %v249 = vpack.c.b16 %v224, %v223
  %v250 = vpack.c.b16 %v226, %v225
  %v251 = vpack.c.b16 %v228, %v227
  %v252 = vpack.c.b16 %v230, %v229
  %v253 = vpack.c.b16 %v232, %v231
  %v254 = vpack.c.b16 %v234, %v233
  %v255 = vpack.c.b16 %v236, %v235
  %v256 = vpack.c.b16 %v238, %v237
  %v257 = vpack.c.b16 %v240, %v239
  %v258 = vpack.c.b16 %v242, %v241
  %275 = vmatprep.subr.bf16.mxu0 0
  %276 = vmatpush1.bf16.msra.mxu0 %v250
  %277 = vmatprep.subr.bf16.mxu0 0
  %278 = vmatpush1.bf16.msra.mxu0 %v249
  %279 = vmatprep.subr.bf16.mxu0 0
  %280 = vmatpush1.bf16.msra.mxu0 %v248
  %281 = vmatprep.subr.bf16.mxu0 0
  %282 = vmatpush1.bf16.msra.mxu0 %v247
  %283 = vmatprep.subr.bf16.mxu0 0
  %284 = vmatpush1.bf16.msra.mxu0 %v246
  %285 = vmatprep.subr.bf16.mxu0 0
  %286 = vmatpush1.bf16.msra.mxu0 %v245
  %287 = vmatprep.subr.bf16.mxu0 0
  %288 = vmatpush1.bf16.msra.mxu0 %v244
  %289 = vmatprep.subr.bf16.mxu0 0
  %290 = vmatpush1.bf16.msra.mxu0 %v243
  %291 = vmatprep.subr.bf16.mxu0 0
  %292 = vmatpush2.bf16.msra.mxu0 %v258
  %293 = vmatprep.subr.bf16.mxu0 0
  %294 = vmatpush2.bf16.msra.mxu0 %v257
  %295 = vmatprep.subr.bf16.mxu0 0
  %296 = vmatpush2.bf16.msra.mxu0 %v256
  %297 = vmatprep.subr.bf16.mxu0 0
  %298 = vmatpush2.bf16.msra.mxu0 %v255
  %299 = vmatprep.subr.bf16.mxu0 0
  %300 = vmatpush2.bf16.msra.mxu0 %v254
  %301 = vmatprep.subr.bf16.mxu0 0
  %302 = vmatpush2.bf16.msra.mxu0 %v253
  %303 = vmatprep.subr.bf16.mxu0 0
  %304 = vmatpush2.bf16.msra.mxu0 %v252
  %305 = vmatprep.subr.bf16.mxu0 0
  %306 = vmatpush2.bf16.msra.mxu0 %v251
  %307 = vmatprep.mubr.bf16.mxu0 %v148
  %308 = vmatmul.mubr.bf16.gmra.mxu0 %v147
  %v309 = vpop.f32.mrf.mxu0
  %v310 = vadd.f32 0.0, %v309
  %v311 = vpop.f32.mrf.mxu0
  %v312 = vpop.f32.mrf.mxu0
  %v313 = vadd.f32 0.0, %v312
  %v314 = vpop.f32.mrf.mxu0
  %315 = vmatprep.mubr.bf16.mxu0 %v150
  %316 = vmatmul.mubr.bf16.gmra.mxu0 %v149
  %v317 = vpop.f32.mrf.mxu0
  %v318 = vadd.f32 0.0, %v317
  %v319 = vpop.f32.mrf.mxu0
  %v320 = vpop.f32.mrf.mxu0
  %v321 = vadd.f32 0.0, %v320
  %v322 = vpop.f32.mrf.mxu0
  %323 = vmatprep.mubr.bf16.mxu0 %v152
  %324 = vmatmul.mubr.bf16.gmra.mxu0 %v151
  %v325 = vpop.f32.mrf.mxu0
  %v326 = vadd.f32 0.0, %v325
  %v327 = vpop.f32.mrf.mxu0
  %v328 = vpop.f32.mrf.mxu0
  %v329 = vadd.f32 0.0, %v328
  %v330 = vpop.f32.mrf.mxu0
  %331 = vmatprep.mubr.bf16.mxu0 %v154
  %332 = vmatmul.mubr.bf16.gmra.mxu0 %v153
  %v333 = vpop.f32.mrf.mxu0
  %v334 = vadd.f32 0.0, %v333
  %v335 = vpop.f32.mrf.mxu0
  %v336 = vpop.f32.mrf.mxu0
  %v337 = vadd.f32 0.0, %v336
  %v338 = vpop.f32.mrf.mxu0
  %339 = vmatprep.mubr.bf16.mxu0 %v156
  %340 = vmatmul.mubr.bf16.gmra.mxu0 %v155
  %v341 = vpop.f32.mrf.mxu0
  %v342 = vadd.f32 0.0, %v341
  %v343 = vpop.f32.mrf.mxu0
  %v344 = vpop.f32.mrf.mxu0
  %v345 = vadd.f32 0.0, %v344
  %v346 = vpop.f32.mrf.mxu0
  %347 = vmatprep.mubr.bf16.mxu0 %v158
  %348 = vmatmul.mubr.bf16.gmra.mxu0 %v157
  %v349 = vpop.f32.mrf.mxu0
  %v350 = vadd.f32 0.0, %v349
  %v351 = vpop.f32.mrf.mxu0
  %v352 = vpop.f32.mrf.mxu0
  %v353 = vadd.f32 0.0, %v352
  %v354 = vpop.f32.mrf.mxu0
  %355 = vmatprep.mubr.bf16.mxu0 %v160
  %356 = vmatmul.mubr.bf16.gmra.mxu0 %v159
  %v357 = vpop.f32.mrf.mxu0
  %v358 = vadd.f32 0.0, %v357
  %v359 = vpop.f32.mrf.mxu0
  %v360 = vpop.f32.mrf.mxu0
  %v361 = vadd.f32 0.0, %v360
  %v362 = vpop.f32.mrf.mxu0
  %363 = vmatprep.mubr.bf16.mxu0 %v162
  %364 = vmatmul.mubr.bf16.gmra.mxu0 %v161
  %v365 = vpop.f32.mrf.mxu0
  %v366 = vadd.f32 0.0, %v365
  %v367 = vpop.f32.mrf.mxu0
  %v368 = vpop.f32.mrf.mxu0
  %v369 = vadd.f32 0.0, %v368
  %v370 = vpop.f32.mrf.mxu0
  %371 = vdwg.mxu0
  %v372 = vadd.f32 %v35, %v310
  %v373 = vadd.f32 %v36, %v313
  %v374 = vadd.f32 %v37, %v318
  %v375 = vadd.f32 %v38, %v321
  %v376 = vadd.f32 %v39, %v326
  %v377 = vadd.f32 %v40, %v329
  %v378 = vadd.f32 %v41, %v334
  %v379 = vadd.f32 %v42, %v337
  %v380 = vadd.f32 %v43, %v342
  %v381 = vadd.f32 %v44, %v345
  %v382 = vadd.f32 %v45, %v350
  %v383 = vadd.f32 %v46, %v353
  %v384 = vadd.f32 %v47, %v358
  %v385 = vadd.f32 %v48, %v361
  %v386 = vadd.f32 %v49, %v366
  %v387 = vadd.f32 %v50, %v369
  %388 = vst [vmem:[#allocation2] sm:$0xff] %v372
  %389 = vst [vmem:[#allocation2 + $0x8] sm:$0xff] %v373
  %390 = vst [vmem:[#allocation2 + $0x10] sm:$0xff] %v374
  %391 = vst [vmem:[#allocation2 + $0x18] sm:$0xff] %v375
  %392 = vst [vmem:[#allocation2 + $0x20] sm:$0xff] %v376
  %393 = vst [vmem:[#allocation2 + $0x28] sm:$0xff] %v377
  %394 = vst [vmem:[#allocation2 + $0x30] sm:$0xff] %v378
  %395 = vst [vmem:[#allocation2 + $0x38] sm:$0xff] %v379
  %396 = vst [vmem:[#allocation2 + $0x40] sm:$0xff] %v380
  %397 = vst [vmem:[#allocation2 + $0x48] sm:$0xff] %v381
  %398 = vst [vmem:[#allocation2 + $0x50] sm:$0xff] %v382
  %399 = vst [vmem:[#allocation2 + $0x58] sm:$0xff] %v383
  %400 = vst [vmem:[#allocation2 + $0x60] sm:$0xff] %v384
  %401 = vst [vmem:[#allocation2 + $0x68] sm:$0xff] %v385
  %402 = vst [vmem:[#allocation2 + $0x70] sm:$0xff] %v386
  %403 = vst [vmem:[#allocation2 + $0x78] sm:$0xff] %v387
  // Predicated region
  $region18: #{dueling_dqn_forward.4} parent=0 // pred_check
    %p404 = pneg %p15
  $region19: #{dueling_dqn_forward.4} parent=0 // pred_check_branch
    %406 = sbr.rel (%p404) target = $region21
  $region20: #{dueling_dqn_forward.4} parent=0 // pred_region
    %v407 = vld [vmem:[#allocation2] sm:$0xff]
    %v408 = vld [vmem:[#allocation2 + $0x8] sm:$0xff]
    %v409 = vld [vmem:[#allocation2 + $0x10] sm:$0xff]
    %v410 = vld [vmem:[#allocation2 + $0x18] sm:$0xff]
    %v411 = vld [vmem:[#allocation2 + $0x20] sm:$0xff]
    %v412 = vld [vmem:[#allocation2 + $0x28] sm:$0xff]
    %v413 = vld [vmem:[#allocation2 + $0x30] sm:$0xff]
    %v414 = vld [vmem:[#allocation2 + $0x38] sm:$0xff]
    %v415 = vld [vmem:[#allocation2 + $0x40] sm:$0xff]
    %v416 = vld [vmem:[#allocation2 + $0x48] sm:$0xff]
    %v417 = vld [vmem:[#allocation2 + $0x50] sm:$0xff]
    %v418 = vld [vmem:[#allocation2 + $0x58] sm:$0xff]
    %v419 = vld [vmem:[#allocation2 + $0x60] sm:$0xff]
    %v420 = vld [vmem:[#allocation2 + $0x68] sm:$0xff]
    %v421 = vld [vmem:[#allocation2 + $0x70] sm:$0xff]
    %v422 = vld [vmem:[#allocation2 + $0x78] sm:$0xff]
    %v423 = vld [vmem:[%s2] sm:$0x1]
    %v425 = vlaneseq
    %v426 = vshrl.u32 %v425, 7
    %v427 = vsub.s32 0, %v426
    %v428 = vrot.slane %v423, %v427
    %v430 = vadd.f32 %v407, %v428
    %v431 = vadd.f32 %v408, %v428
    %v432 = vadd.f32 %v409, %v428
    %v433 = vadd.f32 %v410, %v428
    %v434 = vadd.f32 %v411, %v428
    %v435 = vadd.f32 %v412, %v428
    %v436 = vadd.f32 %v413, %v428
    %v437 = vadd.f32 %v414, %v428
    %v438 = vadd.f32 %v415, %v428
    %v439 = vadd.f32 %v416, %v428
    %v440 = vadd.f32 %v417, %v428
    %v441 = vadd.f32 %v418, %v428
    %v442 = vadd.f32 %v419, %v428
    %v443 = vadd.f32 %v420, %v428
    %v444 = vadd.f32 %v421, %v428
    %v445 = vadd.f32 %v422, %v428
    %v446 = vmax.f32 %v430, 0.0
    %v447 = vmax.f32 %v431, 0.0
    %v448 = vmax.f32 %v432, 0.0
    %v449 = vmax.f32 %v433, 0.0
    %v450 = vmax.f32 %v434, 0.0
    %v451 = vmax.f32 %v435, 0.0
    %v452 = vmax.f32 %v436, 0.0
    %v453 = vmax.f32 %v437, 0.0
    %v454 = vmax.f32 %v438, 0.0
    %v455 = vmax.f32 %v439, 0.0
    %v456 = vmax.f32 %v440, 0.0
    %v457 = vmax.f32 %v441, 0.0
    %v458 = vmax.f32 %v442, 0.0
    %v459 = vmax.f32 %v443, 0.0
    %v460 = vmax.f32 %v444, 0.0
    %v461 = vmax.f32 %v445, 0.0
    %v462 = vpack.c.bf16 %v447, %v446
    %v463 = vpack.c.bf16 %v449, %v448
    %v464 = vpack.c.bf16 %v451, %v450
    %v465 = vpack.c.bf16 %v453, %v452
    %v466 = vpack.c.bf16 %v455, %v454
    %v467 = vpack.c.bf16 %v457, %v456
    %v468 = vpack.c.bf16 %v459, %v458
    %v469 = vpack.c.bf16 %v461, %v460
    %v478 = vunpack.c.l.b16 %v462
    %v479 = vunpack.c.h.b16 %v462
    %v480 = vunpack.c.l.b16 %v463
    %v481 = vunpack.c.h.b16 %v463
    %v482 = vunpack.c.l.b16 %v464
    %v483 = vunpack.c.h.b16 %v464
    %v484 = vunpack.c.l.b16 %v465
    %v485 = vunpack.c.h.b16 %v465
    %v486 = vunpack.c.l.b16 %v466
    %v487 = vunpack.c.h.b16 %v466
    %v488 = vunpack.c.l.b16 %v467
    %v489 = vunpack.c.h.b16 %v467
    %v490 = vunpack.c.l.b16 %v468
    %v491 = vunpack.c.h.b16 %v468
    %v492 = vunpack.c.l.b16 %v469
    %v493 = vunpack.c.h.b16 %v469
    %v494 = vpack.c.b16 %v478, %v478
    %v495 = vpack.c.b16 %v479, %v479
    %v496 = vpack.c.b16 %v480, %v480
    %v497 = vpack.c.b16 %v481, %v481
    %v498 = vpack.c.b16 %v482, %v482
    %v499 = vpack.c.b16 %v483, %v483
    %v500 = vpack.c.b16 %v484, %v484
    %v501 = vpack.c.b16 %v485, %v485
    %v502 = vpack.c.b16 %v486, %v486
    %v503 = vpack.c.b16 %v487, %v487
    %v504 = vpack.c.b16 %v488, %v488
    %v505 = vpack.c.b16 %v489, %v489
    %v506 = vpack.c.b16 %v490, %v490
    %v507 = vpack.c.b16 %v491, %v491
    %v508 = vpack.c.b16 %v492, %v492
    %v509 = vpack.c.b16 %v493, %v493
    %526 = vst [vmem:[%s3] sm:$0xf] %v494
    %527 = vst [vmem:[%s3 + $0x4] sm:$0xf] %v495
    %528 = vst [vmem:[%s3 + $0x8] sm:$0xf] %v496
    %529 = vst [vmem:[%s3 + $0xc] sm:$0xf] %v497
    %530 = vst [vmem:[%s3 + $0x10] sm:$0xf] %v498
    %531 = vst [vmem:[%s3 + $0x14] sm:$0xf] %v499
    %532 = vst [vmem:[%s3 + $0x18] sm:$0xf] %v500
    %533 = vst [vmem:[%s3 + $0x1c] sm:$0xf] %v501
    %534 = vst [vmem:[%s3 + $0x20] sm:$0xf] %v502
    %535 = vst [vmem:[%s3 + $0x24] sm:$0xf] %v503
    %536 = vst [vmem:[%s3 + $0x28] sm:$0xf] %v504
    %537 = vst [vmem:[%s3 + $0x2c] sm:$0xf] %v505
    %538 = vst [vmem:[%s3 + $0x30] sm:$0xf] %v506
    %539 = vst [vmem:[%s3 + $0x34] sm:$0xf] %v507
    %540 = vst [vmem:[%s3 + $0x38] sm:$0xf] %v508
    %541 = vst [vmem:[%s3 + $0x3c] sm:$0xf] %v509
  $region21: #{dueling_dqn_forward.4} parent=0 // pred_fallthru
    _
  // Predicated region
  $region22: #{dueling_dqn_forward.4} parent=0 // pred_check
    _
  $region23: #{dueling_dqn_forward.4} parent=0 // pred_check_branch
    %543 = sbr.rel (0) target = $region25
  $region24: #{dueling_dqn_forward.4} parent=0 // pred_region
    _
  $region25: #{dueling_dqn_forward.4} parent=0 // pred_fallthru
    _
  // Predicated region
  $region26: #{dueling_dqn_forward.4} parent=0 // pred_check
    _
  $region27: #{dueling_dqn_forward.4} parent=0 // pred_check_branch
    %545 = sbr.rel (0) target = $region29
  $region28: #{dueling_dqn_forward.4} parent=0 // pred_region
    _
  $region29: #{dueling_dqn_forward.4} parent=0 // pred_fallthru
    _

// kernel: dueling_dqn_forward.5
$region0: #{dueling_dqn_forward.5}
  #allocation0 [shape = 'u32[]', space=smem, size = 0x4, offset = 0x4, fixed_abs, tag = 'smem constant byte address 0x4 - core index']
  #allocation1 [shape = 'u32[144,128]{1,0:T(1,128)}', space=vmem, size = 0x12000, scoped, tag = 'internal scratch']
  #allocation2 [shape = 'f32[32,128]{1,0:T(8,128)}', space=vmem, size = 0x4000, scoped, tag = 'scratch operand']
  %s0 = inlined_call_operand.vmem [shape: bf16[32,2048], index: 0, kind: input, shape index: {}]
  %s1 = inlined_call_operand.vmem [shape: bf16[2048,128], index: 1, kind: input, shape index: {}]
  %s2 = inlined_call_operand.vmem [shape: f32[1,128], index: 2, kind: input, shape index: {}]
  %s3 = inlined_call_operand.vmem [shape: bf16[32,128], index: 3, kind: output, shape index: {}]
  %s4 = sld [smem:[#allocation0]]
  $region76: #{dueling_dqn_forward.5} parent=0
    _
  %s6 = ssub.s32 1, %s4
  %s7 = scalar_select 0, %s6, %s4
  $region1: #{dueling_dqn_forward.5} parent=0
    #allocation3 [shape = 'u8[65536]{0}', space=vmem, size = 0x10000, scoped, tag = 'input window, operand 0']
    loop: start=0, step=1, limit=6
    $region2: #{dueling_dqn_forward.5} parent=1 // loop_pre_header
      _
    $region3: #{dueling_dqn_forward.5} parent=1 // loop_header
      %s9 = sphi 0, %s13
      %p10 = scmp.ge.s32.totalorder %s9, 6
      %s16 = sphi 0, %s28
      %s17 = sphi 0, %s24
      %s18 = sphi 0, %s16
      %s19 = sphi 0, %s17
      %s20 = sphi 0, %s18
      %s21 = sphi 0, %s19
      %s33 = sphi 0, %s35
      %s36 = sphi 0, %s33
      %s37 = sphi 0, %s36
      %s53 = sphi 0, %s37
      %s59 = sphi 0, %s61
      %s62 = sphi 0, %s59
      %s63 = sphi 0, %s62
      %s79 = sphi 0, %s63
      %s83 = sphi 0, %s83
      %s85 = sphi 0, %s83
      %s86 = sphi 0, %s85
      %s100 = sphi 0, %s86
      %s106 = sphi 0, %s108
      %s109 = sphi 0, %s106
      %s110 = sphi 0, %s109
      %s126 = sphi 0, %s110
    $region4: #{dueling_dqn_forward.5} parent=1 // loop_header_branch
      %12 = sbr.rel (%p10) target = $region8
    $region5: #{dueling_dqn_forward.5} parent=1 // loop_body
      %s14 = ssub.s32 %s9, 1
      %s15 = ssub.s32 %s9, 2
      %s22 = sadd.s32 1, %s17
      %p23 = scmp.ge.s32.totalorder %s22, 4
      %s24 = scalar_select %p23, 0, %s22
      %s25 = sadd.s32 1, %s16
      %s26 = scalar_select %p23, %s25, %s16
      %p27 = scmp.ge.s32.totalorder %s26, 1
      %s28 = scalar_select %p27, 0, %s26
      %s29 = ssub.s32 %s16, %s28
      %s30 = ssub.s32 %s17, %s24
      %s31 = sor.u32 %s29, %s30
      %p32 = scmp.eq.s32.totalorder %s31, 0
      %s34 = sadd.s32 %s33, 1
      %s35 = scalar_select %p32, %s33, %s34
      %p38 = pneg %p32
      %p39 = scmp.eq.s32.totalorder %s9, 3
      %p40 = por %p38, %p39
      %p41 = scmp.ne.s32.totalorder %s33, %s36
      %p42 = scmp.eq.s32.totalorder %s9, 0
      %p43 = por %p41, %p42
      %p44 = scmp.ne.s32.totalorder %s33, %s36
      %p45 = scmp.eq.s32.totalorder %s14, 3
      %p46 = por %p44, %p45
      %p47 = scmp.ne.s32.totalorder %s36, %s37
      %p48 = scmp.eq.s32.totalorder %s14, 0
      %p49 = por %p47, %p48
      %p50 = scmp.ne.s32.totalorder %s36, %s37
      %p51 = scmp.eq.s32.totalorder %s15, 3
      %p52 = por %p50, %p51
      %p54 = scmp.ne.s32.totalorder %s37, %s53
      %p55 = scmp.eq.s32.totalorder %s15, 0
      %p56 = por %p54, %p55
      %s57 = ssub.s32 %s17, %s24
      %p58 = scmp.eq.s32.totalorder %s57, 0
      %s60 = sadd.s32 %s59, 1
      %s61 = scalar_select %p58, %s59, %s60
      %p64 = pneg %p58
      %p65 = scmp.eq.s32.totalorder %s9, 3
      %p66 = por %p64, %p65
      %p67 = scmp.ne.s32.totalorder %s59, %s62
      %p68 = scmp.eq.s32.totalorder %s9, 0
      %p69 = por %p67, %p68
      %p70 = scmp.ne.s32.totalorder %s59, %s62
      %p71 = scmp.eq.s32.totalorder %s14, 3
      %p72 = por %p70, %p71
      %p73 = scmp.ne.s32.totalorder %s62, %s63
      %p74 = scmp.eq.s32.totalorder %s14, 0
      %p75 = por %p73, %p74
      %p76 = scmp.ne.s32.totalorder %s62, %s63
      %p77 = scmp.eq.s32.totalorder %s15, 3
      %p78 = por %p76, %p77
      %p80 = scmp.ne.s32.totalorder %s63, %s79
      %p81 = scmp.eq.s32.totalorder %s15, 0
      %p82 = por %p80, %p81
      %s84 = sadd.s32 %s83, 1
      %p87 = scmp.eq.s32.totalorder %s9, 3
      %p88 = scmp.ne.s32.totalorder %s83, %s85
      %p89 = scmp.eq.s32.totalorder %s9, 0
      %p90 = por %p88, %p89
      %p91 = scmp.ne.s32.totalorder %s83, %s85
      %p92 = scmp.eq.s32.totalorder %s14, 3
      %p93 = por %p91, %p92
      %p94 = scmp.ne.s32.totalorder %s85, %s86
      %p95 = scmp.eq.s32.totalorder %s14, 0
      %p96 = por %p94, %p95
      %p97 = scmp.ne.s32.totalorder %s85, %s86
      %p98 = scmp.eq.s32.totalorder %s15, 3
      %p99 = por %p97, %p98
      %p101 = scmp.ne.s32.totalorder %s86, %s100
      %p102 = scmp.eq.s32.totalorder %s15, 0
      %p103 = por %p101, %p102
      %s104 = ssub.s32 %s16, %s28
      %p105 = scmp.eq.s32.totalorder %s104, 0
      %s107 = sadd.s32 %s106, 1
      %s108 = scalar_select %p105, %s106, %s107
      %p111 = pneg %p105
      %p112 = scmp.eq.s32.totalorder %s9, 3
      %p113 = por %p111, %p112
      %p114 = scmp.ne.s32.totalorder %s106, %s109
      %p115 = scmp.eq.s32.totalorder %s9, 0
      %p116 = por %p114, %p115
      %p117 = scmp.ne.s32.totalorder %s106, %s109
      %p118 = scmp.eq.s32.totalorder %s14, 3
      %p119 = por %p117, %p118
      %p120 = scmp.ne.s32.totalorder %s109, %s110
      %p121 = scmp.eq.s32.totalorder %s14, 0
      %p122 = por %p120, %p121
      %p123 = scmp.ne.s32.totalorder %s109, %s110
      %p124 = scmp.eq.s32.totalorder %s15, 3
      %p125 = por %p123, %p124
      %p127 = scmp.ne.s32.totalorder %s110, %s126
      %p128 = scmp.eq.s32.totalorder %s15, 0
      %p129 = por %p127, %p128
      %p130 = scmp.le.s32.totalorder 1, %s9
      %p131 = scmp.lt.s32.totalorder %s9, 5
      %p132 = pnand %p130, %p131
      %p133 = pneg %p132
      // Predicated region
      $region9: #{dueling_dqn_forward.5} parent=5 // pred_check
        _
      $region10: #{dueling_dqn_forward.5} parent=5 // pred_check_branch
        %135 = sbr.rel (%p132) target = $region12
      $region11: #{dueling_dqn_forward.5} parent=5 // pred_region
        %s136 = ssub.s32 %s9, 1
        // Predicated region
        $region13: #{dueling_dqn_forward.5} parent=11 // pred_check
          %p137 = pneg %p96
        $region14: #{dueling_dqn_forward.5} parent=11 // pred_check_branch
          %139 = sbr.rel (%p137) target = $region16
        $region15: #{dueling_dqn_forward.5} parent=11 // pred_region
          _
        $region16: #{dueling_dqn_forward.5} parent=11 // pred_fallthru
          _
      $region12: #{dueling_dqn_forward.5} parent=5 // pred_fallthru
        _
      %p140 = scmp.lt.s32.totalorder %s9, 4
      // Predicated region
      $region17: #{dueling_dqn_forward.5} parent=5 // pred_check
        %p141 = pneg %p140
      $region18: #{dueling_dqn_forward.5} parent=5 // pred_check_branch
        %143 = sbr.rel (%p141) target = $region20
      $region19: #{dueling_dqn_forward.5} parent=5 // pred_region
        // Predicated region
        $region21: #{dueling_dqn_forward.5} parent=19 // pred_check
          %p144 = pneg %p43
        $region22: #{dueling_dqn_forward.5} parent=19 // pred_check_branch
          %146 = sbr.rel (%p144) target = $region24
        $region23: #{dueling_dqn_forward.5} parent=19 // pred_region
          %s147 = sand.u32 %s33, 1
          %s148 = sand.u32 %s33, 1
          %s149 = smul.addr %s148, 64
          %s150 = scalar_lea.vmem [#allocation3], %s149
          %s151 = smul.u32 4, %s16
          %s152 = smul.u32 4, %s17
          %s153 = smul.addr %s151, 16
          %s154 = sadd.s32 %s152, %s153
          %s155 = smul.addr %s154, 4
          %s156 = scalar_lea.vmem %s0, %s155
          // Predicated region
          $region25: #{dueling_dqn_forward.5} parent=23 // pred_check
            _
          $region26: #{dueling_dqn_forward.5} parent=23 // pred_check_branch
            %158 = sbr.rel (0) target = $region28
          $region27: #{dueling_dqn_forward.5} parent=23 // pred_region
            // Predicated region
            $region29: #{dueling_dqn_forward.5} parent=27 // pred_check
              _
            $region30: #{dueling_dqn_forward.5} parent=27 // pred_check_branch
              %160 = sbr.rel (0) target = $region32
            $region31: #{dueling_dqn_forward.5} parent=27 // pred_region
              loop: start=0, step=1, limit=1
              $region33: #{dueling_dqn_forward.5} parent=31 // loop_pre_header
                _
              $region34: #{dueling_dqn_forward.5} parent=31 // loop_header
                %s162 = sphi 0, %s166
                %p163 = scmp.ge.s32.totalorder %s162, 1
                %s167 = sphi %s156, %s156
                %s168 = sphi %s150, %s150
              $region35: #{dueling_dqn_forward.5} parent=31 // loop_header_branch
                %165 = sbr.rel (%p163) target = $region39
              $region36: #{dueling_dqn_forward.5} parent=31 // loop_body
                %v169 = vld [vmem:[%s167] sm:$0xff]
                %170 = vst [vmem:[%s168] sm:$0xff] %v169
                %v171 = vld [vmem:[%s167 + $0x8] sm:$0xff]
                %172 = vst [vmem:[%s168 + $0x8] sm:$0xff] %v171
                %v173 = vld [vmem:[%s167 + $0x40] sm:$0xff]
                %174 = vst [vmem:[%s168 + $0x10] sm:$0xff] %v173
                %v175 = vld [vmem:[%s167 + $0x48] sm:$0xff]
                %176 = vst [vmem:[%s168 + $0x18] sm:$0xff] %v175
                %v177 = vld [vmem:[%s167 + $0x80] sm:$0xff]
                %178 = vst [vmem:[%s168 + $0x20] sm:$0xff] %v177
                %v179 = vld [vmem:[%s167 + $0x88] sm:$0xff]
                %180 = vst [vmem:[%s168 + $0x28] sm:$0xff] %v179
                %v181 = vld [vmem:[%s167 + $0xc0] sm:$0xff]
                %182 = vst [vmem:[%s168 + $0x30] sm:$0xff] %v181
                %v183 = vld [vmem:[%s167 + $0xc8] sm:$0xff]
                %184 = vst [vmem:[%s168 + $0x38] sm:$0xff] %v183
              $region37: #{dueling_dqn_forward.5} parent=31 // loop_footer
                %s166 = sadd.s32 1, %s162
              $region38: #{dueling_dqn_forward.5} parent=31 // loop_footer_branch
                %161 = sbr.rel target = $region34
              $region39: #{dueling_dqn_forward.5} parent=31 // loop_exit
                _
            $region32: #{dueling_dqn_forward.5} parent=27 // pred_fallthru
              _
            // Predicated region
            $region40: #{dueling_dqn_forward.5} parent=27 // pred_check
              _
            $region41: #{dueling_dqn_forward.5} parent=27 // pred_check_branch
              %186 = sbr.rel target = $region43
            $region42: #{dueling_dqn_forward.5} parent=27 // pred_region
              _
            $region43: #{dueling_dqn_forward.5} parent=27 // pred_fallthru
              _
          $region28: #{dueling_dqn_forward.5} parent=23 // pred_fallthru
            _
          %187 = vnop
        $region24: #{dueling_dqn_forward.5} parent=19 // pred_fallthru
          _
        // Predicated region
        $region44: #{dueling_dqn_forward.5} parent=19 // pred_check
          %p188 = pneg %p69
        $region45: #{dueling_dqn_forward.5} parent=19 // pred_check_branch
          %190 = sbr.rel (%p188) target = $region47
        $region46: #{dueling_dqn_forward.5} parent=19 // pred_region
          %s191 = smul.u32 64, %s17
          %p192 = scmp.lt.s32.totalorder %s191, 255
          %s193 = scalar_select %p192, %s191, 255
          %s194 = smul.addr %s193, 4
          %s195 = scalar_lea.vmem %s1, %s194
          %s196 = smul.u32 64, %s17
        $region47: #{dueling_dqn_forward.5} parent=19 // pred_fallthru
          _
      $region20: #{dueling_dqn_forward.5} parent=5 // pred_fallthru
        _
      %p197 = scmp.le.s32.totalorder 1, %s9
      %p198 = scmp.lt.s32.totalorder %s9, 5
      %p199 = pnand %p197, %p198
      %p200 = pneg %p199
      // Predicated region
      $region48: #{dueling_dqn_forward.5} parent=5 // pred_check
        _
      $region49: #{dueling_dqn_forward.5} parent=5 // pred_check_branch
        %202 = sbr.rel (%p199) target = $region51
      $region50: #{dueling_dqn_forward.5} parent=5 // pred_region
        %s203 = ssub.s32 %s9, 1
        %s204 = sand.u32 %s36, 1
        %s205 = sand.u32 %s36, 1
        %s206 = smul.addr %s205, 64
        %s207 = scalar_lea.vmem [#allocation3], %s206
        // Predicated region
        $region52: #{dueling_dqn_forward.5} parent=50 // pred_check
          %p208 = pneg %p49
        $region53: #{dueling_dqn_forward.5} parent=50 // pred_check_branch
          %210 = sbr.rel (%p208) target = $region55
        $region54: #{dueling_dqn_forward.5} parent=50 // pred_region
          _
        $region55: #{dueling_dqn_forward.5} parent=50 // pred_fallthru
          _
        %s211 = sand.u32 %s36, 1
        %s212 = sand.u32 %s36, 1
        %s213 = smul.addr %s212, 64
        %s214 = scalar_lea.vmem [#allocation3], %s213
        %p215 = pneg %p49
        %p216 = pneg %p46
        %s217 = smul.u32 64, %s19
        %p218 = scmp.lt.s32.totalorder %s217, 255
        %s219 = scalar_select %p218, %s217, 255
        %s220 = smul.addr %s219, 4
        %s221 = scalar_lea.vmem %s1, %s220
        %p222 = pneg %p75
        %p223 = pneg %p72
        %p224 = pneg %p96
        %p225 = pneg %p93
        %p226 = pneg %p122
        %p227 = pneg %p119
        %s228 = smul.u32 4, %s18
        %p229 = scmp.lt.s32.totalorder %s228, 3
        %s230 = scalar_select %p229, %s228, 3
        %s231 = smul.addr %s230, 4
        %s232 = scalar_lea.vmem %s3, %s231
        %s233 = smul.u32 4, %s18
        %s234 = smul.u32 4, %s19
        %s235 = smul.u32 64, %s19
        %p236 = scmp.lt.s32.totalorder %s235, 255
        %s237 = scalar_select %p236, %s235, 255
        %s238 = smul.addr %s237, 4
        %s239 = scalar_lea.vmem %s1, %s238
        %s240 = smul.u32 64, %s19
        %s241 = smul.u32 4, %s18
        %p242 = scmp.lt.s32.totalorder %s241, 3
        %s243 = scalar_select %p242, %s241, 3
        %s244 = smul.addr %s243, 4
        %s245 = scalar_lea.vmem %s3, %s244
        %s246 = smul.u32 4, %s18
        %p248 = scmp.eq.s32.totalorder %s19, 0
        // Predicated region
        $region56: #{dueling_dqn_forward.5} parent=50 // pred_check
          %p249 = pneg %p248
        $region57: #{dueling_dqn_forward.5} parent=50 // pred_check_branch
          %251 = sbr.rel (%p249) target = $region59
        $region58: #{dueling_dqn_forward.5} parent=50 // pred_region
          %252 = vst [vmem:[#allocation2] sm:$0xff] 0.0
          %253 = vst [vmem:[#allocation2 + $0x8] sm:$0xff] 0.0
          %254 = vst [vmem:[#allocation2 + $0x10] sm:$0xff] 0.0
          %255 = vst [vmem:[#allocation2 + $0x18] sm:$0xff] 0.0
        $region59: #{dueling_dqn_forward.5} parent=50 // pred_fallthru
          _
        %v256 = vld [vmem:[#allocation2] sm:$0xff]
        %v257 = vld [vmem:[#allocation2 + $0x8] sm:$0xff]
        %v258 = vld [vmem:[#allocation2 + $0x10] sm:$0xff]
        %v259 = vld [vmem:[#allocation2 + $0x18] sm:$0xff]
        %v260 = vld [vmem:[%s207] sm:$0xff]
        %v261 = vld [vmem:[%s207 + $0x8] sm:$0xff]
        %v262 = vld [vmem:[%s207 + $0x10] sm:$0xff]
        %v263 = vld [vmem:[%s207 + $0x18] sm:$0xff]
        %v264 = vld [vmem:[%s207 + $0x20] sm:$0xff]
        %v265 = vld [vmem:[%s207 + $0x28] sm:$0xff]
        %v266 = vld [vmem:[%s207 + $0x30] sm:$0xff]
        %v267 = vld [vmem:[%s207 + $0x38] sm:$0xff]
        %v268 = vld [vmem:[%s239] sm:$0xf]
        %v269 = vld [vmem:[%s239 + $0x4] sm:$0xf]
        %v270 = vld [vmem:[%s239 + $0x8] sm:$0xf]
        %v271 = vld [vmem:[%s239 + $0xc] sm:$0xf]
        %v272 = vld [vmem:[%s239 + $0x10] sm:$0xf]
        %v273 = vld [vmem:[%s239 + $0x14] sm:$0xf]
        %v274 = vld [vmem:[%s239 + $0x18] sm:$0xf]
        %v275 = vld [vmem:[%s239 + $0x1c] sm:$0xf]
        %v276 = vld [vmem:[%s239 + $0x20] sm:$0xf]
        %v277 = vld [vmem:[%s239 + $0x24] sm:$0xf]
        %v278 = vld [vmem:[%s239 + $0x28] sm:$0xf]
        %v279 = vld [vmem:[%s239 + $0x2c] sm:$0xf]
        %v280 = vld [vmem:[%s239 + $0x30] sm:$0xf]
        %v281 = vld [vmem:[%s239 + $0x34] sm:$0xf]
        %v282 = vld [vmem:[%s239 + $0x38] sm:$0xf]
        %v283 = vld [vmem:[%s239 + $0x3c] sm:$0xf]
        %v284 = vld [vmem:[%s239 + $0x40] sm:$0xf]
        %v285 = vld [vmem:[%s239 + $0x44] sm:$0xf]
        %v286 = vld [vmem:[%s239 + $0x48] sm:$0xf]
        %v287 = vld [vmem:[%s239 + $0x4c] sm:$0xf]
        %v288 = vld [vmem:[%s239 + $0x50] sm:$0xf]
        %v289 = vld [vmem:[%s239 + $0x54] sm:$0xf]
        %v290 = vld [vmem:[%s239 + $0x58] sm:$0xf]
        %v291 = vld [vmem:[%s239 + $0x5c] sm:$0xf]
        %v292 = vld [vmem:[%s239 + $0x60] sm:$0xf]
        %v293 = vld [vmem:[%s239 + $0x64] sm:$0xf]
        %v294 = vld [vmem:[%s239 + $0x68] sm:$0xf]
        %v295 = vld [vmem:[%s239 + $0x6c] sm:$0xf]
        %v296 = vld [vmem:[%s239 + $0x70] sm:$0xf]
        %v297 = vld [vmem:[%s239 + $0x74] sm:$0xf]
        %v298 = vld [vmem:[%s239 + $0x78] sm:$0xf]
        %v299 = vld [vmem:[%s239 + $0x7c] sm:$0xf]
        %v300 = vld [vmem:[%s239 + $0x80] sm:$0xf]
        %v301 = vld [vmem:[%s239 + $0x84] sm:$0xf]
        %v302 = vld [vmem:[%s239 + $0x88] sm:$0xf]
        %v303 = vld [vmem:[%s239 + $0x8c] sm:$0xf]
        %v304 = vld [vmem:[%s239 + $0x90] sm:$0xf]
        %v305 = vld [vmem:[%s239 + $0x94] sm:$0xf]
        %v306 = vld [vmem:[%s239 + $0x98] sm:$0xf]
        %v307 = vld [vmem:[%s239 + $0x9c] sm:$0xf]
        %v308 = vld [vmem:[%s239 + $0xa0] sm:$0xf]
        %v309 = vld [vmem:[%s239 + $0xa4] sm:$0xf]
        %v310 = vld [vmem:[%s239 + $0xa8] sm:$0xf]
        %v311 = vld [vmem:[%s239 + $0xac] sm:$0xf]
        %v312 = vld [vmem:[%s239 + $0xb0] sm:$0xf]
        %v313 = vld [vmem:[%s239 + $0xb4] sm:$0xf]
        %v314 = vld [vmem:[%s239 + $0xb8] sm:$0xf]
        %v315 = vld [vmem:[%s239 + $0xbc] sm:$0xf]
        %v316 = vld [vmem:[%s239 + $0xc0] sm:$0xf]
        %v317 = vld [vmem:[%s239 + $0xc4] sm:$0xf]
        %v318 = vld [vmem:[%s239 + $0xc8] sm:$0xf]
        %v319 = vld [vmem:[%s239 + $0xcc] sm:$0xf]
        %v320 = vld [vmem:[%s239 + $0xd0] sm:$0xf]
        %v321 = vld [vmem:[%s239 + $0xd4] sm:$0xf]
        %v322 = vld [vmem:[%s239 + $0xd8] sm:$0xf]
        %v323 = vld [vmem:[%s239 + $0xdc] sm:$0xf]
        %v324 = vld [vmem:[%s239 + $0xe0] sm:$0xf]
        %v325 = vld [vmem:[%s239 + $0xe4] sm:$0xf]
        %v326 = vld [vmem:[%s239 + $0xe8] sm:$0xf]
        %v327 = vld [vmem:[%s239 + $0xec] sm:$0xf]
        %v328 = vld [vmem:[%s239 + $0xf0] sm:$0xf]
        %v329 = vld [vmem:[%s239 + $0xf4] sm:$0xf]
        %v330 = vld [vmem:[%s239 + $0xf8] sm:$0xf]
        %v331 = vld [vmem:[%s239 + $0xfc] sm:$0xf]
        %v340 = vunpack.c.l.b16 %v260
        %v341 = vunpack.c.h.b16 %v260
        %v342 = vunpack.c.l.b16 %v261
        %v343 = vunpack.c.h.b16 %v261
        %v344 = vunpack.c.l.b16 %v262
        %v345 = vunpack.c.h.b16 %v262
        %v346 = vunpack.c.l.b16 %v263
        %v347 = vunpack.c.h.b16 %v263
        %v348 = vunpack.c.l.b16 %v264
        %v349 = vunpack.c.h.b16 %v264
        %v350 = vunpack.c.l.b16 %v265
        %v351 = vunpack.c.h.b16 %v265
        %v352 = vunpack.c.l.b16 %v266
        %v353 = vunpack.c.h.b16 %v266
        %v354 = vunpack.c.l.b16 %v267
        %v355 = vunpack.c.h.b16 %v267
        %v356 = vpack.c.b16 %v344, %v340
        %v357 = vpack.c.b16 %v345, %v341
        %v358 = vpack.c.b16 %v346, %v342
        %v359 = vpack.c.b16 %v347, %v343
        %v360 = vpack.c.b16 %v352, %v348
        %v361 = vpack.c.b16 %v353, %v349
        %v362 = vpack.c.b16 %v354, %v350
        %v363 = vpack.c.b16 %v355, %v351
        %v436 = vunpack.c.l.b16 %v268
        %v437 = vunpack.c.l.b16 %v269
        %v438 = vunpack.c.l.b16 %v270
        %v439 = vunpack.c.l.b16 %v271
        %v440 = vunpack.c.l.b16 %v272
        %v441 = vunpack.c.l.b16 %v273
        %v442 = vunpack.c.l.b16 %v274
        %v443 = vunpack.c.l.b16 %v275
        %v444 = vunpack.c.l.b16 %v276
        %v445 = vunpack.c.l.b16 %v277
        %v446 = vunpack.c.l.b16 %v278
        %v447 = vunpack.c.l.b16 %v279
        %v448 = vunpack.c.l.b16 %v280
        %v449 = vunpack.c.l.b16 %v281
        %v450 = vunpack.c.l.b16 %v282
        %v451 = vunpack.c.l.b16 %v283
        %v452 = vunpack.c.l.b16 %v284
        %v453 = vunpack.c.l.b16 %v285
        %v454 = vunpack.c.l.b16 %v286
        %v455 = vunpack.c.l.b16 %v287
        %v456 = vunpack.c.l.b16 %v288
        %v457 = vunpack.c.l.b16 %v289
        %v458 = vunpack.c.l.b16 %v290
        %v459 = vunpack.c.l.b16 %v291
        %v460 = vunpack.c.l.b16 %v292
        %v461 = vunpack.c.l.b16 %v293
        %v462 = vunpack.c.l.b16 %v294
        %v463 = vunpack.c.l.b16 %v295
        %v464 = vunpack.c.l.b16 %v296
        %v465 = vunpack.c.l.b16 %v297
        %v466 = vunpack.c.l.b16 %v298
        %v467 = vunpack.c.l.b16 %v299
        %v468 = vunpack.c.l.b16 %v300
        %v469 = vunpack.c.l.b16 %v301
        %v470 = vunpack.c.l.b16 %v302
        %v471 = vunpack.c.l.b16 %v303
        %v472 = vunpack.c.l.b16 %v304
        %v473 = vunpack.c.l.b16 %v305
        %v474 = vunpack.c.l.b16 %v306
        %v475 = vunpack.c.l.b16 %v307
        %v476 = vunpack.c.l.b16 %v308
        %v477 = vunpack.c.l.b16 %v309
        %v478 = vunpack.c.l.b16 %v310
        %v479 = vunpack.c.l.b16 %v311
        %v480 = vunpack.c.l.b16 %v312
        %v481 = vunpack.c.l.b16 %v313
        %v482 = vunpack.c.l.b16 %v314
        %v483 = vunpack.c.l.b16 %v315
        %v484 = vunpack.c.l.b16 %v316
        %v485 = vunpack.c.l.b16 %v317
        %v486 = vunpack.c.l.b16 %v318
        %v487 = vunpack.c.l.b16 %v319
        %v488 = vunpack.c.l.b16 %v320
        %v489 = vunpack.c.l.b16 %v321
        %v490 = vunpack.c.l.b16 %v322
        %v491 = vunpack.c.l.b16 %v323
        %v492 = vunpack.c.l.b16 %v324
        %v493 = vunpack.c.l.b16 %v325
        %v494 = vunpack.c.l.b16 %v326
        %v495 = vunpack.c.l.b16 %v327
        %v496 = vunpack.c.l.b16 %v328
        %v497 = vunpack.c.l.b16 %v329
        %v498 = vunpack.c.l.b16 %v330
        %v499 = vunpack.c.l.b16 %v331
        %v500 = vpack.c.b16 %v437, %v436
        %v501 = vpack.c.b16 %v439, %v438
        %v502 = vpack.c.b16 %v441, %v440
        %v503 = vpack.c.b16 %v443, %v442
        %v504 = vpack.c.b16 %v445, %v444
        %v505 = vpack.c.b16 %v447, %v446
        %v506 = vpack.c.b16 %v449, %v448
        %v507 = vpack.c.b16 %v451, %v450
        %v508 = vpack.c.b16 %v453, %v452
        %v509 = vpack.c.b16 %v455, %v454
        %v510 = vpack.c.b16 %v457, %v456
        %v511 = vpack.c.b16 %v459, %v458
        %v512 = vpack.c.b16 %v461, %v460
        %v513 = vpack.c.b16 %v463, %v462
        %v514 = vpack.c.b16 %v465, %v464
        %v515 = vpack.c.b16 %v467, %v466
        %v516 = vpack.c.b16 %v469, %v468
        %v517 = vpack.c.b16 %v471, %v470
        %v518 = vpack.c.b16 %v473, %v472
        %v519 = vpack.c.b16 %v475, %v474
        %v520 = vpack.c.b16 %v477, %v476
        %v521 = vpack.c.b16 %v479, %v478
        %v522 = vpack.c.b16 %v481, %v480
        %v523 = vpack.c.b16 %v483, %v482
        %v524 = vpack.c.b16 %v485, %v484
        %v525 = vpack.c.b16 %v487, %v486
        %v526 = vpack.c.b16 %v489, %v488
        %v527 = vpack.c.b16 %v491, %v490
        %v528 = vpack.c.b16 %v493, %v492
        %v529 = vpack.c.b16 %v495, %v494
        %v530 = vpack.c.b16 %v497, %v496
        %v531 = vpack.c.b16 %v499, %v498
        %564 = vmatprep.subr.bf16.mxu0 0
        %565 = vmatpush1.bf16.msra.mxu0 %v507
        %566 = vmatprep.subr.bf16.mxu0 0
        %567 = vmatpush1.bf16.msra.mxu0 %v506
        %568 = vmatprep.subr.bf16.mxu0 0
        %569 = vmatpush1.bf16.msra.mxu0 %v505
        %570 = vmatprep.subr.bf16.mxu0 0
        %571 = vmatpush1.bf16.msra.mxu0 %v504
        %572 = vmatprep.subr.bf16.mxu0 0
        %573 = vmatpush1.bf16.msra.mxu0 %v503
        %574 = vmatprep.subr.bf16.mxu0 0
        %575 = vmatpush1.bf16.msra.mxu0 %v502
        %576 = vmatprep.subr.bf16.mxu0 0
        %577 = vmatpush1.bf16.msra.mxu0 %v501
        %578 = vmatprep.subr.bf16.mxu0 0
        %579 = vmatpush1.bf16.msra.mxu0 %v500
        %580 = vmatprep.subr.bf16.mxu0 0
        %581 = vmatpush2.bf16.msra.mxu0 %v515
        %582 = vmatprep.subr.bf16.mxu0 0
        %583 = vmatpush2.bf16.msra.mxu0 %v514
        %584 = vmatprep.subr.bf16.mxu0 0
        %585 = vmatpush2.bf16.msra.mxu0 %v513
        %586 = vmatprep.subr.bf16.mxu0 0
        %587 = vmatpush2.bf16.msra.mxu0 %v512
        %588 = vmatprep.subr.bf16.mxu0 0
        %589 = vmatpush2.bf16.msra.mxu0 %v511
        %590 = vmatprep.subr.bf16.mxu0 0
        %591 = vmatpush2.bf16.msra.mxu0 %v510
        %592 = vmatprep.subr.bf16.mxu0 0
        %593 = vmatpush2.bf16.msra.mxu0 %v509
        %594 = vmatprep.subr.bf16.mxu0 0
        %595 = vmatpush2.bf16.msra.mxu0 %v508
        %596 = vmatprep.mubr.bf16.mxu0 %v357
        %597 = vmatmul.mubr.bf16.gmra.mxu0 %v356
        %v598 = vpop.f32.mrf.mxu0
        %v599 = vadd.f32 0.0, %v598
        %v600 = vpop.f32.mrf.mxu0
        %v601 = vpop.f32.mrf.mxu0
        %v602 = vadd.f32 0.0, %v601
        %v603 = vpop.f32.mrf.mxu0
        %604 = vmatprep.mubr.bf16.mxu0 %v361
        %605 = vmatmul.mubr.bf16.gmra.mxu0 %v360
        %v606 = vpop.f32.mrf.mxu0
        %v607 = vadd.f32 0.0, %v606
        %v608 = vpop.f32.mrf.mxu0
        %v609 = vpop.f32.mrf.mxu0
        %v610 = vadd.f32 0.0, %v609
        %v611 = vpop.f32.mrf.mxu0
        %612 = vdwg.mxu0
        %613 = vmatprep.subr.bf16.mxu0 0
        %614 = vmatpush1.bf16.msra.mxu0 %v523
        %615 = vmatprep.subr.bf16.mxu0 0
        %616 = vmatpush1.bf16.msra.mxu0 %v522
        %617 = vmatprep.subr.bf16.mxu0 0
        %618 = vmatpush1.bf16.msra.mxu0 %v521
        %619 = vmatprep.subr.bf16.mxu0 0
        %620 = vmatpush1.bf16.msra.mxu0 %v520
        %621 = vmatprep.subr.bf16.mxu0 0
        %622 = vmatpush1.bf16.msra.mxu0 %v519
        %623 = vmatprep.subr.bf16.mxu0 0
        %624 = vmatpush1.bf16.msra.mxu0 %v518
        %625 = vmatprep.subr.bf16.mxu0 0
        %626 = vmatpush1.bf16.msra.mxu0 %v517
        %627 = vmatprep.subr.bf16.mxu0 0
        %628 = vmatpush1.bf16.msra.mxu0 %v516
        %629 = vmatprep.subr.bf16.mxu0 0
        %630 = vmatpush2.bf16.msra.mxu0 %v531
        %631 = vmatprep.subr.bf16.mxu0 0
        %632 = vmatpush2.bf16.msra.mxu0 %v530
        %633 = vmatprep.subr.bf16.mxu0 0
        %634 = vmatpush2.bf16.msra.mxu0 %v529
        %635 = vmatprep.subr.bf16.mxu0 0
        %636 = vmatpush2.bf16.msra.mxu0 %v528
        %637 = vmatprep.subr.bf16.mxu0 0
        %638 = vmatpush2.bf16.msra.mxu0 %v527
        %639 = vmatprep.subr.bf16.mxu0 0
        %640 = vmatpush2.bf16.msra.mxu0 %v526
        %641 = vmatprep.subr.bf16.mxu0 0
        %642 = vmatpush2.bf16.msra.mxu0 %v525
        %643 = vmatprep.subr.bf16.mxu0 0
        %644 = vmatpush2.bf16.msra.mxu0 %v524
        %645 = vmatprep.mubr.bf16.mxu0 %v359
        %646 = vmatmul.mubr.bf16.gmra.mxu0 %v358
        %v647 = vpop.f32.mrf.mxu0
        %v648 = vadd.f32 %v599, %v647
        %v649 = vpop.f32.mrf.mxu0
        %v650 = vpop.f32.mrf.mxu0
        %v651 = vadd.f32 %v602, %v650
        %v652 = vpop.f32.mrf.mxu0
        %653 = vmatprep.mubr.bf16.mxu0 %v363
        %654 = vmatmul.mubr.bf16.gmra.mxu0 %v362
        %v655 = vpop.f32.mrf.mxu0
        %v656 = vadd.f32 %v607, %v655
        %v657 = vpop.f32.mrf.mxu0
        %v658 = vpop.f32.mrf.mxu0
        %v659 = vadd.f32 %v610, %v658
        %v660 = vpop.f32.mrf.mxu0
        %661 = vdwg.mxu0
        %v662 = vadd.f32 %v256, %v648
        %v663 = vadd.f32 %v257, %v651
        %v664 = vadd.f32 %v258, %v656
        %v665 = vadd.f32 %v259, %v659
        %666 = vst [vmem:[#allocation2] sm:$0xff] %v662
        %667 = vst [vmem:[#allocation2 + $0x8] sm:$0xff] %v663
        %668 = vst [vmem:[#allocation2 + $0x10] sm:$0xff] %v664
        %669 = vst [vmem:[#allocation2 + $0x18] sm:$0xff] %v665
        %p670 = scmp.eq.s32.totalorder %s19, 3
        // Predicated region
        $region60: #{dueling_dqn_forward.5} parent=50 // pred_check
          %p671 = pneg %p670
        $region61: #{dueling_dqn_forward.5} parent=50 // pred_check_branch
          %673 = sbr.rel (%p671) target = $region63
        $region62: #{dueling_dqn_forward.5} parent=50 // pred_region
          %v674 = vld [vmem:[#allocation2] sm:$0xff]
          %v675 = vld [vmem:[#allocation2 + $0x8] sm:$0xff]
          %v676 = vld [vmem:[#allocation2 + $0x10] sm:$0xff]
          %v677 = vld [vmem:[#allocation2 + $0x18] sm:$0xff]
          %v678 = vld [vmem:[%s2] sm:$0x1]
          %v680 = vlaneseq
          %v681 = vshrl.u32 %v680, 7
          %v682 = vsub.s32 0, %v681
          %v683 = vrot.slane %v678, %v682
          %v685 = vadd.f32 %v674, %v683
          %v686 = vadd.f32 %v675, %v683
          %v687 = vadd.f32 %v676, %v683
          %v688 = vadd.f32 %v677, %v683
          %v689 = vmax.f32 %v685, 0.0
          %v690 = vmax.f32 %v686, 0.0
          %v691 = vmax.f32 %v687, 0.0
          %v692 = vmax.f32 %v688, 0.0
          %v693 = vpack.c.bf16 %v690, %v689
          %v694 = vpack.c.bf16 %v692, %v691
          %v697 = vunpack.c.l.b16 %v693
          %v698 = vunpack.c.h.b16 %v693
          %v699 = vunpack.c.l.b16 %v694
          %v700 = vunpack.c.h.b16 %v694
          %v701 = vpack.c.b16 %v697, %v697
          %v702 = vpack.c.b16 %v698, %v698
          %v703 = vpack.c.b16 %v699, %v699
          %v704 = vpack.c.b16 %v700, %v700
          %709 = vst [vmem:[%s245] sm:$0xf] %v701
          %710 = vst [vmem:[%s245 + $0x4] sm:$0xf] %v702
          %711 = vst [vmem:[%s245 + $0x8] sm:$0xf] %v703
          %712 = vst [vmem:[%s245 + $0xc] sm:$0xf] %v704
        $region63: #{dueling_dqn_forward.5} parent=50 // pred_fallthru
          _
        %s713 = smul.u32 4, %s18
        %p714 = scmp.lt.s32.totalorder %s713, 3
        %s715 = scalar_select %p714, %s713, 3
        %s716 = smul.addr %s715, 4
        %s717 = scalar_lea.vmem %s3, %s716
        // Predicated region
        $region64: #{dueling_dqn_forward.5} parent=50 // pred_check
          %p718 = pneg %p119
        $region65: #{dueling_dqn_forward.5} parent=50 // pred_check_branch
          %720 = sbr.rel (%p718) target = $region67
        $region66: #{dueling_dqn_forward.5} parent=50 // pred_region
          %s721 = smul.u32 4, %s18
        $region67: #{dueling_dqn_forward.5} parent=50 // pred_fallthru
          _
        // Predicated region
        $region68: #{dueling_dqn_forward.5} parent=50 // pred_check
          %p722 = pneg %p119
        $region69: #{dueling_dqn_forward.5} parent=50 // pred_check_branch
          %724 = sbr.rel (%p722) target = $region71
        $region70: #{dueling_dqn_forward.5} parent=50 // pred_region
          %s725 = smul.u32 4, %s18
          %p726 = scmp.lt.s32.totalorder %s725, 3
          %s727 = scalar_select %p726, %s725, 3
          %s728 = smul.addr %s727, 4
          %s729 = scalar_lea.vmem %s3, %s728
        $region71: #{dueling_dqn_forward.5} parent=50 // pred_fallthru
          _
      $region51: #{dueling_dqn_forward.5} parent=5 // pred_fallthru
        _
      %p730 = scmp.le.s32.totalorder 2, %s9
      // Predicated region
      $region72: #{dueling_dqn_forward.5} parent=5 // pred_check
        %p731 = pneg %p730
      $region73: #{dueling_dqn_forward.5} parent=5 // pred_check_branch
        %733 = sbr.rel (%p731) target = $region75
      $region74: #{dueling_dqn_forward.5} parent=5 // pred_region
        %s734 = ssub.s32 %s9, 2
      $region75: #{dueling_dqn_forward.5} parent=5 // pred_fallthru
        _
    $region6: #{dueling_dqn_forward.5} parent=1 // loop_footer
      %s13 = sadd.s32 1, %s9
    $region7: #{dueling_dqn_forward.5} parent=1 // loop_footer_branch
      %8 = sbr.rel target = $region3
    $region8: #{dueling_dqn_forward.5} parent=1 // loop_exit
      _

// kernel: dueling_dqn_forward.6
$region0: #{dueling_dqn_forward.6}
  #allocation0 [shape = 'u32[]', space=smem, size = 0x4, offset = 0x4, fixed_abs, tag = 'smem constant byte address 0x4 - core index']
  #allocation1 [shape = 'u32[144,128]{1,0:T(1,128)}', space=vmem, size = 0x12000, scoped, tag = 'internal scratch']
  #allocation2 [shape = 'f32[16,128]{1,0:T(8,128)}', space=vmem, size = 0x2000, scoped, tag = 'scratch operand']
  %s0 = inlined_call_operand.vmem [shape: bf16[16,1152], index: 0, kind: input, shape index: {}]
  %s1 = inlined_call_operand.vmem [shape: bf16[1152,128], index: 1, kind: input, shape index: {}]
  %s2 = inlined_call_operand.vmem [shape: f32[1,128], index: 2, kind: input, shape index: {}]
  %s3 = inlined_call_operand.vmem [shape: bf16[16,128], index: 3, kind: output, shape index: {}]
  %s4 = sld [smem:[#allocation0]]
  $region79: #{dueling_dqn_forward.6} parent=0
    _
  %s6 = ssub.s32 1, %s4
  %s7 = scalar_select 0, %s6, %s4
  $region1: #{dueling_dqn_forward.6} parent=0
    #allocation3 [shape = 'u8[24576]{0}', space=vmem, size = 0x6000, scoped, tag = 'input window, operand 0']
    loop: start=0, step=1, limit=5
    $region2: #{dueling_dqn_forward.6} parent=1 // loop_pre_header
      _
    $region3: #{dueling_dqn_forward.6} parent=1 // loop_header
      %s9 = sphi 0, %s13
      %p10 = scmp.ge.s32.totalorder %s9, 5
      %s16 = sphi 0, %s28
      %s17 = sphi 0, %s24
      %s18 = sphi 0, %s16
      %s19 = sphi 0, %s17
      %s20 = sphi 0, %s18
      %s21 = sphi 0, %s19
      %s33 = sphi 0, %s35
      %s36 = sphi 0, %s33
      %s37 = sphi 0, %s36
      %s53 = sphi 0, %s37
      %s59 = sphi 0, %s61
      %s62 = sphi 0, %s59
      %s63 = sphi 0, %s62
      %s79 = sphi 0, %s63
      %s83 = sphi 0, %s83
      %s85 = sphi 0, %s83
      %s86 = sphi 0, %s85
      %s100 = sphi 0, %s86
      %s106 = sphi 0, %s108
      %s109 = sphi 0, %s106
      %s110 = sphi 0, %s109
      %s126 = sphi 0, %s110
    $region4: #{dueling_dqn_forward.6} parent=1 // loop_header_branch
      %12 = sbr.rel (%p10) target = $region8
    $region5: #{dueling_dqn_forward.6} parent=1 // loop_body
      %s14 = ssub.s32 %s9, 1
      %s15 = ssub.s32 %s9, 2
      %s22 = sadd.s32 1, %s17
      %p23 = scmp.ge.s32.totalorder %s22, 3
      %s24 = scalar_select %p23, 0, %s22
      %s25 = sadd.s32 1, %s16
      %s26 = scalar_select %p23, %s25, %s16
      %p27 = scmp.ge.s32.totalorder %s26, 1
      %s28 = scalar_select %p27, 0, %s26
      %s29 = ssub.s32 %s16, %s28
      %s30 = ssub.s32 %s17, %s24
      %s31 = sor.u32 %s29, %s30
      %p32 = scmp.eq.s32.totalorder %s31, 0
      %s34 = sadd.s32 %s33, 1
      %s35 = scalar_select %p32, %s33, %s34
      %p38 = pneg %p32
      %p39 = scmp.eq.s32.totalorder %s9, 2
      %p40 = por %p38, %p39
      %p41 = scmp.ne.s32.totalorder %s33, %s36
      %p42 = scmp.eq.s32.totalorder %s9, 0
      %p43 = por %p41, %p42
      %p44 = scmp.ne.s32.totalorder %s33, %s36
      %p45 = scmp.eq.s32.totalorder %s14, 2
      %p46 = por %p44, %p45
      %p47 = scmp.ne.s32.totalorder %s36, %s37
      %p48 = scmp.eq.s32.totalorder %s14, 0
      %p49 = por %p47, %p48
      %p50 = scmp.ne.s32.totalorder %s36, %s37
      %p51 = scmp.eq.s32.totalorder %s15, 2
      %p52 = por %p50, %p51
      %p54 = scmp.ne.s32.totalorder %s37, %s53
      %p55 = scmp.eq.s32.totalorder %s15, 0
      %p56 = por %p54, %p55
      %s57 = ssub.s32 %s17, %s24
      %p58 = scmp.eq.s32.totalorder %s57, 0
      %s60 = sadd.s32 %s59, 1
      %s61 = scalar_select %p58, %s59, %s60
      %p64 = pneg %p58
      %p65 = scmp.eq.s32.totalorder %s9, 2
      %p66 = por %p64, %p65
      %p67 = scmp.ne.s32.totalorder %s59, %s62
      %p68 = scmp.eq.s32.totalorder %s9, 0
      %p69 = por %p67, %p68
      %p70 = scmp.ne.s32.totalorder %s59, %s62
      %p71 = scmp.eq.s32.totalorder %s14, 2
      %p72 = por %p70, %p71
      %p73 = scmp.ne.s32.totalorder %s62, %s63
      %p74 = scmp.eq.s32.totalorder %s14, 0
      %p75 = por %p73, %p74
      %p76 = scmp.ne.s32.totalorder %s62, %s63
      %p77 = scmp.eq.s32.totalorder %s15, 2
      %p78 = por %p76, %p77
      %p80 = scmp.ne.s32.totalorder %s63, %s79
      %p81 = scmp.eq.s32.totalorder %s15, 0
      %p82 = por %p80, %p81
      %s84 = sadd.s32 %s83, 1
      %p87 = scmp.eq.s32.totalorder %s9, 2
      %p88 = scmp.ne.s32.totalorder %s83, %s85
      %p89 = scmp.eq.s32.totalorder %s9, 0
      %p90 = por %p88, %p89
      %p91 = scmp.ne.s32.totalorder %s83, %s85
      %p92 = scmp.eq.s32.totalorder %s14, 2
      %p93 = por %p91, %p92
      %p94 = scmp.ne.s32.totalorder %s85, %s86
      %p95 = scmp.eq.s32.totalorder %s14, 0
      %p96 = por %p94, %p95
      %p97 = scmp.ne.s32.totalorder %s85, %s86
      %p98 = scmp.eq.s32.totalorder %s15, 2
      %p99 = por %p97, %p98
      %p101 = scmp.ne.s32.totalorder %s86, %s100
      %p102 = scmp.eq.s32.totalorder %s15, 0
      %p103 = por %p101, %p102
      %s104 = ssub.s32 %s16, %s28
      %p105 = scmp.eq.s32.totalorder %s104, 0
      %s107 = sadd.s32 %s106, 1
      %s108 = scalar_select %p105, %s106, %s107
      %p111 = pneg %p105
      %p112 = scmp.eq.s32.totalorder %s9, 2
      %p113 = por %p111, %p112
      %p114 = scmp.ne.s32.totalorder %s106, %s109
      %p115 = scmp.eq.s32.totalorder %s9, 0
      %p116 = por %p114, %p115
      %p117 = scmp.ne.s32.totalorder %s106, %s109
      %p118 = scmp.eq.s32.totalorder %s14, 2
      %p119 = por %p117, %p118
      %p120 = scmp.ne.s32.totalorder %s109, %s110
      %p121 = scmp.eq.s32.totalorder %s14, 0
      %p122 = por %p120, %p121
      %p123 = scmp.ne.s32.totalorder %s109, %s110
      %p124 = scmp.eq.s32.totalorder %s15, 2
      %p125 = por %p123, %p124
      %p127 = scmp.ne.s32.totalorder %s110, %s126
      %p128 = scmp.eq.s32.totalorder %s15, 0
      %p129 = por %p127, %p128
      %p130 = scmp.le.s32.totalorder 1, %s9
      %p131 = scmp.lt.s32.totalorder %s9, 4
      %p132 = pnand %p130, %p131
      %p133 = pneg %p132
      // Predicated region
      $region9: #{dueling_dqn_forward.6} parent=5 // pred_check
        _
      $region10: #{dueling_dqn_forward.6} parent=5 // pred_check_branch
        %135 = sbr.rel (%p132) target = $region12
      $region11: #{dueling_dqn_forward.6} parent=5 // pred_region
        %s136 = ssub.s32 %s9, 1
        // Predicated region
        $region13: #{dueling_dqn_forward.6} parent=11 // pred_check
          %p137 = pneg %p96
        $region14: #{dueling_dqn_forward.6} parent=11 // pred_check_branch
          %139 = sbr.rel (%p137) target = $region16
        $region15: #{dueling_dqn_forward.6} parent=11 // pred_region
          _
        $region16: #{dueling_dqn_forward.6} parent=11 // pred_fallthru
          _
      $region12: #{dueling_dqn_forward.6} parent=5 // pred_fallthru
        _
      %p140 = scmp.lt.s32.totalorder %s9, 3
      // Predicated region
      $region17: #{dueling_dqn_forward.6} parent=5 // pred_check
        %p141 = pneg %p140
      $region18: #{dueling_dqn_forward.6} parent=5 // pred_check_branch
        %143 = sbr.rel (%p141) target = $region20
      $region19: #{dueling_dqn_forward.6} parent=5 // pred_region
        // Predicated region
        $region21: #{dueling_dqn_forward.6} parent=19 // pred_check
          %p144 = pneg %p43
        $region22: #{dueling_dqn_forward.6} parent=19 // pred_check_branch
          %146 = sbr.rel (%p144) target = $region24
        $region23: #{dueling_dqn_forward.6} parent=19 // pred_region
          %s147 = sand.u32 %s33, 1
          %s148 = sand.u32 %s33, 1
          %s149 = smul.addr %s148, 24
          %s150 = scalar_lea.vmem [#allocation3], %s149
          %s151 = smul.u32 2, %s16
          %s152 = smul.u32 3, %s17
          %s153 = smul.addr %s151, 9
          %s154 = sadd.s32 %s152, %s153
          %s155 = smul.addr %s154, 4
          %s156 = scalar_lea.vmem %s0, %s155
          // Predicated region
          $region25: #{dueling_dqn_forward.6} parent=23 // pred_check
            _
          $region26: #{dueling_dqn_forward.6} parent=23 // pred_check_branch
            %158 = sbr.rel (0) target = $region28
          $region27: #{dueling_dqn_forward.6} parent=23 // pred_region
            // Predicated region
            $region29: #{dueling_dqn_forward.6} parent=27 // pred_check
              _
            $region30: #{dueling_dqn_forward.6} parent=27 // pred_check_branch
              %160 = sbr.rel (0) target = $region32
            $region31: #{dueling_dqn_forward.6} parent=27 // pred_region
              %s161 = scalar_lea.vmem %s156, 8
              %s162 = scalar_lea.vmem %s150, 8 [#allocation3]
              loop: start=0, step=1, limit=1
              $region33: #{dueling_dqn_forward.6} parent=31 // loop_pre_header
                _
              $region34: #{dueling_dqn_forward.6} parent=31 // loop_header
                %s164 = sphi 0, %s168
                %p165 = scmp.ge.s32.totalorder %s164, 1
                %s169 = sphi %s156, %s156
                %s170 = sphi %s150, %s150
              $region35: #{dueling_dqn_forward.6} parent=31 // loop_header_branch
                %167 = sbr.rel (%p165) target = $region39
              $region36: #{dueling_dqn_forward.6} parent=31 // loop_body
                %v171 = vld [vmem:[%s169] sm:$0xff]
                %172 = vst [vmem:[%s170] sm:$0xff] %v171
                %v173 = vld [vmem:[%s169 + $0x24] sm:$0xff]
                %174 = vst [vmem:[%s170 + $0xc] sm:$0xff] %v173
              $region37: #{dueling_dqn_forward.6} parent=31 // loop_footer
                %s168 = sadd.s32 1, %s164
              $region38: #{dueling_dqn_forward.6} parent=31 // loop_footer_branch
                %163 = sbr.rel target = $region34
              $region39: #{dueling_dqn_forward.6} parent=31 // loop_exit
                _
              %s176 = ssub.s32 16, 1
              loop: start=0, step=1, limit=1
              $region40: #{dueling_dqn_forward.6} parent=31 // loop_pre_header
                _
              $region41: #{dueling_dqn_forward.6} parent=31 // loop_header
                %s178 = sphi 0, %s182
                %p179 = scmp.ge.s32.totalorder %s178, 1
                %s183 = sphi %s161, %s161
                %s184 = sphi %s162, %s162
              $region42: #{dueling_dqn_forward.6} parent=31 // loop_header_branch
                %181 = sbr.rel (%p179) target = $region46
              $region43: #{dueling_dqn_forward.6} parent=31 // loop_body
                %v185 = vld [vmem:[%s183] sm:%s176]
                %186 = vst [vmem:[%s184] sm:%s176] %v185
                %v187 = vld [vmem:[%s183 + $0x24] sm:%s176]
                %188 = vst [vmem:[%s184 + $0xc] sm:%s176] %v187
              $region44: #{dueling_dqn_forward.6} parent=31 // loop_footer
                %s182 = sadd.s32 1, %s178
              $region45: #{dueling_dqn_forward.6} parent=31 // loop_footer_branch
                %177 = sbr.rel target = $region41
              $region46: #{dueling_dqn_forward.6} parent=31 // loop_exit
                _
            $region32: #{dueling_dqn_forward.6} parent=27 // pred_fallthru
              _
          $region28: #{dueling_dqn_forward.6} parent=23 // pred_fallthru
            _
          %189 = vnop
        $region24: #{dueling_dqn_forward.6} parent=19 // pred_fallthru
          _
        // Predicated region
        $region47: #{dueling_dqn_forward.6} parent=19 // pred_check
          %p190 = pneg %p69
        $region48: #{dueling_dqn_forward.6} parent=19 // pred_check_branch
          %192 = sbr.rel (%p190) target = $region50
        $region49: #{dueling_dqn_forward.6} parent=19 // pred_region
          %s193 = smul.u32 48, %s17
          %p194 = scmp.lt.s32.totalorder %s193, 143
          %s195 = scalar_select %p194, %s193, 143
          %s196 = smul.addr %s195, 4
          %s197 = scalar_lea.vmem %s1, %s196
          %s198 = smul.u32 48, %s17
        $region50: #{dueling_dqn_forward.6} parent=19 // pred_fallthru
          _
      $region20: #{dueling_dqn_forward.6} parent=5 // pred_fallthru
        _
      %p199 = scmp.le.s32.totalorder 1, %s9
      %p200 = scmp.lt.s32.totalorder %s9, 4
      %p201 = pnand %p199, %p200
      %p202 = pneg %p201
      // Predicated region
      $region51: #{dueling_dqn_forward.6} parent=5 // pred_check
        _
      $region52: #{dueling_dqn_forward.6} parent=5 // pred_check_branch
        %204 = sbr.rel (%p201) target = $region54
      $region53: #{dueling_dqn_forward.6} parent=5 // pred_region
        %s205 = ssub.s32 %s9, 1
        %s206 = sand.u32 %s36, 1
        %s207 = sand.u32 %s36, 1
        %s208 = smul.addr %s207, 24
        %s209 = scalar_lea.vmem [#allocation3], %s208
        // Predicated region
        $region55: #{dueling_dqn_forward.6} parent=53 // pred_check
          %p210 = pneg %p49
        $region56: #{dueling_dqn_forward.6} parent=53 // pred_check_branch
          %212 = sbr.rel (%p210) target = $region58
        $region57: #{dueling_dqn_forward.6} parent=53 // pred_region
          _
        $region58: #{dueling_dqn_forward.6} parent=53 // pred_fallthru
          _
        %s213 = sand.u32 %s36, 1
        %s214 = sand.u32 %s36, 1
        %s215 = smul.addr %s214, 24
        %s216 = scalar_lea.vmem [#allocation3], %s215
        %p217 = pneg %p49
        %p218 = pneg %p46
        %s219 = smul.u32 48, %s19
        %p220 = scmp.lt.s32.totalorder %s219, 143
        %s221 = scalar_select %p220, %s219, 143
        %s222 = smul.addr %s221, 4
        %s223 = scalar_lea.vmem %s1, %s222
        %p224 = pneg %p75
        %p225 = pneg %p72
        %p226 = pneg %p96
        %p227 = pneg %p93
        %p228 = pneg %p122
        %p229 = pneg %p119
        %s230 = smul.u32 2, %s18
        %p231 = scmp.lt.s32.totalorder %s230, 1
        %s232 = scalar_select %p231, %s230, 1
        %s233 = smul.addr %s232, 4
        %s234 = scalar_lea.vmem %s3, %s233
        %s235 = smul.u32 2, %s18
        %s236 = smul.u32 3, %s19
        %s237 = smul.u32 48, %s19
        %p238 = scmp.lt.s32.totalorder %s237, 143
        %s239 = scalar_select %p238, %s237, 143
        %s240 = smul.addr %s239, 4
        %s241 = scalar_lea.vmem %s1, %s240
        %s242 = smul.u32 48, %s19
        %s243 = smul.u32 2, %s18
        %p244 = scmp.lt.s32.totalorder %s243, 1
        %s245 = scalar_select %p244, %s243, 1
        %s246 = smul.addr %s245, 4
        %s247 = scalar_lea.vmem %s3, %s246
        %s248 = smul.u32 2, %s18
        %p250 = scmp.eq.s32.totalorder %s19, 0
        // Predicated region
        $region59: #{dueling_dqn_forward.6} parent=53 // pred_check
          %p251 = pneg %p250
        $region60: #{dueling_dqn_forward.6} parent=53 // pred_check_branch
          %253 = sbr.rel (%p251) target = $region62
        $region61: #{dueling_dqn_forward.6} parent=53 // pred_region
          %254 = vst [vmem:[#allocation2] sm:$0xff] 0.0
          %255 = vst [vmem:[#allocation2 + $0x8] sm:$0xff] 0.0
        $region62: #{dueling_dqn_forward.6} parent=53 // pred_fallthru
          _
        %v256 = vld [vmem:[#allocation2] sm:$0xff]
        %v257 = vld [vmem:[#allocation2 + $0x8] sm:$0xff]
        %v258 = vld [vmem:[%s209] sm:$0xff]
        %v259 = vld [vmem:[%s209 + $0x8] sm:$0xf]
        %v260 = vld [vmem:[%s209 + $0xc] sm:$0xff]
        %v261 = vld [vmem:[%s209 + $0x14] sm:$0xf]
        %v262 = vld [vmem:[%s241] sm:$0xf]
        %v263 = vld [vmem:[%s241 + $0x4] sm:$0xf]
        %v264 = vld [vmem:[%s241 + $0x8] sm:$0xf]
        %v265 = vld [vmem:[%s241 + $0xc] sm:$0xf]
        %v266 = vld [vmem:[%s241 + $0x10] sm:$0xf]
        %v267 = vld [vmem:[%s241 + $0x14] sm:$0xf]
        %v268 = vld [vmem:[%s241 + $0x18] sm:$0xf]
        %v269 = vld [vmem:[%s241 + $0x1c] sm:$0xf]
        %v270 = vld [vmem:[%s241 + $0x20] sm:$0xf]
        %v271 = vld [vmem:[%s241 + $0x24] sm:$0xf]
        %v272 = vld [vmem:[%s241 + $0x28] sm:$0xf]
        %v273 = vld [vmem:[%s241 + $0x2c] sm:$0xf]
        %v274 = vld [vmem:[%s241 + $0x30] sm:$0xf]
        %v275 = vld [vmem:[%s241 + $0x34] sm:$0xf]
        %v276 = vld [vmem:[%s241 + $0x38] sm:$0xf]
        %v277 = vld [vmem:[%s241 + $0x3c] sm:$0xf]
        %v278 = vld [vmem:[%s241 + $0x40] sm:$0xf]
        %v279 = vld [vmem:[%s241 + $0x44] sm:$0xf]
        %v280 = vld [vmem:[%s241 + $0x48] sm:$0xf]
        %v281 = vld [vmem:[%s241 + $0x4c] sm:$0xf]
        %v282 = vld [vmem:[%s241 + $0x50] sm:$0xf]
        %v283 = vld [vmem:[%s241 + $0x54] sm:$0xf]
        %v284 = vld [vmem:[%s241 + $0x58] sm:$0xf]
        %v285 = vld [vmem:[%s241 + $0x5c] sm:$0xf]
        %v286 = vld [vmem:[%s241 + $0x60] sm:$0xf]
        %v287 = vld [vmem:[%s241 + $0x64] sm:$0xf]
        %v288 = vld [vmem:[%s241 + $0x68] sm:$0xf]
        %v289 = vld [vmem:[%s241 + $0x6c] sm:$0xf]
        %v290 = vld [vmem:[%s241 + $0x70] sm:$0xf]
        %v291 = vld [vmem:[%s241 + $0x74] sm:$0xf]
        %v292 = vld [vmem:[%s241 + $0x78] sm:$0xf]
        %v293 = vld [vmem:[%s241 + $0x7c] sm:$0xf]
        %v294 = vld [vmem:[%s241 + $0x80] sm:$0xf]
        %v295 = vld [vmem:[%s241 + $0x84] sm:$0xf]
        %v296 = vld [vmem:[%s241 + $0x88] sm:$0xf]
        %v297 = vld [vmem:[%s241 + $0x8c] sm:$0xf]
        %v298 = vld [vmem:[%s241 + $0x90] sm:$0xf]
        %v299 = vld [vmem:[%s241 + $0x94] sm:$0xf]
        %v300 = vld [vmem:[%s241 + $0x98] sm:$0xf]
        %v301 = vld [vmem:[%s241 + $0x9c] sm:$0xf]
        %v302 = vld [vmem:[%s241 + $0xa0] sm:$0xf]
        %v303 = vld [vmem:[%s241 + $0xa4] sm:$0xf]
        %v304 = vld [vmem:[%s241 + $0xa8] sm:$0xf]
        %v305 = vld [vmem:[%s241 + $0xac] sm:$0xf]
        %v306 = vld [vmem:[%s241 + $0xb0] sm:$0xf]
        %v307 = vld [vmem:[%s241 + $0xb4] sm:$0xf]
        %v308 = vld [vmem:[%s241 + $0xb8] sm:$0xf]
        %v309 = vld [vmem:[%s241 + $0xbc] sm:$0xf]
        %v314 = vunpack.c.l.b16 %v258
        %v315 = vunpack.c.h.b16 %v258
        %v316 = vunpack.c.l.b16 %v259
        %v317 = vunpack.c.l.b16 %v260
        %v318 = vunpack.c.h.b16 %v260
        %v319 = vunpack.c.l.b16 %v261
        %v320 = vpack.c.b16 %v317, %v314
        %v321 = vpack.c.b16 %v318, %v315
        %v322 = vpack.c.b16 %v319, %v316
        %v374 = vunpack.c.l.b16 %v262
        %v375 = vunpack.c.l.b16 %v263
        %v376 = vunpack.c.l.b16 %v264
        %v377 = vunpack.c.l.b16 %v265
        %v378 = vunpack.c.l.b16 %v266
        %v379 = vunpack.c.l.b16 %v267
        %v380 = vunpack.c.l.b16 %v268
        %v381 = vunpack.c.l.b16 %v269
        %v382 = vunpack.c.l.b16 %v270
        %v383 = vunpack.c.l.b16 %v271
        %v384 = vunpack.c.l.b16 %v272
        %v385 = vunpack.c.l.b16 %v273
        %v386 = vunpack.c.l.b16 %v274
        %v387 = vunpack.c.l.b16 %v275
        %v388 = vunpack.c.l.b16 %v276
        %v389 = vunpack.c.l.b16 %v277
        %v390 = vunpack.c.l.b16 %v278
        %v391 = vunpack.c.l.b16 %v279
        %v392 = vunpack.c.l.b16 %v280
        %v393 = vunpack.c.l.b16 %v281
        %v394 = vunpack.c.l.b16 %v282
        %v395 = vunpack.c.l.b16 %v283
        %v396 = vunpack.c.l.b16 %v284
        %v397 = vunpack.c.l.b16 %v285
        %v398 = vunpack.c.l.b16 %v286
        %v399 = vunpack.c.l.b16 %v287
        %v400 = vunpack.c.l.b16 %v288
        %v401 = vunpack.c.l.b16 %v289
        %v402 = vunpack.c.l.b16 %v290
        %v403 = vunpack.c.l.b16 %v291
        %v404 = vunpack.c.l.b16 %v292
        %v405 = vunpack.c.l.b16 %v293
        %v406 = vunpack.c.l.b16 %v294
        %v407 = vunpack.c.l.b16 %v295
        %v408 = vunpack.c.l.b16 %v296
        %v409 = vunpack.c.l.b16 %v297
        %v410 = vunpack.c.l.b16 %v298
        %v411 = vunpack.c.l.b16 %v299
        %v412 = vunpack.c.l.b16 %v300
        %v413 = vunpack.c.l.b16 %v301
        %v414 = vunpack.c.l.b16 %v302
        %v415 = vunpack.c.l.b16 %v303
        %v416 = vunpack.c.l.b16 %v304
        %v417 = vunpack.c.l.b16 %v305
        %v418 = vunpack.c.l.b16 %v306
        %v419 = vunpack.c.l.b16 %v307
        %v420 = vunpack.c.l.b16 %v308
        %v421 = vunpack.c.l.b16 %v309
        %v422 = vpack.c.b16 %v375, %v374
        %v423 = vpack.c.b16 %v377, %v376
        %v424 = vpack.c.b16 %v379, %v378
        %v425 = vpack.c.b16 %v381, %v380
        %v426 = vpack.c.b16 %v383, %v382
        %v427 = vpack.c.b16 %v385, %v384
        %v428 = vpack.c.b16 %v387, %v386
        %v429 = vpack.c.b16 %v389, %v388
        %v430 = vpack.c.b16 %v391, %v390
        %v431 = vpack.c.b16 %v393, %v392
        %v432 = vpack.c.b16 %v395, %v394
        %v433 = vpack.c.b16 %v397, %v396
        %v434 = vpack.c.b16 %v399, %v398
        %v435 = vpack.c.b16 %v401, %v400
        %v436 = vpack.c.b16 %v403, %v402
        %v437 = vpack.c.b16 %v405, %v404
        %v438 = vpack.c.b16 %v407, %v406
        %v439 = vpack.c.b16 %v409, %v408
        %v440 = vpack.c.b16 %v411, %v410
        %v441 = vpack.c.b16 %v413, %v412
        %v442 = vpack.c.b16 %v415, %v414
        %v443 = vpack.c.b16 %v417, %v416
        %v444 = vpack.c.b16 %v419, %v418
        %v445 = vpack.c.b16 %v421, %v420
        %470 = vmatprep.subr.bf16.mxu0 0
        %471 = vmatpush1.bf16.msra.mxu0 %v429
        %472 = vmatprep.subr.bf16.mxu0 0
        %473 = vmatpush1.bf16.msra.mxu0 %v428
        %474 = vmatprep.subr.bf16.mxu0 0
        %475 = vmatpush1.bf16.msra.mxu0 %v427
        %476 = vmatprep.subr.bf16.mxu0 0
        %477 = vmatpush1.bf16.msra.mxu0 %v426
        %478 = vmatprep.subr.bf16.mxu0 0
        %479 = vmatpush1.bf16.msra.mxu0 %v425
        %480 = vmatprep.subr.bf16.mxu0 0
        %481 = vmatpush1.bf16.msra.mxu0 %v424
        %482 = vmatprep.subr.bf16.mxu0 0
        %483 = vmatpush1.bf16.msra.mxu0 %v423
        %484 = vmatprep.subr.bf16.mxu0 0
        %485 = vmatpush1.bf16.msra.mxu0 %v422
        %486 = vmatprep.subr.bf16.mxu0 0
        %487 = vmatpush2.bf16.msra.mxu0 %v437
        %488 = vmatprep.subr.bf16.mxu0 0
        %489 = vmatpush2.bf16.msra.mxu0 %v436
        %490 = vmatprep.subr.bf16.mxu0 0
        %491 = vmatpush2.bf16.msra.mxu0 %v435
        %492 = vmatprep.subr.bf16.mxu0 0
        %493 = vmatpush2.bf16.msra.mxu0 %v434
        %494 = vmatprep.subr.bf16.mxu0 0
        %495 = vmatpush2.bf16.msra.mxu0 %v433
        %496 = vmatprep.subr.bf16.mxu0 0
        %497 = vmatpush2.bf16.msra.mxu0 %v432
        %498 = vmatprep.subr.bf16.mxu0 0
        %499 = vmatpush2.bf16.msra.mxu0 %v431
        %500 = vmatprep.subr.bf16.mxu0 0
        %501 = vmatpush2.bf16.msra.mxu0 %v430
        %502 = vmatprep.mubr.bf16.mxu0 %v321
        %503 = vmatmul.mubr.bf16.gmra.mxu0 %v320
        %v504 = vpop.f32.mrf.mxu0
        %v505 = vadd.f32 0.0, %v504
        %v506 = vpop.f32.mrf.mxu0
        %v507 = vpop.f32.mrf.mxu0
        %v508 = vadd.f32 0.0, %v507
        %v509 = vpop.f32.mrf.mxu0
        %510 = vdwg.mxu0
        %511 = vmatprep.subr.bf16.mxu0 0
        %512 = vmatpush1.bf16.msra.mxu0 %v445
        %513 = vmatprep.subr.bf16.mxu0 0
        %514 = vmatpush1.bf16.msra.mxu0 %v444
        %515 = vmatprep.subr.bf16.mxu0 0
        %516 = vmatpush1.bf16.msra.mxu0 %v443
        %517 = vmatprep.subr.bf16.mxu0 0
        %518 = vmatpush1.bf16.msra.mxu0 %v442
        %519 = vmatprep.subr.bf16.mxu0 0
        %520 = vmatpush1.bf16.msra.mxu0 %v441
        %521 = vmatprep.subr.bf16.mxu0 0
        %522 = vmatpush1.bf16.msra.mxu0 %v440
        %523 = vmatprep.subr.bf16.mxu0 0
        %524 = vmatpush1.bf16.msra.mxu0 %v439
        %525 = vmatprep.subr.bf16.mxu0 0
        %526 = vmatpush1.bf16.msra.mxu0 %v438
        %527 = vmatprep.subr.bf16.mxu0 0
        %528 = vmatpush2.bf16.msra.mxu0 0
        %529 = vmatprep.subr.bf16.mxu0 0
        %530 = vmatpush2.bf16.msra.mxu0 0
        %531 = vmatprep.subr.bf16.mxu0 0
        %532 = vmatpush2.bf16.msra.mxu0 0
        %533 = vmatprep.subr.bf16.mxu0 0
        %534 = vmatpush2.bf16.msra.mxu0 0
        %535 = vmatprep.subr.bf16.mxu0 0
        %536 = vmatpush2.bf16.msra.mxu0 0
        %537 = vmatprep.subr.bf16.mxu0 0
        %538 = vmatpush2.bf16.msra.mxu0 0
        %539 = vmatprep.subr.bf16.mxu0 0
        %540 = vmatpush2.bf16.msra.mxu0 0
        %541 = vmatprep.subr.bf16.mxu0 0
        %542 = vmatpush2.bf16.msra.mxu0 0
        %543 = vmatprep.mubr.bf16.mxu0 0
        %544 = vmatmul.mubr.bf16.gmra.mxu0 %v322
        %v545 = vpop.f32.mrf.mxu0
        %v546 = vadd.f32 %v505, %v545
        %v547 = vpop.f32.mrf.mxu0
        %v548 = vpop.f32.mrf.mxu0
        %v549 = vadd.f32 %v508, %v548
        %v550 = vpop.f32.mrf.mxu0
        %551 = vdwg.mxu0
        %v552 = vadd.f32 %v256, %v546
        %v553 = vadd.f32 %v257, %v549
        %554 = vst [vmem:[#allocation2] sm:$0xff] %v552
        %555 = vst [vmem:[#allocation2 + $0x8] sm:$0xff] %v553
        %p556 = scmp.eq.s32.totalorder %s19, 2
        // Predicated region
        $region63: #{dueling_dqn_forward.6} parent=53 // pred_check
          %p557 = pneg %p556
        $region64: #{dueling_dqn_forward.6} parent=53 // pred_check_branch
          %559 = sbr.rel (%p557) target = $region66
        $region65: #{dueling_dqn_forward.6} parent=53 // pred_region
          %v560 = vld [vmem:[#allocation2] sm:$0xff]
          %v561 = vld [vmem:[#allocation2 + $0x8] sm:$0xff]
          %v562 = vld [vmem:[%s2] sm:$0x1]
          %v564 = vlaneseq
          %v565 = vshrl.u32 %v564, 7
          %v566 = vsub.s32 0, %v565
          %v567 = vrot.slane %v562, %v566
          %v569 = vadd.f32 %v560, %v567
          %v570 = vadd.f32 %v561, %v567
          %v571 = vmax.f32 %v569, 0.0
          %v572 = vmax.f32 %v570, 0.0
          %v573 = vpack.c.bf16 %v572, %v571
          %v575 = vunpack.c.l.b16 %v573
          %v576 = vunpack.c.h.b16 %v573
          %v577 = vpack.c.b16 %v575, %v575
          %v578 = vpack.c.b16 %v576, %v576
          %581 = vst [vmem:[%s247] sm:$0xf] %v577
          %582 = vst [vmem:[%s247 + $0x4] sm:$0xf] %v578
        $region66: #{dueling_dqn_forward.6} parent=53 // pred_fallthru
          _
        %s583 = smul.u32 2, %s18
        %p584 = scmp.lt.s32.totalorder %s583, 1
        %s585 = scalar_select %p584, %s583, 1
        %s586 = smul.addr %s585, 4
        %s587 = scalar_lea.vmem %s3, %s586
        // Predicated region
        $region67: #{dueling_dqn_forward.6} parent=53 // pred_check
          %p588 = pneg %p119
        $region68: #{dueling_dqn_forward.6} parent=53 // pred_check_branch
          %590 = sbr.rel (%p588) target = $region70
        $region69: #{dueling_dqn_forward.6} parent=53 // pred_region
          %s591 = smul.u32 2, %s18
        $region70: #{dueling_dqn_forward.6} parent=53 // pred_fallthru
          _
        // Predicated region
        $region71: #{dueling_dqn_forward.6} parent=53 // pred_check
          %p592 = pneg %p119
        $region72: #{dueling_dqn_forward.6} parent=53 // pred_check_branch
          %594 = sbr.rel (%p592) target = $region74
        $region73: #{dueling_dqn_forward.6} parent=53 // pred_region
          %s595 = smul.u32 2, %s18
          %p596 = scmp.lt.s32.totalorder %s595, 1
          %s597 = scalar_select %p596, %s595, 1
          %s598 = smul.addr %s597, 4
          %s599 = scalar_lea.vmem %s3, %s598
        $region74: #{dueling_dqn_forward.6} parent=53 // pred_fallthru
          _
      $region54: #{dueling_dqn_forward.6} parent=5 // pred_fallthru
        _
      %p600 = scmp.le.s32.totalorder 2, %s9
      // Predicated region
      $region75: #{dueling_dqn_forward.6} parent=5 // pred_check
        %p601 = pneg %p600
      $region76: #{dueling_dqn_forward.6} parent=5 // pred_check_branch
        %603 = sbr.rel (%p601) target = $region78
      $region77: #{dueling_dqn_forward.6} parent=5 // pred_region
        %s604 = ssub.s32 %s9, 2
      $region78: #{dueling_dqn_forward.6} parent=5 // pred_fallthru
        _
    $region6: #{dueling_dqn_forward.6} parent=1 // loop_footer
      %s13 = sadd.s32 1, %s9
    $region7: #{dueling_dqn_forward.6} parent=1 // loop_footer_branch
      %8 = sbr.rel target = $region3
    $region8: #{dueling_dqn_forward.6} parent=1 // loop_exit
      _

// kernel: dueling_dqn_forward.7
$region0: #{dueling_dqn_forward.7}
  #allocation0 [shape = 'u32[]', space=smem, size = 0x4, offset = 0x4, fixed_abs, tag = 'smem constant byte address 0x4 - core index']
  #allocation1 [shape = 'u32[144,128]{1,0:T(1,128)}', space=vmem, size = 0x12000, scoped, tag = 'internal scratch']
  %s0 = inlined_call_operand.vmem [shape: bf16[16,128], index: 0, kind: input, shape index: {}]
  %s1 = inlined_call_operand.vmem [shape: bf16[128,1024], index: 1, kind: input, shape index: {}]
  %s2 = inlined_call_operand.vmem [shape: f32[1,1024], index: 2, kind: input, shape index: {}]
  %s3 = inlined_call_operand.vmem [shape: bf16[1024,128], index: 3, kind: input, shape index: {}]
  %s4 = inlined_call_operand.vmem [shape: f32[1,128], index: 4, kind: input, shape index: {}]
  %s5 = inlined_call_operand.vmem [shape: f32[16,128], index: 5, kind: output, shape index: {}]
  %s6 = sld [smem:[#allocation0]]
  $region30: #{dueling_dqn_forward.7} parent=0
    _
  %s8 = ssub.s32 1, %s6
  %s9 = scalar_select 0, %s8, %s6
  // Predicated region
  $region2: #{dueling_dqn_forward.7} parent=0 // pred_check
    _
  $region3: #{dueling_dqn_forward.7} parent=0 // pred_check_branch
    %11 = sbr.rel (0) target = $region5
  $region4: #{dueling_dqn_forward.7} parent=0 // pred_region
    _
  $region5: #{dueling_dqn_forward.7} parent=0 // pred_fallthru
    _
  // Predicated region
  $region6: #{dueling_dqn_forward.7} parent=0 // pred_check
    _
  $region7: #{dueling_dqn_forward.7} parent=0 // pred_check_branch
    %13 = sbr.rel (0) target = $region9
  $region8: #{dueling_dqn_forward.7} parent=0 // pred_region
    _
  $region9: #{dueling_dqn_forward.7} parent=0 // pred_fallthru
    _
  // Predicated region
  $region10: #{dueling_dqn_forward.7} parent=0 // pred_check
    _
  $region11: #{dueling_dqn_forward.7} parent=0 // pred_check_branch
    %15 = sbr.rel (0) target = $region13
  $region12: #{dueling_dqn_forward.7} parent=0 // pred_region
    _
  $region13: #{dueling_dqn_forward.7} parent=0 // pred_fallthru
    _
  // Predicated region
  $region14: #{dueling_dqn_forward.7} parent=0 // pred_check
    _
  $region15: #{dueling_dqn_forward.7} parent=0 // pred_check_branch
    %17 = sbr.rel (0) target = $region17
  $region16: #{dueling_dqn_forward.7} parent=0 // pred_region
    _
  $region17: #{dueling_dqn_forward.7} parent=0 // pred_fallthru
    _
  // Predicated region
  $region18: #{dueling_dqn_forward.7} parent=0 // pred_check
    _
  $region19: #{dueling_dqn_forward.7} parent=0 // pred_check_branch
    %19 = sbr.rel (0) target = $region21
  $region20: #{dueling_dqn_forward.7} parent=0 // pred_region
    _
  $region21: #{dueling_dqn_forward.7} parent=0 // pred_fallthru
    _
  %v21 = vld [vmem:[%s0] sm:$0xf]
  %v22 = vld [vmem:[%s0 + $0x4] sm:$0xf]
  %v23 = vld [vmem:[%s1] sm:$0xff]
  %v24 = vld [vmem:[%s1 + $0x8] sm:$0xff]
  %v25 = vld [vmem:[%s1 + $0x10] sm:$0xff]
  %v26 = vld [vmem:[%s1 + $0x18] sm:$0xff]
  %v27 = vld [vmem:[%s1 + $0x20] sm:$0xff]
  %v28 = vld [vmem:[%s1 + $0x28] sm:$0xff]
  %v29 = vld [vmem:[%s1 + $0x30] sm:$0xff]
  %v30 = vld [vmem:[%s1 + $0x38] sm:$0xff]
  %v31 = vld [vmem:[%s1 + $0x40] sm:$0xff]
  %v32 = vld [vmem:[%s1 + $0x48] sm:$0xff]
  %v33 = vld [vmem:[%s1 + $0x50] sm:$0xff]
  %v34 = vld [vmem:[%s1 + $0x58] sm:$0xff]
  %v35 = vld [vmem:[%s1 + $0x60] sm:$0xff]
  %v36 = vld [vmem:[%s1 + $0x68] sm:$0xff]
  %v37 = vld [vmem:[%s1 + $0x70] sm:$0xff]
  %v38 = vld [vmem:[%s1 + $0x78] sm:$0xff]
  %v39 = vld [vmem:[%s1 + $0x80] sm:$0xff]
  %v40 = vld [vmem:[%s1 + $0x88] sm:$0xff]
  %v41 = vld [vmem:[%s1 + $0x90] sm:$0xff]
  %v42 = vld [vmem:[%s1 + $0x98] sm:$0xff]
  %v43 = vld [vmem:[%s1 + $0xa0] sm:$0xff]
  %v44 = vld [vmem:[%s1 + $0xa8] sm:$0xff]
  %v45 = vld [vmem:[%s1 + $0xb0] sm:$0xff]
  %v46 = vld [vmem:[%s1 + $0xb8] sm:$0xff]
  %v47 = vld [vmem:[%s1 + $0xc0] sm:$0xff]
  %v48 = vld [vmem:[%s1 + $0xc8] sm:$0xff]
  %v49 = vld [vmem:[%s1 + $0xd0] sm:$0xff]
  %v50 = vld [vmem:[%s1 + $0xd8] sm:$0xff]
  %v51 = vld [vmem:[%s1 + $0xe0] sm:$0xff]
  %v52 = vld [vmem:[%s1 + $0xe8] sm:$0xff]
  %v53 = vld [vmem:[%s1 + $0xf0] sm:$0xff]
  %v54 = vld [vmem:[%s1 + $0xf8] sm:$0xff]
  %v55 = vld [vmem:[%s1 + $0x100] sm:$0xff]
  %v56 = vld [vmem:[%s1 + $0x108] sm:$0xff]
  %v57 = vld [vmem:[%s1 + $0x110] sm:$0xff]
  %v58 = vld [vmem:[%s1 + $0x118] sm:$0xff]
  %v59 = vld [vmem:[%s1 + $0x120] sm:$0xff]
  %v60 = vld [vmem:[%s1 + $0x128] sm:$0xff]
  %v61 = vld [vmem:[%s1 + $0x130] sm:$0xff]
  %v62 = vld [vmem:[%s1 + $0x138] sm:$0xff]
  %v63 = vld [vmem:[%s1 + $0x140] sm:$0xff]
  %v64 = vld [vmem:[%s1 + $0x148] sm:$0xff]
  %v65 = vld [vmem:[%s1 + $0x150] sm:$0xff]
  %v66 = vld [vmem:[%s1 + $0x158] sm:$0xff]
  %v67 = vld [vmem:[%s1 + $0x160] sm:$0xff]
  %v68 = vld [vmem:[%s1 + $0x168] sm:$0xff]
  %v69 = vld [vmem:[%s1 + $0x170] sm:$0xff]
  %v70 = vld [vmem:[%s1 + $0x178] sm:$0xff]
  %v71 = vld [vmem:[%s1 + $0x180] sm:$0xff]
  %v72 = vld [vmem:[%s1 + $0x188] sm:$0xff]
  %v73 = vld [vmem:[%s1 + $0x190] sm:$0xff]
  %v74 = vld [vmem:[%s1 + $0x198] sm:$0xff]
  %v75 = vld [vmem:[%s1 + $0x1a0] sm:$0xff]
  %v76 = vld [vmem:[%s1 + $0x1a8] sm:$0xff]
  %v77 = vld [vmem:[%s1 + $0x1b0] sm:$0xff]
  %v78 = vld [vmem:[%s1 + $0x1b8] sm:$0xff]
  %v79 = vld [vmem:[%s1 + $0x1c0] sm:$0xff]
  %v80 = vld [vmem:[%s1 + $0x1c8] sm:$0xff]
  %v81 = vld [vmem:[%s1 + $0x1d0] sm:$0xff]
  %v82 = vld [vmem:[%s1 + $0x1d8] sm:$0xff]
  %v83 = vld [vmem:[%s1 + $0x1e0] sm:$0xff]
  %v84 = vld [vmem:[%s1 + $0x1e8] sm:$0xff]
  %v85 = vld [vmem:[%s1 + $0x1f0] sm:$0xff]
  %v86 = vld [vmem:[%s1 + $0x1f8] sm:$0xff]
  %v87 = vld [vmem:[%s2] sm:$0xff]
  %v89 = vlaneseq
  %v90 = vshrl.u32 %v89, 7
  %v91 = vsub.s32 0, %v90
  %v92 = vrot.slane %v87, %v91
  %v93 = vlaneseq
  %v94 = vshrl.u32 %v93, 7
  %v95 = vsub.s32 1, %v94
  %v96 = vrot.slane %v87, %v95
  %v97 = vlaneseq
  %v98 = vshrl.u32 %v97, 7
  %v99 = vsub.s32 2, %v98
  %v100 = vrot.slane %v87, %v99
  %v101 = vlaneseq
  %v102 = vshrl.u32 %v101, 7
  %v103 = vsub.s32 3, %v102
  %v104 = vrot.slane %v87, %v103
  %v105 = vlaneseq
  %v106 = vshrl.u32 %v105, 7
  %v107 = vsub.s32 4, %v106
  %v108 = vrot.slane %v87, %v107
  %v109 = vlaneseq
  %v110 = vshrl.u32 %v109, 7
  %v111 = vsub.s32 5, %v110
  %v112 = vrot.slane %v87, %v111
  %v113 = vlaneseq
  %v114 = vshrl.u32 %v113, 7
  %v115 = vsub.s32 6, %v114
  %v116 = vrot.slane %v87, %v115
  %v117 = vlaneseq
  %v118 = vshrl.u32 %v117, 7
  %v119 = vsub.s32 7, %v118
  %v120 = vrot.slane %v87, %v119
  %v131 = vunpack.c.l.b16 %v21
  %v132 = vunpack.c.l.b16 %v22
  %v133 = vpack.c.b16 %v132, %v131
  %v199 = vunpack.c.l.b16 %v23
  %v200 = vunpack.c.h.b16 %v23
  %v201 = vunpack.c.l.b16 %v24
  %v202 = vunpack.c.h.b16 %v24
  %v203 = vunpack.c.l.b16 %v25
  %v204 = vunpack.c.h.b16 %v25
  %v205 = vunpack.c.l.b16 %v26
  %v206 = vunpack.c.h.b16 %v26
  %v207 = vunpack.c.l.b16 %v27
  %v208 = vunpack.c.h.b16 %v27
  %v209 = vunpack.c.l.b16 %v28
  %v210 = vunpack.c.h.b16 %v28
  %v211 = vunpack.c.l.b16 %v29
  %v212 = vunpack.c.h.b16 %v29
  %v213 = vunpack.c.l.b16 %v30
  %v214 = vunpack.c.h.b16 %v30
  %v215 = vunpack.c.l.b16 %v31
  %v216 = vunpack.c.h.b16 %v31
  %v217 = vunpack.c.l.b16 %v32
  %v218 = vunpack.c.h.b16 %v32
  %v219 = vunpack.c.l.b16 %v33
  %v220 = vunpack.c.h.b16 %v33
  %v221 = vunpack.c.l.b16 %v34
  %v222 = vunpack.c.h.b16 %v34
  %v223 = vunpack.c.l.b16 %v35
  %v224 = vunpack.c.h.b16 %v35
  %v225 = vunpack.c.l.b16 %v36
  %v226 = vunpack.c.h.b16 %v36
  %v227 = vunpack.c.l.b16 %v37
  %v228 = vunpack.c.h.b16 %v37
  %v229 = vunpack.c.l.b16 %v38
  %v230 = vunpack.c.h.b16 %v38
  %v231 = vunpack.c.l.b16 %v39
  %v232 = vunpack.c.h.b16 %v39
  %v233 = vunpack.c.l.b16 %v40
  %v234 = vunpack.c.h.b16 %v40
  %v235 = vunpack.c.l.b16 %v41
  %v236 = vunpack.c.h.b16 %v41
  %v237 = vunpack.c.l.b16 %v42
  %v238 = vunpack.c.h.b16 %v42
  %v239 = vunpack.c.l.b16 %v43
  %v240 = vunpack.c.h.b16 %v43
  %v241 = vunpack.c.l.b16 %v44
  %v242 = vunpack.c.h.b16 %v44
  %v243 = vunpack.c.l.b16 %v45
  %v244 = vunpack.c.h.b16 %v45
  %v245 = vunpack.c.l.b16 %v46
  %v246 = vunpack.c.h.b16 %v46
  %v247 = vunpack.c.l.b16 %v47
  %v248 = vunpack.c.h.b16 %v47
  %v249 = vunpack.c.l.b16 %v48
  %v250 = vunpack.c.h.b16 %v48
  %v251 = vunpack.c.l.b16 %v49
  %v252 = vunpack.c.h.b16 %v49
  %v253 = vunpack.c.l.b16 %v50
  %v254 = vunpack.c.h.b16 %v50
  %v255 = vunpack.c.l.b16 %v51
  %v256 = vunpack.c.h.b16 %v51
  %v257 = vunpack.c.l.b16 %v52
  %v258 = vunpack.c.h.b16 %v52
  %v259 = vunpack.c.l.b16 %v53
  %v260 = vunpack.c.h.b16 %v53
  %v261 = vunpack.c.l.b16 %v54
  %v262 = vunpack.c.h.b16 %v54
  %v263 = vunpack.c.l.b16 %v55
  %v264 = vunpack.c.h.b16 %v55
  %v265 = vunpack.c.l.b16 %v56
  %v266 = vunpack.c.h.b16 %v56
  %v267 = vunpack.c.l.b16 %v57
  %v268 = vunpack.c.h.b16 %v57
  %v269 = vunpack.c.l.b16 %v58
  %v270 = vunpack.c.h.b16 %v58
  %v271 = vunpack.c.l.b16 %v59
  %v272 = vunpack.c.h.b16 %v59
  %v273 = vunpack.c.l.b16 %v60
  %v274 = vunpack.c.h.b16 %v60
  %v275 = vunpack.c.l.b16 %v61
  %v276 = vunpack.c.h.b16 %v61
  %v277 = vunpack.c.l.b16 %v62
  %v278 = vunpack.c.h.b16 %v62
  %v279 = vunpack.c.l.b16 %v63
  %v280 = vunpack.c.h.b16 %v63
  %v281 = vunpack.c.l.b16 %v64
  %v282 = vunpack.c.h.b16 %v64
  %v283 = vunpack.c.l.b16 %v65
  %v284 = vunpack.c.h.b16 %v65
  %v285 = vunpack.c.l.b16 %v66
  %v286 = vunpack.c.h.b16 %v66
  %v287 = vunpack.c.l.b16 %v67
  %v288 = vunpack.c.h.b16 %v67
  %v289 = vunpack.c.l.b16 %v68
  %v290 = vunpack.c.h.b16 %v68
  %v291 = vunpack.c.l.b16 %v69
  %v292 = vunpack.c.h.b16 %v69
  %v293 = vunpack.c.l.b16 %v70
  %v294 = vunpack.c.h.b16 %v70
  %v295 = vunpack.c.l.b16 %v71
  %v296 = vunpack.c.h.b16 %v71
  %v297 = vunpack.c.l.b16 %v72
  %v298 = vunpack.c.h.b16 %v72
  %v299 = vunpack.c.l.b16 %v73
  %v300 = vunpack.c.h.b16 %v73
  %v301 = vunpack.c.l.b16 %v74
  %v302 = vunpack.c.h.b16 %v74
  %v303 = vunpack.c.l.b16 %v75
  %v304 = vunpack.c.h.b16 %v75
  %v305 = vunpack.c.l.b16 %v76
  %v306 = vunpack.c.h.b16 %v76
  %v307 = vunpack.c.l.b16 %v77
  %v308 = vunpack.c.h.b16 %v77
  %v309 = vunpack.c.l.b16 %v78
  %v310 = vunpack.c.h.b16 %v78
  %v311 = vunpack.c.l.b16 %v79
  %v312 = vunpack.c.h.b16 %v79
  %v313 = vunpack.c.l.b16 %v80
  %v314 = vunpack.c.h.b16 %v80
  %v315 = vunpack.c.l.b16 %v81
  %v316 = vunpack.c.h.b16 %v81
  %v317 = vunpack.c.l.b16 %v82
  %v318 = vunpack.c.h.b16 %v82
  %v319 = vunpack.c.l.b16 %v83
  %v320 = vunpack.c.h.b16 %v83
  %v321 = vunpack.c.l.b16 %v84
  %v322 = vunpack.c.h.b16 %v84
  %v323 = vunpack.c.l.b16 %v85
  %v324 = vunpack.c.h.b16 %v85
  %v325 = vunpack.c.l.b16 %v86
  %v326 = vunpack.c.h.b16 %v86
  %v327 = vpack.c.b16 %v207, %v199
  %v328 = vpack.c.b16 %v208, %v200
  %v329 = vpack.c.b16 %v209, %v201
  %v330 = vpack.c.b16 %v210, %v202
  %v331 = vpack.c.b16 %v211, %v203
  %v332 = vpack.c.b16 %v212, %v204
  %v333 = vpack.c.b16 %v213, %v205
  %v334 = vpack.c.b16 %v214, %v206
  %v335 = vpack.c.b16 %v223, %v215
  %v336 = vpack.c.b16 %v224, %v216
  %v337 = vpack.c.b16 %v225, %v217
  %v338 = vpack.c.b16 %v226, %v218
  %v339 = vpack.c.b16 %v227, %v219
  %v340 = vpack.c.b16 %v228, %v220
  %v341 = vpack.c.b16 %v229, %v221
  %v342 = vpack.c.b16 %v230, %v222
  %v343 = vpack.c.b16 %v239, %v231
  %v344 = vpack.c.b16 %v240, %v232
  %v345 = vpack.c.b16 %v241, %v233
  %v346 = vpack.c.b16 %v242, %v234
  %v347 = vpack.c.b16 %v243, %v235
  %v348 = vpack.c.b16 %v244, %v236
  %v349 = vpack.c.b16 %v245, %v237
  %v350 = vpack.c.b16 %v246, %v238
  %v351 = vpack.c.b16 %v255, %v247
  %v352 = vpack.c.b16 %v256, %v248
  %v353 = vpack.c.b16 %v257, %v249
  %v354 = vpack.c.b16 %v258, %v250
  %v355 = vpack.c.b16 %v259, %v251
  %v356 = vpack.c.b16 %v260, %v252
  %v357 = vpack.c.b16 %v261, %v253
  %v358 = vpack.c.b16 %v262, %v254
  %v359 = vpack.c.b16 %v271, %v263
  %v360 = vpack.c.b16 %v272, %v264
  %v361 = vpack.c.b16 %v273, %v265
  %v362 = vpack.c.b16 %v274, %v266
  %v363 = vpack.c.b16 %v275, %v267
  %v364 = vpack.c.b16 %v276, %v268
  %v365 = vpack.c.b16 %v277, %v269
  %v366 = vpack.c.b16 %v278, %v270
  %v367 = vpack.c.b16 %v287, %v279
  %v368 = vpack.c.b16 %v288, %v280
  %v369 = vpack.c.b16 %v289, %v281
  %v370 = vpack.c.b16 %v290, %v282
  %v371 = vpack.c.b16 %v291, %v283
  %v372 = vpack.c.b16 %v292, %v284
  %v373 = vpack.c.b16 %v293, %v285
  %v374 = vpack.c.b16 %v294, %v286
  %v375 = vpack.c.b16 %v303, %v295
  %v376 = vpack.c.b16 %v304, %v296
  %v377 = vpack.c.b16 %v305, %v297
  %v378 = vpack.c.b16 %v306, %v298
  %v379 = vpack.c.b16 %v307, %v299
  %v380 = vpack.c.b16 %v308, %v300
  %v381 = vpack.c.b16 %v309, %v301
  %v382 = vpack.c.b16 %v310, %v302
  %v383 = vpack.c.b16 %v319, %v311
  %v384 = vpack.c.b16 %v320, %v312
  %v385 = vpack.c.b16 %v321, %v313
  %v386 = vpack.c.b16 %v322, %v314
  %v387 = vpack.c.b16 %v323, %v315
  %v388 = vpack.c.b16 %v324, %v316
  %v389 = vpack.c.b16 %v325, %v317
  %v390 = vpack.c.b16 %v326, %v318
  %455 = vmatprep.subr.bf16.mxu0 %v384
  %456 = vmatpush1.bf16.msra.mxu0 %v383
  %457 = vmatprep.subr.bf16.mxu0 %v376
  %458 = vmatpush1.bf16.msra.mxu0 %v375
  %459 = vmatprep.subr.bf16.mxu0 %v368
  %460 = vmatpush1.bf16.msra.mxu0 %v367
  %461 = vmatprep.subr.bf16.mxu0 %v360
  %462 = vmatpush1.bf16.msra.mxu0 %v359
  %463 = vmatprep.subr.bf16.mxu0 %v352
  %464 = vmatpush1.bf16.msra.mxu0 %v351
  %465 = vmatprep.subr.bf16.mxu0 %v344
  %466 = vmatpush1.bf16.msra.mxu0 %v343
  %467 = vmatprep.subr.bf16.mxu0 %v336
  %468 = vmatpush1.bf16.msra.mxu0 %v335
  %469 = vmatprep.subr.bf16.mxu0 %v328
  %470 = vmatpush1.bf16.msra.mxu0 %v327
  %471 = vmatprep.subr.bf16.mxu0 0
  %472 = vmatpush2.bf16.msra.mxu0 0
  %473 = vmatprep.subr.bf16.mxu0 0
  %474 = vmatpush2.bf16.msra.mxu0 0
  %475 = vmatprep.subr.bf16.mxu0 0
  %476 = vmatpush2.bf16.msra.mxu0 0
  %477 = vmatprep.subr.bf16.mxu0 0
  %478 = vmatpush2.bf16.msra.mxu0 0
  %479 = vmatprep.subr.bf16.mxu0 0
  %480 = vmatpush2.bf16.msra.mxu0 0
  %481 = vmatprep.subr.bf16.mxu0 0
  %482 = vmatpush2.bf16.msra.mxu0 0
  %483 = vmatprep.subr.bf16.mxu0 0
  %484 = vmatpush2.bf16.msra.mxu0 0
  %485 = vmatprep.subr.bf16.mxu0 0
  %486 = vmatpush2.bf16.msra.mxu0 0
  %487 = vmatprep.mubr.bf16.mxu0 0
  %488 = vmatmul.mubr.bf16.gmra.mxu0 %v133
  %v489 = vpop.f32.mrf.mxu0
  %v490 = vadd.f32 %v92, %v489
  %v491 = vpop.f32.mrf.mxu0
  %v492 = vadd.f32 %v96, %v491
  %v493 = vpop.f32.mrf.mxu0
  %v494 = vadd.f32 %v92, %v493
  %v495 = vpop.f32.mrf.mxu0
  %v496 = vadd.f32 %v96, %v495
  %497 = vdwg.mxu0
  %498 = vmatprep.subr.bf16.mxu0 %v386
  %499 = vmatpush1.bf16.msra.mxu0 %v385
  %500 = vmatprep.subr.bf16.mxu0 %v378
  %501 = vmatpush1.bf16.msra.mxu0 %v377
  %502 = vmatprep.subr.bf16.mxu0 %v370
  %503 = vmatpush1.bf16.msra.mxu0 %v369
  %504 = vmatprep.subr.bf16.mxu0 %v362
  %505 = vmatpush1.bf16.msra.mxu0 %v361
  %506 = vmatprep.subr.bf16.mxu0 %v354
  %507 = vmatpush1.bf16.msra.mxu0 %v353
  %508 = vmatprep.subr.bf16.mxu0 %v346
  %509 = vmatpush1.bf16.msra.mxu0 %v345
  %510 = vmatprep.subr.bf16.mxu0 %v338
  %511 = vmatpush1.bf16.msra.mxu0 %v337
  %512 = vmatprep.subr.bf16.mxu0 %v330
  %513 = vmatpush1.bf16.msra.mxu0 %v329
  %514 = vmatprep.subr.bf16.mxu0 0
  %515 = vmatpush2.bf16.msra.mxu0 0
  %516 = vmatprep.subr.bf16.mxu0 0
  %517 = vmatpush2.bf16.msra.mxu0 0
  %518 = vmatprep.subr.bf16.mxu0 0
  %519 = vmatpush2.bf16.msra.mxu0 0
  %520 = vmatprep.subr.bf16.mxu0 0
  %521 = vmatpush2.bf16.msra.mxu0 0
  %522 = vmatprep.subr.bf16.mxu0 0
  %523 = vmatpush2.bf16.msra.mxu0 0
  %524 = vmatprep.subr.bf16.mxu0 0
  %525 = vmatpush2.bf16.msra.mxu0 0
  %526 = vmatprep.subr.bf16.mxu0 0
  %527 = vmatpush2.bf16.msra.mxu0 0
  %528 = vmatprep.subr.bf16.mxu0 0
  %529 = vmatpush2.bf16.msra.mxu0 0
  %530 = vmatprep.mubr.bf16.mxu0 0
  %531 = vmatmul.mubr.bf16.gmra.mxu0 %v133
  %v532 = vpop.f32.mrf.mxu0
  %v533 = vadd.f32 %v100, %v532
  %v534 = vpop.f32.mrf.mxu0
  %v535 = vadd.f32 %v104, %v534
  %v536 = vpop.f32.mrf.mxu0
  %v537 = vadd.f32 %v100, %v536
  %v538 = vpop.f32.mrf.mxu0
  %v539 = vadd.f32 %v104, %v538
  %540 = vdwg.mxu0
  %541 = vmatprep.subr.bf16.mxu0 %v388
  %542 = vmatpush1.bf16.msra.mxu0 %v387
  %543 = vmatprep.subr.bf16.mxu0 %v380
  %544 = vmatpush1.bf16.msra.mxu0 %v379
  %545 = vmatprep.subr.bf16.mxu0 %v372
  %546 = vmatpush1.bf16.msra.mxu0 %v371
  %547 = vmatprep.subr.bf16.mxu0 %v364
  %548 = vmatpush1.bf16.msra.mxu0 %v363
  %549 = vmatprep.subr.bf16.mxu0 %v356
  %550 = vmatpush1.bf16.msra.mxu0 %v355
  %551 = vmatprep.subr.bf16.mxu0 %v348
  %552 = vmatpush1.bf16.msra.mxu0 %v347
  %553 = vmatprep.subr.bf16.mxu0 %v340
  %554 = vmatpush1.bf16.msra.mxu0 %v339
  %555 = vmatprep.subr.bf16.mxu0 %v332
  %556 = vmatpush1.bf16.msra.mxu0 %v331
  %557 = vmatprep.subr.bf16.mxu0 0
  %558 = vmatpush2.bf16.msra.mxu0 0
  %559 = vmatprep.subr.bf16.mxu0 0
  %560 = vmatpush2.bf16.msra.mxu0 0
  %561 = vmatprep.subr.bf16.mxu0 0
  %562 = vmatpush2.bf16.msra.mxu0 0
  %563 = vmatprep.subr.bf16.mxu0 0
  %564 = vmatpush2.bf16.msra.mxu0 0
  %565 = vmatprep.subr.bf16.mxu0 0
  %566 = vmatpush2.bf16.msra.mxu0 0
  %567 = vmatprep.subr.bf16.mxu0 0
  %568 = vmatpush2.bf16.msra.mxu0 0
  %569 = vmatprep.subr.bf16.mxu0 0
  %570 = vmatpush2.bf16.msra.mxu0 0
  %571 = vmatprep.subr.bf16.mxu0 0
  %572 = vmatpush2.bf16.msra.mxu0 0
  %573 = vmatprep.mubr.bf16.mxu0 0
  %574 = vmatmul.mubr.bf16.gmra.mxu0 %v133
  %v575 = vpop.f32.mrf.mxu0
  %v576 = vadd.f32 %v108, %v575
  %v577 = vpop.f32.mrf.mxu0
  %v578 = vadd.f32 %v112, %v577
  %v579 = vpop.f32.mrf.mxu0
  %v580 = vadd.f32 %v108, %v579
  %v581 = vpop.f32.mrf.mxu0
  %v582 = vadd.f32 %v112, %v581
  %583 = vdwg.mxu0
  %584 = vmatprep.subr.bf16.mxu0 %v390
  %585 = vmatpush1.bf16.msra.mxu0 %v389
  %586 = vmatprep.subr.bf16.mxu0 %v382
  %587 = vmatpush1.bf16.msra.mxu0 %v381
  %588 = vmatprep.subr.bf16.mxu0 %v374
  %589 = vmatpush1.bf16.msra.mxu0 %v373
  %590 = vmatprep.subr.bf16.mxu0 %v366
  %591 = vmatpush1.bf16.msra.mxu0 %v365
  %592 = vmatprep.subr.bf16.mxu0 %v358
  %593 = vmatpush1.bf16.msra.mxu0 %v357
  %594 = vmatprep.subr.bf16.mxu0 %v350
  %595 = vmatpush1.bf16.msra.mxu0 %v349
  %596 = vmatprep.subr.bf16.mxu0 %v342
  %597 = vmatpush1.bf16.msra.mxu0 %v341
  %598 = vmatprep.subr.bf16.mxu0 %v334
  %599 = vmatpush1.bf16.msra.mxu0 %v333
  %600 = vmatprep.subr.bf16.mxu0 0
  %601 = vmatpush2.bf16.msra.mxu0 0
  %602 = vmatprep.subr.bf16.mxu0 0
  %603 = vmatpush2.bf16.msra.mxu0 0
  %604 = vmatprep.subr.bf16.mxu0 0
  %605 = vmatpush2.bf16.msra.mxu0 0
  %606 = vmatprep.subr.bf16.mxu0 0
  %607 = vmatpush2.bf16.msra.mxu0 0
  %608 = vmatprep.subr.bf16.mxu0 0
  %609 = vmatpush2.bf16.msra.mxu0 0
  %610 = vmatprep.subr.bf16.mxu0 0
  %611 = vmatpush2.bf16.msra.mxu0 0
  %612 = vmatprep.subr.bf16.mxu0 0
  %613 = vmatpush2.bf16.msra.mxu0 0
  %614 = vmatprep.subr.bf16.mxu0 0
  %615 = vmatpush2.bf16.msra.mxu0 0
  %616 = vmatprep.mubr.bf16.mxu0 0
  %617 = vmatmul.mubr.bf16.gmra.mxu0 %v133
  %v618 = vpop.f32.mrf.mxu0
  %v619 = vadd.f32 %v116, %v618
  %v620 = vpop.f32.mrf.mxu0
  %v621 = vadd.f32 %v120, %v620
  %v622 = vpop.f32.mrf.mxu0
  %v623 = vadd.f32 %v116, %v622
  %v624 = vpop.f32.mrf.mxu0
  %v625 = vadd.f32 %v120, %v624
  %626 = vdwg.mxu0
  %v627 = vmax.f32 %v490, 0.0
  %v628 = vmax.f32 %v492, 0.0
  %v629 = vmax.f32 %v533, 0.0
  %v630 = vmax.f32 %v535, 0.0
  %v631 = vmax.f32 %v576, 0.0
  %v632 = vmax.f32 %v578, 0.0
  %v633 = vmax.f32 %v619, 0.0
  %v634 = vmax.f32 %v621, 0.0
  %v635 = vmax.f32 %v494, 0.0
  %v636 = vmax.f32 %v496, 0.0
  %v637 = vmax.f32 %v537, 0.0
  %v638 = vmax.f32 %v539, 0.0
  %v639 = vmax.f32 %v580, 0.0
  %v640 = vmax.f32 %v582, 0.0
  %v641 = vmax.f32 %v623, 0.0
  %v642 = vmax.f32 %v625, 0.0
  %v643 = vpack.c.bf16 %v635, %v627
  %v644 = vpack.c.bf16 %v636, %v628
  %v645 = vpack.c.bf16 %v637, %v629
  %v646 = vpack.c.bf16 %v638, %v630
  %v647 = vpack.c.bf16 %v639, %v631
  %v648 = vpack.c.bf16 %v640, %v632
  %v649 = vpack.c.bf16 %v641, %v633
  %v650 = vpack.c.bf16 %v642, %v634
  %v651 = vld [vmem:[%s3] sm:$0xf]
  %v652 = vld [vmem:[%s3 + $0x4] sm:$0xf]
  %v653 = vld [vmem:[%s3 + $0x8] sm:$0xf]
  %v654 = vld [vmem:[%s3 + $0xc] sm:$0xf]
  %v655 = vld [vmem:[%s3 + $0x10] sm:$0xf]
  %v656 = vld [vmem:[%s3 + $0x14] sm:$0xf]
  %v657 = vld [vmem:[%s3 + $0x18] sm:$0xf]
  %v658 = vld [vmem:[%s3 + $0x1c] sm:$0xf]
  %v659 = vld [vmem:[%s3 + $0x20] sm:$0xf]
  %v660 = vld [vmem:[%s3 + $0x24] sm:$0xf]
  %v661 = vld [vmem:[%s3 + $0x28] sm:$0xf]
  %v662 = vld [vmem:[%s3 + $0x2c] sm:$0xf]
  %v663 = vld [vmem:[%s3 + $0x30] sm:$0xf]
  %v664 = vld [vmem:[%s3 + $0x34] sm:$0xf]
  %v665 = vld [vmem:[%s3 + $0x38] sm:$0xf]
  %v666 = vld [vmem:[%s3 + $0x3c] sm:$0xf]
  %v667 = vld [vmem:[%s3 + $0x40] sm:$0xf]
  %v668 = vld [vmem:[%s3 + $0x44] sm:$0xf]
  %v669 = vld [vmem:[%s3 + $0x48] sm:$0xf]
  %v670 = vld [vmem:[%s3 + $0x4c] sm:$0xf]
  %v671 = vld [vmem:[%s3 + $0x50] sm:$0xf]
  %v672 = vld [vmem:[%s3 + $0x54] sm:$0xf]
  %v673 = vld [vmem:[%s3 + $0x58] sm:$0xf]
  %v674 = vld [vmem:[%s3 + $0x5c] sm:$0xf]
  %v675 = vld [vmem:[%s3 + $0x60] sm:$0xf]
  %v676 = vld [vmem:[%s3 + $0x64] sm:$0xf]
  %v677 = vld [vmem:[%s3 + $0x68] sm:$0xf]
  %v678 = vld [vmem:[%s3 + $0x6c] sm:$0xf]
  %v679 = vld [vmem:[%s3 + $0x70] sm:$0xf]
  %v680 = vld [vmem:[%s3 + $0x74] sm:$0xf]
  %v681 = vld [vmem:[%s3 + $0x78] sm:$0xf]
  %v682 = vld [vmem:[%s3 + $0x7c] sm:$0xf]
  %v683 = vld [vmem:[%s3 + $0x80] sm:$0xf]
  %v684 = vld [vmem:[%s3 + $0x84] sm:$0xf]
  %v685 = vld [vmem:[%s3 + $0x88] sm:$0xf]
  %v686 = vld [vmem:[%s3 + $0x8c] sm:$0xf]
  %v687 = vld [vmem:[%s3 + $0x90] sm:$0xf]
  %v688 = vld [vmem:[%s3 + $0x94] sm:$0xf]
  %v689 = vld [vmem:[%s3 + $0x98] sm:$0xf]
  %v690 = vld [vmem:[%s3 + $0x9c] sm:$0xf]
  %v691 = vld [vmem:[%s3 + $0xa0] sm:$0xf]
  %v692 = vld [vmem:[%s3 + $0xa4] sm:$0xf]
  %v693 = vld [vmem:[%s3 + $0xa8] sm:$0xf]
  %v694 = vld [vmem:[%s3 + $0xac] sm:$0xf]
  %v695 = vld [vmem:[%s3 + $0xb0] sm:$0xf]
  %v696 = vld [vmem:[%s3 + $0xb4] sm:$0xf]
  %v697 = vld [vmem:[%s3 + $0xb8] sm:$0xf]
  %v698 = vld [vmem:[%s3 + $0xbc] sm:$0xf]
  %v699 = vld [vmem:[%s3 + $0xc0] sm:$0xf]
  %v700 = vld [vmem:[%s3 + $0xc4] sm:$0xf]
  %v701 = vld [vmem:[%s3 + $0xc8] sm:$0xf]
  %v702 = vld [vmem:[%s3 + $0xcc] sm:$0xf]
  %v703 = vld [vmem:[%s3 + $0xd0] sm:$0xf]
  %v704 = vld [vmem:[%s3 + $0xd4] sm:$0xf]
  %v705 = vld [vmem:[%s3 + $0xd8] sm:$0xf]
  %v706 = vld [vmem:[%s3 + $0xdc] sm:$0xf]
  %v707 = vld [vmem:[%s3 + $0xe0] sm:$0xf]
  %v708 = vld [vmem:[%s3 + $0xe4] sm:$0xf]
  %v709 = vld [vmem:[%s3 + $0xe8] sm:$0xf]
  %v710 = vld [vmem:[%s3 + $0xec] sm:$0xf]
  %v711 = vld [vmem:[%s3 + $0xf0] sm:$0xf]
  %v712 = vld [vmem:[%s3 + $0xf4] sm:$0xf]
  %v713 = vld [vmem:[%s3 + $0xf8] sm:$0xf]
  %v714 = vld [vmem:[%s3 + $0xfc] sm:$0xf]
  %v715 = vld [vmem:[%s3 + $0x100] sm:$0xf]
  %v716 = vld [vmem:[%s3 + $0x104] sm:$0xf]
  %v717 = vld [vmem:[%s3 + $0x108] sm:$0xf]
  %v718 = vld [vmem:[%s3 + $0x10c] sm:$0xf]
  %v719 = vld [vmem:[%s3 + $0x110] sm:$0xf]
  %v720 = vld [vmem:[%s3 + $0x114] sm:$0xf]
  %v721 = vld [vmem:[%s3 + $0x118] sm:$0xf]
  %v722 = vld [vmem:[%s3 + $0x11c] sm:$0xf]
  %v723 = vld [vmem:[%s3 + $0x120] sm:$0xf]
  %v724 = vld [vmem:[%s3 + $0x124] sm:$0xf]
  %v725 = vld [vmem:[%s3 + $0x128] sm:$0xf]
  %v726 = vld [vmem:[%s3 + $0x12c] sm:$0xf]
  %v727 = vld [vmem:[%s3 + $0x130] sm:$0xf]
  %v728 = vld [vmem:[%s3 + $0x134] sm:$0xf]
  %v729 = vld [vmem:[%s3 + $0x138] sm:$0xf]
  %v730 = vld [vmem:[%s3 + $0x13c] sm:$0xf]
  %v731 = vld [vmem:[%s3 + $0x140] sm:$0xf]
  %v732 = vld [vmem:[%s3 + $0x144] sm:$0xf]
  %v733 = vld [vmem:[%s3 + $0x148] sm:$0xf]
  %v734 = vld [vmem:[%s3 + $0x14c] sm:$0xf]
  %v735 = vld [vmem:[%s3 + $0x150] sm:$0xf]
  %v736 = vld [vmem:[%s3 + $0x154] sm:$0xf]
  %v737 = vld [vmem:[%s3 + $0x158] sm:$0xf]
  %v738 = vld [vmem:[%s3 + $0x15c] sm:$0xf]
  %v739 = vld [vmem:[%s3 + $0x160] sm:$0xf]
  %v740 = vld [vmem:[%s3 + $0x164] sm:$0xf]
  %v741 = vld [vmem:[%s3 + $0x168] sm:$0xf]
  %v742 = vld [vmem:[%s3 + $0x16c] sm:$0xf]
  %v743 = vld [vmem:[%s3 + $0x170] sm:$0xf]
  %v744 = vld [vmem:[%s3 + $0x174] sm:$0xf]
  %v745 = vld [vmem:[%s3 + $0x178] sm:$0xf]
  %v746 = vld [vmem:[%s3 + $0x17c] sm:$0xf]
  %v747 = vld [vmem:[%s3 + $0x180] sm:$0xf]
  %v748 = vld [vmem:[%s3 + $0x184] sm:$0xf]
  %v749 = vld [vmem:[%s3 + $0x188] sm:$0xf]
  %v750 = vld [vmem:[%s3 + $0x18c] sm:$0xf]
  %v751 = vld [vmem:[%s3 + $0x190] sm:$0xf]
  %v752 = vld [vmem:[%s3 + $0x194] sm:$0xf]
  %v753 = vld [vmem:[%s3 + $0x198] sm:$0xf]
  %v754 = vld [vmem:[%s3 + $0x19c] sm:$0xf]
  %v755 = vld [vmem:[%s3 + $0x1a0] sm:$0xf]
  %v756 = vld [vmem:[%s3 + $0x1a4] sm:$0xf]
  %v757 = vld [vmem:[%s3 + $0x1a8] sm:$0xf]
  %v758 = vld [vmem:[%s3 + $0x1ac] sm:$0xf]
  %v759 = vld [vmem:[%s3 + $0x1b0] sm:$0xf]
  %v760 = vld [vmem:[%s3 + $0x1b4] sm:$0xf]
  %v761 = vld [vmem:[%s3 + $0x1b8] sm:$0xf]
  %v762 = vld [vmem:[%s3 + $0x1bc] sm:$0xf]
  %v763 = vld [vmem:[%s3 + $0x1c0] sm:$0xf]
  %v764 = vld [vmem:[%s3 + $0x1c4] sm:$0xf]
  %v765 = vld [vmem:[%s3 + $0x1c8] sm:$0xf]
  %v766 = vld [vmem:[%s3 + $0x1cc] sm:$0xf]
  %v767 = vld [vmem:[%s3 + $0x1d0] sm:$0xf]
  %v768 = vld [vmem:[%s3 + $0x1d4] sm:$0xf]
  %v769 = vld [vmem:[%s3 + $0x1d8] sm:$0xf]
  %v770 = vld [vmem:[%s3 + $0x1dc] sm:$0xf]
  %v771 = vld [vmem:[%s3 + $0x1e0] sm:$0xf]
  %v772 = vld [vmem:[%s3 + $0x1e4] sm:$0xf]
  %v773 = vld [vmem:[%s3 + $0x1e8] sm:$0xf]
  %v774 = vld [vmem:[%s3 + $0x1ec] sm:$0xf]
  %v775 = vld [vmem:[%s3 + $0x1f0] sm:$0xf]
  %v776 = vld [vmem:[%s3 + $0x1f4] sm:$0xf]
  %v777 = vld [vmem:[%s3 + $0x1f8] sm:$0xf]
  %v778 = vld [vmem:[%s3 + $0x1fc] sm:$0xf]
  %v779 = vld [vmem:[%s4] sm:$0x1]
  %v781 = vlaneseq
  %v782 = vshrl.u32 %v781, 7
  %v783 = vsub.s32 0, %v782
  %v784 = vrot.slane %v779, %v783
  %v914 = vunpack.c.l.b16 %v651
  %v915 = vunpack.c.l.b16 %v652
  %v916 = vunpack.c.l.b16 %v653
  %v917 = vunpack.c.l.b16 %v654
  %v918 = vunpack.c.l.b16 %v655
  %v919 = vunpack.c.l.b16 %v656
  %v920 = vunpack.c.l.b16 %v657
  %v921 = vunpack.c.l.b16 %v658
  %v922 = vunpack.c.l.b16 %v659
  %v923 = vunpack.c.l.b16 %v660
  %v924 = vunpack.c.l.b16 %v661
  %v925 = vunpack.c.l.b16 %v662
  %v926 = vunpack.c.l.b16 %v663
  %v927 = vunpack.c.l.b16 %v664
  %v928 = vunpack.c.l.b16 %v665
  %v929 = vunpack.c.l.b16 %v666
  %v930 = vunpack.c.l.b16 %v667
  %v931 = vunpack.c.l.b16 %v668
  %v932 = vunpack.c.l.b16 %v669
  %v933 = vunpack.c.l.b16 %v670
  %v934 = vunpack.c.l.b16 %v671
  %v935 = vunpack.c.l.b16 %v672
  %v936 = vunpack.c.l.b16 %v673
  %v937 = vunpack.c.l.b16 %v674
  %v938 = vunpack.c.l.b16 %v675
  %v939 = vunpack.c.l.b16 %v676
  %v940 = vunpack.c.l.b16 %v677
  %v941 = vunpack.c.l.b16 %v678
  %v942 = vunpack.c.l.b16 %v679
  %v943 = vunpack.c.l.b16 %v680
  %v944 = vunpack.c.l.b16 %v681
  %v945 = vunpack.c.l.b16 %v682
  %v946 = vunpack.c.l.b16 %v683
  %v947 = vunpack.c.l.b16 %v684
  %v948 = vunpack.c.l.b16 %v685
  %v949 = vunpack.c.l.b16 %v686
  %v950 = vunpack.c.l.b16 %v687
  %v951 = vunpack.c.l.b16 %v688
  %v952 = vunpack.c.l.b16 %v689
  %v953 = vunpack.c.l.b16 %v690
  %v954 = vunpack.c.l.b16 %v691
  %v955 = vunpack.c.l.b16 %v692
  %v956 = vunpack.c.l.b16 %v693
  %v957 = vunpack.c.l.b16 %v694
  %v958 = vunpack.c.l.b16 %v695
  %v959 = vunpack.c.l.b16 %v696
  %v960 = vunpack.c.l.b16 %v697
  %v961 = vunpack.c.l.b16 %v698
  %v962 = vunpack.c.l.b16 %v699
  %v963 = vunpack.c.l.b16 %v700
  %v964 = vunpack.c.l.b16 %v701
  %v965 = vunpack.c.l.b16 %v702
  %v966 = vunpack.c.l.b16 %v703
  %v967 = vunpack.c.l.b16 %v704
  %v968 = vunpack.c.l.b16 %v705
  %v969 = vunpack.c.l.b16 %v706
  %v970 = vunpack.c.l.b16 %v707
  %v971 = vunpack.c.l.b16 %v708
  %v972 = vunpack.c.l.b16 %v709
  %v973 = vunpack.c.l.b16 %v710
  %v974 = vunpack.c.l.b16 %v711
  %v975 = vunpack.c.l.b16 %v712
  %v976 = vunpack.c.l.b16 %v713
  %v977 = vunpack.c.l.b16 %v714
  %v978 = vunpack.c.l.b16 %v715
  %v979 = vunpack.c.l.b16 %v716
  %v980 = vunpack.c.l.b16 %v717
  %v981 = vunpack.c.l.b16 %v718
  %v982 = vunpack.c.l.b16 %v719
  %v983 = vunpack.c.l.b16 %v720
  %v984 = vunpack.c.l.b16 %v721
  %v985 = vunpack.c.l.b16 %v722
  %v986 = vunpack.c.l.b16 %v723
  %v987 = vunpack.c.l.b16 %v724
  %v988 = vunpack.c.l.b16 %v725
  %v989 = vunpack.c.l.b16 %v726
  %v990 = vunpack.c.l.b16 %v727
  %v991 = vunpack.c.l.b16 %v728
  %v992 = vunpack.c.l.b16 %v729
  %v993 = vunpack.c.l.b16 %v730
  %v994 = vunpack.c.l.b16 %v731
  %v995 = vunpack.c.l.b16 %v732
  %v996 = vunpack.c.l.b16 %v733
  %v997 = vunpack.c.l.b16 %v734
  %v998 = vunpack.c.l.b16 %v735
  %v999 = vunpack.c.l.b16 %v736
  %v1000 = vunpack.c.l.b16 %v737
  %v1001 = vunpack.c.l.b16 %v738
  %v1002 = vunpack.c.l.b16 %v739
  %v1003 = vunpack.c.l.b16 %v740
  %v1004 = vunpack.c.l.b16 %v741
  %v1005 = vunpack.c.l.b16 %v742
  %v1006 = vunpack.c.l.b16 %v743
  %v1007 = vunpack.c.l.b16 %v744
  %v1008 = vunpack.c.l.b16 %v745
  %v1009 = vunpack.c.l.b16 %v746
  %v1010 = vunpack.c.l.b16 %v747
  %v1011 = vunpack.c.l.b16 %v748
  %v1012 = vunpack.c.l.b16 %v749
  %v1013 = vunpack.c.l.b16 %v750
  %v1014 = vunpack.c.l.b16 %v751
  %v1015 = vunpack.c.l.b16 %v752
  %v1016 = vunpack.c.l.b16 %v753
  %v1017 = vunpack.c.l.b16 %v754
  %v1018 = vunpack.c.l.b16 %v755
  %v1019 = vunpack.c.l.b16 %v756
  %v1020 = vunpack.c.l.b16 %v757
  %v1021 = vunpack.c.l.b16 %v758
  %v1022 = vunpack.c.l.b16 %v759
  %v1023 = vunpack.c.l.b16 %v760
  %v1024 = vunpack.c.l.b16 %v761
  %v1025 = vunpack.c.l.b16 %v762
  %v1026 = vunpack.c.l.b16 %v763
  %v1027 = vunpack.c.l.b16 %v764
  %v1028 = vunpack.c.l.b16 %v765
  %v1029 = vunpack.c.l.b16 %v766
  %v1030 = vunpack.c.l.b16 %v767
  %v1031 = vunpack.c.l.b16 %v768
  %v1032 = vunpack.c.l.b16 %v769
  %v1033 = vunpack.c.l.b16 %v770
  %v1034 = vunpack.c.l.b16 %v771
  %v1035 = vunpack.c.l.b16 %v772
  %v1036 = vunpack.c.l.b16 %v773
  %v1037 = vunpack.c.l.b16 %v774
  %v1038 = vunpack.c.l.b16 %v775
  %v1039 = vunpack.c.l.b16 %v776
  %v1040 = vunpack.c.l.b16 %v777
  %v1041 = vunpack.c.l.b16 %v778
  %v1042 = vpack.c.b16 %v915, %v914
  %v1043 = vpack.c.b16 %v917, %v916
  %v1044 = vpack.c.b16 %v919, %v918
  %v1045 = vpack.c.b16 %v921, %v920
  %v1046 = vpack.c.b16 %v923, %v922
  %v1047 = vpack.c.b16 %v925, %v924
  %v1048 = vpack.c.b16 %v927, %v926
  %v1049 = vpack.c.b16 %v929, %v928
  %v1050 = vpack.c.b16 %v931, %v930
  %v1051 = vpack.c.b16 %v933, %v932
  %v1052 = vpack.c.b16 %v935, %v934
  %v1053 = vpack.c.b16 %v937, %v936
  %v1054 = vpack.c.b16 %v939, %v938
  %v1055 = vpack.c.b16 %v941, %v940
  %v1056 = vpack.c.b16 %v943, %v942
  %v1057 = vpack.c.b16 %v945, %v944
  %v1058 = vpack.c.b16 %v947, %v946
  %v1059 = vpack.c.b16 %v949, %v948
  %v1060 = vpack.c.b16 %v951, %v950
  %v1061 = vpack.c.b16 %v953, %v952
  %v1062 = vpack.c.b16 %v955, %v954
  %v1063 = vpack.c.b16 %v957, %v956
  %v1064 = vpack.c.b16 %v959, %v958
  %v1065 = vpack.c.b16 %v961, %v960
  %v1066 = vpack.c.b16 %v963, %v962
  %v1067 = vpack.c.b16 %v965, %v964
  %v1068 = vpack.c.b16 %v967, %v966
  %v1069 = vpack.c.b16 %v969, %v968
  %v1070 = vpack.c.b16 %v971, %v970
  %v1071 = vpack.c.b16 %v973, %v972
  %v1072 = vpack.c.b16 %v975, %v974
  %v1073 = vpack.c.b16 %v977, %v976
  %v1074 = vpack.c.b16 %v979, %v978
  %v1075 = vpack.c.b16 %v981, %v980
  %v1076 = vpack.c.b16 %v983, %v982
  %v1077 = vpack.c.b16 %v985, %v984
  %v1078 = vpack.c.b16 %v987, %v986
  %v1079 = vpack.c.b16 %v989, %v988
  %v1080 = vpack.c.b16 %v991, %v990
  %v1081 = vpack.c.b16 %v993, %v992
  %v1082 = vpack.c.b16 %v995, %v994
  %v1083 = vpack.c.b16 %v997, %v996
  %v1084 = vpack.c.b16 %v999, %v998
  %v1085 = vpack.c.b16 %v1001, %v1000
  %v1086 = vpack.c.b16 %v1003, %v1002
  %v1087 = vpack.c.b16 %v1005, %v1004
  %v1088 = vpack.c.b16 %v1007, %v1006
  %v1089 = vpack.c.b16 %v1009, %v1008
  %v1090 = vpack.c.b16 %v1011, %v1010
  %v1091 = vpack.c.b16 %v1013, %v1012
  %v1092 = vpack.c.b16 %v1015, %v1014
  %v1093 = vpack.c.b16 %v1017, %v1016
  %v1094 = vpack.c.b16 %v1019, %v1018
  %v1095 = vpack.c.b16 %v1021, %v1020
  %v1096 = vpack.c.b16 %v1023, %v1022
  %v1097 = vpack.c.b16 %v1025, %v1024
  %v1098 = vpack.c.b16 %v1027, %v1026
  %v1099 = vpack.c.b16 %v1029, %v1028
  %v1100 = vpack.c.b16 %v1031, %v1030
  %v1101 = vpack.c.b16 %v1033, %v1032
  %v1102 = vpack.c.b16 %v1035, %v1034
  %v1103 = vpack.c.b16 %v1037, %v1036
  %v1104 = vpack.c.b16 %v1039, %v1038
  %v1105 = vpack.c.b16 %v1041, %v1040
  %1170 = vmatprep.subr.bf16.mxu0 0
  %1171 = vmatpush1.bf16.msra.mxu0 %v1049
  %1172 = vmatprep.subr.bf16.mxu0 0
  %1173 = vmatpush1.bf16.msra.mxu0 %v1048
  %1174 = vmatprep.subr.bf16.mxu0 0
  %1175 = vmatpush1.bf16.msra.mxu0 %v1047
  %1176 = vmatprep.subr.bf16.mxu0 0
  %1177 = vmatpush1.bf16.msra.mxu0 %v1046
  %1178 = vmatprep.subr.bf16.mxu0 0
  %1179 = vmatpush1.bf16.msra.mxu0 %v1045
  %1180 = vmatprep.subr.bf16.mxu0 0
  %1181 = vmatpush1.bf16.msra.mxu0 %v1044
  %1182 = vmatprep.subr.bf16.mxu0 0
  %1183 = vmatpush1.bf16.msra.mxu0 %v1043
  %1184 = vmatprep.subr.bf16.mxu0 0
  %1185 = vmatpush1.bf16.msra.mxu0 %v1042
  %1186 = vmatprep.subr.bf16.mxu0 0
  %1187 = vmatpush2.bf16.msra.mxu0 %v1057
  %1188 = vmatprep.subr.bf16.mxu0 0
  %1189 = vmatpush2.bf16.msra.mxu0 %v1056
  %1190 = vmatprep.subr.bf16.mxu0 0
  %1191 = vmatpush2.bf16.msra.mxu0 %v1055
  %1192 = vmatprep.subr.bf16.mxu0 0
  %1193 = vmatpush2.bf16.msra.mxu0 %v1054
  %1194 = vmatprep.subr.bf16.mxu0 0
  %1195 = vmatpush2.bf16.msra.mxu0 %v1053
  %1196 = vmatprep.subr.bf16.mxu0 0
  %1197 = vmatpush2.bf16.msra.mxu0 %v1052
  %1198 = vmatprep.subr.bf16.mxu0 0
  %1199 = vmatpush2.bf16.msra.mxu0 %v1051
  %1200 = vmatprep.subr.bf16.mxu0 0
  %1201 = vmatpush2.bf16.msra.mxu0 %v1050
  %1202 = vmatprep.mubr.bf16.mxu0 %v644
  %1203 = vmatmul.mubr.bf16.gmra.mxu0 %v643
  %v1204 = vpop.f32.mrf.mxu0
  %v1205 = vadd.f32 %v784, %v1204
  %v1206 = vpop.f32.mrf.mxu0
  %v1207 = vpop.f32.mrf.mxu0
  %v1208 = vadd.f32 %v784, %v1207
  %v1209 = vpop.f32.mrf.mxu0
  %1210 = vdwg.mxu0
  %1211 = vmatprep.subr.bf16.mxu0 0
  %1212 = vmatpush1.bf16.msra.mxu0 %v1065
  %1213 = vmatprep.subr.bf16.mxu0 0
  %1214 = vmatpush1.bf16.msra.mxu0 %v1064
  %1215 = vmatprep.subr.bf16.mxu0 0
  %1216 = vmatpush1.bf16.msra.mxu0 %v1063
  %1217 = vmatprep.subr.bf16.mxu0 0
  %1218 = vmatpush1.bf16.msra.mxu0 %v1062
  %1219 = vmatprep.subr.bf16.mxu0 0
  %1220 = vmatpush1.bf16.msra.mxu0 %v1061
  %1221 = vmatprep.subr.bf16.mxu0 0
  %1222 = vmatpush1.bf16.msra.mxu0 %v1060
  %1223 = vmatprep.subr.bf16.mxu0 0
  %1224 = vmatpush1.bf16.msra.mxu0 %v1059
  %1225 = vmatprep.subr.bf16.mxu0 0
  %1226 = vmatpush1.bf16.msra.mxu0 %v1058
  %1227 = vmatprep.subr.bf16.mxu0 0
  %1228 = vmatpush2.bf16.msra.mxu0 %v1073
  %1229 = vmatprep.subr.bf16.mxu0 0
  %1230 = vmatpush2.bf16.msra.mxu0 %v1072
  %1231 = vmatprep.subr.bf16.mxu0 0
  %1232 = vmatpush2.bf16.msra.mxu0 %v1071
  %1233 = vmatprep.subr.bf16.mxu0 0
  %1234 = vmatpush2.bf16.msra.mxu0 %v1070
  %1235 = vmatprep.subr.bf16.mxu0 0
  %1236 = vmatpush2.bf16.msra.mxu0 %v1069
  %1237 = vmatprep.subr.bf16.mxu0 0
  %1238 = vmatpush2.bf16.msra.mxu0 %v1068
  %1239 = vmatprep.subr.bf16.mxu0 0
  %1240 = vmatpush2.bf16.msra.mxu0 %v1067
  %1241 = vmatprep.subr.bf16.mxu0 0
  %1242 = vmatpush2.bf16.msra.mxu0 %v1066
  %1243 = vmatprep.mubr.bf16.mxu0 %v646
  %1244 = vmatmul.mubr.bf16.gmra.mxu0 %v645
  %v1245 = vpop.f32.mrf.mxu0
  %v1246 = vadd.f32 %v1205, %v1245
  %v1247 = vpop.f32.mrf.mxu0
  %v1248 = vpop.f32.mrf.mxu0
  %v1249 = vadd.f32 %v1208, %v1248
  %v1250 = vpop.f32.mrf.mxu0
  %1251 = vdwg.mxu0
  %1252 = vmatprep.subr.bf16.mxu0 0
  %1253 = vmatpush1.bf16.msra.mxu0 %v1081
  %1254 = vmatprep.subr.bf16.mxu0 0
  %1255 = vmatpush1.bf16.msra.mxu0 %v1080
  %1256 = vmatprep.subr.bf16.mxu0 0
  %1257 = vmatpush1.bf16.msra.mxu0 %v1079
  %1258 = vmatprep.subr.bf16.mxu0 0
  %1259 = vmatpush1.bf16.msra.mxu0 %v1078
  %1260 = vmatprep.subr.bf16.mxu0 0
  %1261 = vmatpush1.bf16.msra.mxu0 %v1077
  %1262 = vmatprep.subr.bf16.mxu0 0
  %1263 = vmatpush1.bf16.msra.mxu0 %v1076
  %1264 = vmatprep.subr.bf16.mxu0 0
  %1265 = vmatpush1.bf16.msra.mxu0 %v1075
  %1266 = vmatprep.subr.bf16.mxu0 0
  %1267 = vmatpush1.bf16.msra.mxu0 %v1074
  %1268 = vmatprep.subr.bf16.mxu0 0
  %1269 = vmatpush2.bf16.msra.mxu0 %v1089
  %1270 = vmatprep.subr.bf16.mxu0 0
  %1271 = vmatpush2.bf16.msra.mxu0 %v1088
  %1272 = vmatprep.subr.bf16.mxu0 0
  %1273 = vmatpush2.bf16.msra.mxu0 %v1087
  %1274 = vmatprep.subr.bf16.mxu0 0
  %1275 = vmatpush2.bf16.msra.mxu0 %v1086
  %1276 = vmatprep.subr.bf16.mxu0 0
  %1277 = vmatpush2.bf16.msra.mxu0 %v1085
  %1278 = vmatprep.subr.bf16.mxu0 0
  %1279 = vmatpush2.bf16.msra.mxu0 %v1084
  %1280 = vmatprep.subr.bf16.mxu0 0
  %1281 = vmatpush2.bf16.msra.mxu0 %v1083
  %1282 = vmatprep.subr.bf16.mxu0 0
  %1283 = vmatpush2.bf16.msra.mxu0 %v1082
  %1284 = vmatprep.mubr.bf16.mxu0 %v648
  %1285 = vmatmul.mubr.bf16.gmra.mxu0 %v647
  %v1286 = vpop.f32.mrf.mxu0
  %v1287 = vadd.f32 %v1246, %v1286
  %v1288 = vpop.f32.mrf.mxu0
  %v1289 = vpop.f32.mrf.mxu0
  %v1290 = vadd.f32 %v1249, %v1289
  %v1291 = vpop.f32.mrf.mxu0
  %1292 = vdwg.mxu0
  %1293 = vmatprep.subr.bf16.mxu0 0
  %1294 = vmatpush1.bf16.msra.mxu0 %v1097
  %1295 = vmatprep.subr.bf16.mxu0 0
  %1296 = vmatpush1.bf16.msra.mxu0 %v1096
  %1297 = vmatprep.subr.bf16.mxu0 0
  %1298 = vmatpush1.bf16.msra.mxu0 %v1095
  %1299 = vmatprep.subr.bf16.mxu0 0
  %1300 = vmatpush1.bf16.msra.mxu0 %v1094
  %1301 = vmatprep.subr.bf16.mxu0 0
  %1302 = vmatpush1.bf16.msra.mxu0 %v1093
  %1303 = vmatprep.subr.bf16.mxu0 0
  %1304 = vmatpush1.bf16.msra.mxu0 %v1092
  %1305 = vmatprep.subr.bf16.mxu0 0
  %1306 = vmatpush1.bf16.msra.mxu0 %v1091
  %1307 = vmatprep.subr.bf16.mxu0 0
  %1308 = vmatpush1.bf16.msra.mxu0 %v1090
  %1309 = vmatprep.subr.bf16.mxu0 0
  %1310 = vmatpush2.bf16.msra.mxu0 %v1105
  %1311 = vmatprep.subr.bf16.mxu0 0
  %1312 = vmatpush2.bf16.msra.mxu0 %v1104
  %1313 = vmatprep.subr.bf16.mxu0 0
  %1314 = vmatpush2.bf16.msra.mxu0 %v1103
  %1315 = vmatprep.subr.bf16.mxu0 0
  %1316 = vmatpush2.bf16.msra.mxu0 %v1102
  %1317 = vmatprep.subr.bf16.mxu0 0
  %1318 = vmatpush2.bf16.msra.mxu0 %v1101
  %1319 = vmatprep.subr.bf16.mxu0 0
  %1320 = vmatpush2.bf16.msra.mxu0 %v1100
  %1321 = vmatprep.subr.bf16.mxu0 0
  %1322 = vmatpush2.bf16.msra.mxu0 %v1099
  %1323 = vmatprep.subr.bf16.mxu0 0
  %1324 = vmatpush2.bf16.msra.mxu0 %v1098
  %1325 = vmatprep.mubr.bf16.mxu0 %v650
  %1326 = vmatmul.mubr.bf16.gmra.mxu0 %v649
  %v1327 = vpop.f32.mrf.mxu0
  %v1328 = vadd.f32 %v1287, %v1327
  %v1329 = vpop.f32.mrf.mxu0
  %v1330 = vpop.f32.mrf.mxu0
  %v1331 = vadd.f32 %v1290, %v1330
  %v1332 = vpop.f32.mrf.mxu0
  %1333 = vdwg.mxu0
  %v1334 = vlaneseq
  %v1335 = vand.u32 %v1334, 127
  %v1336 = vlaneseq
  %v1337 = vshrl.u32 %v1336, 7
  %v1338 = vadd.s32 %v1337, 8
  %vm1339 = vcmp.lt.s32.totalorder %v1335, 6
  %vm1340 = vcmp.lt.s32.totalorder %v1337, 2
  %vm1341 = vcmp.lt.s32.totalorder %v1338, 2
  %vm1342 = vmand %vm1339, %vm1340
  %vm1343 = vmand %vm1339, %vm1341
  %v1344 = vsel %vm1342, %v1328, 0.0
  %v1345 = vsel %vm1343, %v1331, 0.0
  %v1346 = vadd.f32 %v1344, %v1345
  %1347 = vadd.xlane.f32.xlu0 %v1346
  %v1348 = vpop.xlane.xlu0 %1347
  %v1349 = vrot.slane %v1348, 4
  %v1350 = vadd.f32 %v1348, %v1349
  %v1351 = vrot.slane %v1350, 2
  %v1352 = vadd.f32 %v1350, %v1351
  %v1353 = vrot.slane %v1352, 1
  %v1354 = vadd.f32 %v1352, %v1353
  %s1355 = vtos %v1354
  %s1356 = smul.f32 %s1355, 0.083333336
  %1358 = vset.pattern.permute.xlu0 6
  %1359 = vperm.xlu0 %1358, %v1328
  %v1360 = vpop.permute.xlu0 %1359
  %1363 = vset.pattern.permute.xlu0 6
  %1364 = vperm.xlu0 %1363, %v1331
  %v1365 = vpop.permute.xlu0 %1364
  %v1367 = vadd.f32 %v1360, %v1328
  %v1368 = vadd.f32 %v1365, %v1331
  %v1369 = vstv %s1356
  %v1370 = vsub.f32 %v1367, %v1369
  %v1371 = vsub.f32 %v1368, %v1369
  %1372 = vst [vmem:[%s5] sm:$0xff] %v1370
  %1373 = vst [vmem:[%s5 + $0x8] sm:$0xff] %v1371
  // Predicated region
  $region22: #{dueling_dqn_forward.7} parent=0 // pred_check
    _
  $region23: #{dueling_dqn_forward.7} parent=0 // pred_check_branch
    %1375 = sbr.rel (0) target = $region25
  $region24: #{dueling_dqn_forward.7} parent=0 // pred_region
    _
  $region25: #{dueling_dqn_forward.7} parent=0 // pred_fallthru
    _
  // Predicated region
  $region26: #{dueling_dqn_forward.7} parent=0 // pred_check
    _
  $region27: #{dueling_dqn_forward.7} parent=0 // pred_check_branch
    %1377 = sbr.rel (0) target = $region29
  $region28: #{dueling_dqn_forward.7} parent=0 // pred_region
    _
  $region29: #{dueling_dqn_forward.7} parent=0 // pred_fallthru
    _

</llo_original>
